<compile_context>
chip_gen: v5e
topology: v5e:2x2
jax: 0.10.0
libtpu: 0.0.40
codegen_flags: <defaults>
</compile_context>

<pallas_src>
import functools

import jax
import jax.numpy as jnp
import numpy as np
from jax import lax
from jax.experimental import pallas as pl
from jax.experimental.pallas import tpu as pltpu


def _leaky_relu(x, slope=0.2):
    return jnp.where(x >= 0, x, slope * x)


def resblock_kernel(hl_ref, xc_ref, hr_ref, w1_ref, b1_ref, w2_ref, b2_ref,
                    o_ref, patches_ref, *, tap_offsets, halo_pad):
    # hl_ref: (Cin, HALO)  flat cols [i*tm - HALO, i*tm)  (step 0: zeroed here)
    # xc_ref: (Cin, tm)    raw center cols (conv input AND residual)
    # hr_ref: (Cin, HALO)  flat cols [(i+1)*tm, (i+1)*tm + HALO)
    # w1_ref: (Cmid, K)    fused 3x3x3 weights, K = round_up(27*Cin, 8)
    # b1_ref: (Cmid, 1)    w2_ref: (Cin, Cmid)    b2_ref: (Cin, 1)
    # o_ref:  (Cin, tm)
    # patches_ref: (K, tm) VMEM scratch holding the fused im2col tile
    cin, tm = xc_ref.shape
    k_pad = patches_ref.shape[0]
    n_taps = len(tap_offsets)

    xc = xc_ref[...]
    hl = hl_ref[...]
    # Grid step 0 has no real left halo (its DMA was clamped to block 0 of the
    # stream); substitute the out-of-volume zeros it stands for.
    hl = jnp.where(pl.program_id(0) == 0, jnp.zeros_like(hl), hl)

    # Window of flat cols [i*tm - HALO, (i+1)*tm + HALO); LeakyReLU applied
    # once (LeakyReLU(0)=0 so it commutes with the zero padding).
    act = _leaky_relu(jnp.concatenate([hl, xc, hr_ref[...]], axis=-1))

    # Fused im2col in VMEM: tap t -> rows [t*Cin, (t+1)*Cin) of (K, tm).
    for t, off in enumerate(tap_offsets):
        patches_ref[pl.ds(t * cin, cin), :] = lax.slice_in_dim(
            act, halo_pad + off, halo_pad + off + tm, axis=1)
    if k_pad > n_taps * cin:                      # zero the K-padding rows
        patches_ref[pl.ds(n_taps * cin, k_pad - n_taps * cin), :] = jnp.zeros(
            (k_pad - n_taps * cin, tm), jnp.float32)

    # 3x3x3 conv == ONE (Cmid,K)@(K,tm) matmul instead of 27 K=Cin matmuls.
    h = jnp.dot(w1_ref[...], patches_ref[...],
                preferred_element_type=jnp.float32,
                precision=lax.Precision.HIGHEST)
    h = _leaky_relu(h + b1_ref[...])              # second LeakyReLU

    # 1x1x1 conv + bias + residual; lane-dense store.
    out = jnp.dot(w2_ref[...], h,
                  preferred_element_type=jnp.float32,
                  precision=lax.Precision.HIGHEST)
    o_ref[...] = out + b2_ref[...] + xc


def resblock_forward(x_ncdhw, w1_pt, b1, w2_pt, b2, *, tm=None):
    """x_ncdhw: (N, Cin, D, H, W) f32.  Returns (N, Cin, D, H, W) f32."""
    N, Cin, D, H, W = x_ncdhw.shape
    Cmid = w1_pt.shape[0]
    Dp, Hp, Wp = D + 2, H + 2, W + 2
    Mp = N * Dp * Hp * Wp                       # one anchor column per padded voxel

    halo = Hp * Wp + Wp + 1                     # farthest tap reach (flat columns)
    HALO = -(-halo // 128) * 128                # halo block = whole 128-lane tiles

    if tm is None:                              # grow tm, keep >=4 grid steps if possible
        tm = max(2 * HALO, 256)
        while tm * 2 <= 4096 and -(-Mp // (tm * 2)) >= 4:
            tm *= 2
    assert tm % HALO == 0 and tm % 128 == 0
    nblk = -(-Mp // tm)
    Mp_pad = nblk * tm
    blk_per_tm = tm // HALO

    # --- single data-movement pass: channels-first, spatial zero-pad, flatten,
    #     pad the tail so every center/halo block is in range.  No separate
    #     halo_l / halo_r / x_anchor arrays are built.
    xt = jnp.transpose(x_ncdhw, (1, 0, 2, 3, 4))                      # (Cin,N,D,H,W)
    xq = jnp.pad(xt, ((0, 0), (0, 0), (1, 1), (1, 1), (1, 1)))        # zero pad=1
    x_big = jnp.pad(xq.reshape(Cin, Mp),
                    ((0, 0), (0, Mp_pad + HALO - Mp)))                # (Cin, Mp_pad+HALO)

    # --- weights: (Cmid,Cin,3,3,3) -> (Cmid, 27*Cin), zero-padded to K
    tap_offsets = tuple((kd - 1) * Hp * Wp + (kh - 1) * Wp + (kw - 1)
                        for kd in range(3) for kh in range(3) for kw in range(3))
    n_taps = len(tap_offsets)
    K = -(-(n_taps * Cin) // 8) * 8             # round up to full sublane tiles
    w1_k = jnp.transpose(w1_pt, (0, 2, 3, 4, 1)).reshape(Cmid, n_taps * Cin)
    w1_k = jnp.pad(w1_k, ((0, 0), (0, K - n_taps * Cin)))
    w2_m = w2_pt[:, :, 0, 0, 0]                                        # (Cin, Cmid)
    b1c = b1.reshape(Cmid, 1)
    b2c = b2.reshape(Cin, 1)

    kernel = functools.partial(resblock_kernel, tap_offsets=tap_offsets,
                               halo_pad=HALO)

    out_flat = pl.pallas_call(
        kernel,
        out_shape=jax.ShapeDtypeStruct((Cin, Mp_pad), jnp.float32),
        grid_spec=pltpu.PrefetchScalarGridSpec(
            num_scalar_prefetch=0,
            grid=(nblk,),
            in_specs=[
                # left halo: flat cols [i*tm - HALO, i*tm); step 0 clamped to blk 0
                pl.BlockSpec((Cin, HALO),
                             lambda i: (0, jnp.maximum(i * blk_per_tm - 1, 0))),
                # center: flat cols [i*tm, (i+1)*tm)
                pl.BlockSpec((Cin, tm), lambda i: (0, i)),
                # right halo: flat cols [(i+1)*tm, (i+1)*tm + HALO)
                pl.BlockSpec((Cin, HALO), lambda i: (0, (i + 1) * blk_per_tm)),
                pl.BlockSpec((Cmid, K), lambda i: (0, 0)),     # resident weights
                pl.BlockSpec((Cmid, 1), lambda i: (0, 0)),
                pl.BlockSpec((Cin, Cmid), lambda i: (0, 0)),
                pl.BlockSpec((Cin, 1), lambda i: (0, 0)),
            ],
            out_specs=pl.BlockSpec((Cin, tm), lambda i: (0, i)),
            scratch_shapes=[pltpu.VMEM((K, tm), jnp.float32)],  # fused im2col tile
        ),
        compiler_params=pltpu.CompilerParams(
            dimension_semantics=("parallel",)),   # shards blocks over v7x's 2 TCs
    )(x_big, x_big, x_big, w1_k, b1c, w2_m, b2c)

    # drop padded-anchor garbage, back to NCDHW
    outq = out_flat[:, :Mp].reshape(Cin, N, Dp, Hp, Wp)
    out = outq[:, :, 1:1 + D, 1:1 + H, 1:1 + W]
    return jnp.transpose(out, (1, 0, 2, 3, 4))


def _reference(x_ncdhw, w1_pt, b1, w2_pt, b2):
    """Pure-JAX reference matching the PyTorch forward."""
    x = jnp.transpose(x_ncdhw, (0, 2, 3, 4, 1))                        # NDHWC
    a = _leaky_relu(x)
    w1 = jnp.transpose(w1_pt, (2, 3, 4, 1, 0))                         # DHWIO
    h = lax.conv_general_dilated(
        a, w1, window_strides=(1, 1, 1), padding=((1, 1), (1, 1), (1, 1)),
        dimension_numbers=("NDHWC", "DHWIO", "NDHWC"),
        precision=lax.Precision.HIGHEST) + b1
    h = _leaky_relu(h)
    w2 = jnp.transpose(w2_pt, (2, 3, 4, 1, 0))
    o = lax.conv_general_dilated(
        h, w2, window_strides=(1, 1, 1), padding="VALID",
        dimension_numbers=("NDHWC", "DHWIO", "NDHWC"),
        precision=lax.Precision.HIGHEST) + b2
    o = o + x
    return jnp.transpose(o, (0, 4, 1, 2, 3))


if __name__ == "__main__":
    # ResBlock(in_channel=4, channel=8) on a (2, 4, 8, 8, 8) NCDHW input.
    N, Cin, Cmid, D, H, W = 2, 4, 8, 8, 8, 8

    key = jax.random.PRNGKey(0)
    kx, k1, k2, k3, k4 = jax.random.split(key, 5)
    x = jax.random.normal(kx, (N, Cin, D, H, W), dtype=jnp.float32)
    # Conv3d(in_channel, channel, 3): weight (Cmid, Cin, 3, 3, 3), bias (Cmid,)
    w1 = 0.1 * jax.random.normal(k1, (Cmid, Cin, 3, 3, 3), dtype=jnp.float32)
    b1 = 0.1 * jax.random.normal(k2, (Cmid,), dtype=jnp.float32)
    # Conv3d(channel, in_channel, 1): weight (Cin, Cmid, 1, 1, 1), bias (Cin,)
    w2 = 0.1 * jax.random.normal(k3, (Cin, Cmid, 1, 1, 1), dtype=jnp.float32)
    b2 = 0.1 * jax.random.normal(k4, (Cin,), dtype=jnp.float32)

    out = jax.block_until_ready(resblock_forward(x, w1, b1, w2, b2))

    ref = jax.block_until_ready(_reference(x, w1, b1, w2, b2))
    assert out.shape == (N, Cin, D, H, W)
    np.testing.assert_allclose(np.asarray(out), np.asarray(ref),
                               rtol=1e-4, atol=1e-4)
    print("KERNEL_OK")
</pallas_src>

<mosaic_0001>
module attributes {stable_mosaic.version = 11 : i64} {
  func.func @resblock_kernel(%arg0: i32, %arg1: memref<4x128xf32, #tpu.memory_space<vmem>>, %arg2: memref<4x512xf32, #tpu.memory_space<vmem>>, %arg3: memref<4x128xf32, #tpu.memory_space<vmem>>, %arg4: memref<8x112xf32, #tpu.memory_space<vmem>>, %arg5: memref<8x1xf32, #tpu.memory_space<vmem>>, %arg6: memref<4x8xf32, #tpu.memory_space<vmem>>, %arg7: memref<4x1xf32, #tpu.memory_space<vmem>>, %arg8: memref<4x512xf32, #tpu.memory_space<vmem>>, %arg9: memref<112x512xf32, #tpu.memory_space<vmem>>) attributes {dimension_semantics = [#tpu.dimension_semantics<parallel>], iteration_bounds = array<i64: 4>, scalar_prefetch = 0 : i64, scratch_operands = 1 : i64, tpu.core_type = #tpu.core_type<tc>, window_params = [{transform_indices = @transform_0, window_bounds = array<i64: 4, 128>}, {transform_indices = @transform_1, window_bounds = array<i64: 4, 512>}, {transform_indices = @transform_2, window_bounds = array<i64: 4, 128>}, {pipeline_mode = #tpu.pipeline_mode<synchronous>, transform_indices = @transform_3, window_bounds = array<i64: 8, 112>}, {pipeline_mode = #tpu.pipeline_mode<synchronous>, transform_indices = @transform_4, window_bounds = array<i64: 8, 1>}, {pipeline_mode = #tpu.pipeline_mode<synchronous>, transform_indices = @transform_5, window_bounds = array<i64: 4, 8>}, {pipeline_mode = #tpu.pipeline_mode<synchronous>, transform_indices = @transform_6, window_bounds = array<i64: 4, 1>}, {transform_indices = @transform_7, window_bounds = array<i64: 4, 512>}]} {
    %c0 = arith.constant 0 : index
    %c0_0 = arith.constant 0 : index
    %0 = vector.load %arg2[%c0, %c0_0] : memref<4x512xf32, #tpu.memory_space<vmem>>, vector<4x512xf32>
    %c0_1 = arith.constant 0 : index
    %c0_2 = arith.constant 0 : index
    %1 = vector.load %arg1[%c0_1, %c0_2] : memref<4x128xf32, #tpu.memory_space<vmem>>, vector<4x128xf32>
    %c0_i32 = arith.constant 0 : i32
    %2 = arith.cmpi eq, %arg0, %c0_i32 : i32
    %cst = arith.constant 0.000000e+00 : f32
    %3 = vector.broadcast %cst : f32 to vector<4x128xf32>
    %4 = arith.select %2, %3, %1 : vector<4x128xf32>
    %c0_3 = arith.constant 0 : index
    %c0_4 = arith.constant 0 : index
    %5 = vector.load %arg3[%c0_3, %c0_4] : memref<4x128xf32, #tpu.memory_space<vmem>>, vector<4x128xf32>
    %6 = tpu.concatenate %4, %0, %5 in 1 : vector<4x128xf32>, vector<4x512xf32>, vector<4x128xf32> -> vector<4x768xf32>
    %cst_5 = arith.constant 0.000000e+00 : f32
    %7 = vector.broadcast %cst_5 : f32 to vector<4x768xf32>
    %8 = arith.cmpf oge, %6, %7 : vector<4x768xf32>
    %cst_6 = arith.constant 2.000000e-01 : f32
    %9 = vector.broadcast %cst_6 : f32 to vector<4x768xf32>
    %10 = arith.mulf %9, %6 : vector<4x768xf32>
    %11 = arith.select %8, %6, %10 : vector<4x768xi1>, vector<4x768xf32>
    %12 = vector.extract_strided_slice %11 {offsets = [0, 17], sizes = [4, 512], strides = [1, 1]} : vector<4x768xf32> to vector<4x512xf32>
    %c0_7 = arith.constant 0 : index
    %c0_8 = arith.constant 0 : index
    %13 = vector.load %arg9[%c0_7, %c0_8] : memref<112x512xf32, #tpu.memory_space<vmem>>, vector<4x512xf32>
    tpu.vector_store %arg9[%c0_7, %c0_8], %12 {strides = array<i32>} : memref<112x512xf32, #tpu.memory_space<vmem>>, vector<4x512xf32>,
    %14 = vector.extract_strided_slice %11 {offsets = [0, 18], sizes = [4, 512], strides = [1, 1]} : vector<4x768xf32> to vector<4x512xf32>
    %c4 = arith.constant 4 : index
    %c0_9 = arith.constant 0 : index
    %15 = vector.load %arg9[%c4, %c0_9] : memref<112x512xf32, #tpu.memory_space<vmem>>, vector<4x512xf32>
    tpu.vector_store %arg9[%c4, %c0_9], %14 {strides = array<i32>} : memref<112x512xf32, #tpu.memory_space<vmem>>, vector<4x512xf32>,
    %16 = vector.extract_strided_slice %11 {offsets = [0, 19], sizes = [4, 512], strides = [1, 1]} : vector<4x768xf32> to vector<4x512xf32>
    %c8 = arith.constant 8 : index
    %c0_10 = arith.constant 0 : index
    %17 = vector.load %arg9[%c8, %c0_10] : memref<112x512xf32, #tpu.memory_space<vmem>>, vector<4x512xf32>
    tpu.vector_store %arg9[%c8, %c0_10], %16 {strides = array<i32>} : memref<112x512xf32, #tpu.memory_space<vmem>>, vector<4x512xf32>,
    %18 = vector.extract_strided_slice %11 {offsets = [0, 27], sizes = [4, 512], strides = [1, 1]} : vector<4x768xf32> to vector<4x512xf32>
    %c12 = arith.constant 12 : index
    %c0_11 = arith.constant 0 : index
    %19 = vector.load %arg9[%c12, %c0_11] : memref<112x512xf32, #tpu.memory_space<vmem>>, vector<4x512xf32>
    tpu.vector_store %arg9[%c12, %c0_11], %18 {strides = array<i32>} : memref<112x512xf32, #tpu.memory_space<vmem>>, vector<4x512xf32>,
    %20 = vector.extract_strided_slice %11 {offsets = [0, 28], sizes = [4, 512], strides = [1, 1]} : vector<4x768xf32> to vector<4x512xf32>
    %c16 = arith.constant 16 : index
    %c0_12 = arith.constant 0 : index
    %21 = vector.load %arg9[%c16, %c0_12] : memref<112x512xf32, #tpu.memory_space<vmem>>, vector<4x512xf32>
    tpu.vector_store %arg9[%c16, %c0_12], %20 {strides = array<i32>} : memref<112x512xf32, #tpu.memory_space<vmem>>, vector<4x512xf32>,
    %22 = vector.extract_strided_slice %11 {offsets = [0, 29], sizes = [4, 512], strides = [1, 1]} : vector<4x768xf32> to vector<4x512xf32>
    %c20 = arith.constant 20 : index
    %c0_13 = arith.constant 0 : index
    %23 = vector.load %arg9[%c20, %c0_13] : memref<112x512xf32, #tpu.memory_space<vmem>>, vector<4x512xf32>
    tpu.vector_store %arg9[%c20, %c0_13], %22 {strides = array<i32>} : memref<112x512xf32, #tpu.memory_space<vmem>>, vector<4x512xf32>,
    %24 = vector.extract_strided_slice %11 {offsets = [0, 37], sizes = [4, 512], strides = [1, 1]} : vector<4x768xf32> to vector<4x512xf32>
    %c24 = arith.constant 24 : index
    %c0_14 = arith.constant 0 : index
    %25 = vector.load %arg9[%c24, %c0_14] : memref<112x512xf32, #tpu.memory_space<vmem>>, vector<4x512xf32>
    tpu.vector_store %arg9[%c24, %c0_14], %24 {strides = array<i32>} : memref<112x512xf32, #tpu.memory_space<vmem>>, vector<4x512xf32>,
    %26 = vector.extract_strided_slice %11 {offsets = [0, 38], sizes = [4, 512], strides = [1, 1]} : vector<4x768xf32> to vector<4x512xf32>
    %c28 = arith.constant 28 : index
    %c0_15 = arith.constant 0 : index
    %27 = vector.load %arg9[%c28, %c0_15] : memref<112x512xf32, #tpu.memory_space<vmem>>, vector<4x512xf32>
    tpu.vector_store %arg9[%c28, %c0_15], %26 {strides = array<i32>} : memref<112x512xf32, #tpu.memory_space<vmem>>, vector<4x512xf32>,
    %28 = vector.extract_strided_slice %11 {offsets = [0, 39], sizes = [4, 512], strides = [1, 1]} : vector<4x768xf32> to vector<4x512xf32>
    %c32 = arith.constant 32 : index
    %c0_16 = arith.constant 0 : index
    %29 = vector.load %arg9[%c32, %c0_16] : memref<112x512xf32, #tpu.memory_space<vmem>>, vector<4x512xf32>
    tpu.vector_store %arg9[%c32, %c0_16], %28 {strides = array<i32>} : memref<112x512xf32, #tpu.memory_space<vmem>>, vector<4x512xf32>,
    %30 = vector.extract_strided_slice %11 {offsets = [0, 117], sizes = [4, 512], strides = [1, 1]} : vector<4x768xf32> to vector<4x512xf32>
    %c36 = arith.constant 36 : index
    %c0_17 = arith.constant 0 : index
    %31 = vector.load %arg9[%c36, %c0_17] : memref<112x512xf32, #tpu.memory_space<vmem>>, vector<4x512xf32>
    tpu.vector_store %arg9[%c36, %c0_17], %30 {strides = array<i32>} : memref<112x512xf32, #tpu.memory_space<vmem>>, vector<4x512xf32>,
    %32 = vector.extract_strided_slice %11 {offsets = [0, 118], sizes = [4, 512], strides = [1, 1]} : vector<4x768xf32> to vector<4x512xf32>
    %c40 = arith.constant 40 : index
    %c0_18 = arith.constant 0 : index
    %33 = vector.load %arg9[%c40, %c0_18] : memref<112x512xf32, #tpu.memory_space<vmem>>, vector<4x512xf32>
    tpu.vector_store %arg9[%c40, %c0_18], %32 {strides = array<i32>} : memref<112x512xf32, #tpu.memory_space<vmem>>, vector<4x512xf32>,
    %34 = vector.extract_strided_slice %11 {offsets = [0, 119], sizes = [4, 512], strides = [1, 1]} : vector<4x768xf32> to vector<4x512xf32>
    %c44 = arith.constant 44 : index
    %c0_19 = arith.constant 0 : index
    %35 = vector.load %arg9[%c44, %c0_19] : memref<112x512xf32, #tpu.memory_space<vmem>>, vector<4x512xf32>
    tpu.vector_store %arg9[%c44, %c0_19], %34 {strides = array<i32>} : memref<112x512xf32, #tpu.memory_space<vmem>>, vector<4x512xf32>,
    %36 = vector.extract_strided_slice %11 {offsets = [0, 127], sizes = [4, 512], strides = [1, 1]} : vector<4x768xf32> to vector<4x512xf32>
    %c48 = arith.constant 48 : index
    %c0_20 = arith.constant 0 : index
    %37 = vector.load %arg9[%c48, %c0_20] : memref<112x512xf32, #tpu.memory_space<vmem>>, vector<4x512xf32>
    tpu.vector_store %arg9[%c48, %c0_20], %36 {strides = array<i32>} : memref<112x512xf32, #tpu.memory_space<vmem>>, vector<4x512xf32>,
    %38 = vector.extract_strided_slice %11 {offsets = [0, 128], sizes = [4, 512], strides = [1, 1]} : vector<4x768xf32> to vector<4x512xf32>
    %c52 = arith.constant 52 : index
    %c0_21 = arith.constant 0 : index
    %39 = vector.load %arg9[%c52, %c0_21] : memref<112x512xf32, #tpu.memory_space<vmem>>, vector<4x512xf32>
    tpu.vector_store %arg9[%c52, %c0_21], %38 {strides = array<i32>} : memref<112x512xf32, #tpu.memory_space<vmem>>, vector<4x512xf32>,
    %40 = vector.extract_strided_slice %11 {offsets = [0, 129], sizes = [4, 512], strides = [1, 1]} : vector<4x768xf32> to vector<4x512xf32>
    %c56 = arith.constant 56 : index
    %c0_22 = arith.constant 0 : index
    %41 = vector.load %arg9[%c56, %c0_22] : memref<112x512xf32, #tpu.memory_space<vmem>>, vector<4x512xf32>
    tpu.vector_store %arg9[%c56, %c0_22], %40 {strides = array<i32>} : memref<112x512xf32, #tpu.memory_space<vmem>>, vector<4x512xf32>,
    %42 = vector.extract_strided_slice %11 {offsets = [0, 137], sizes = [4, 512], strides = [1, 1]} : vector<4x768xf32> to vector<4x512xf32>
    %c60 = arith.constant 60 : index
    %c0_23 = arith.constant 0 : index
    %43 = vector.load %arg9[%c60, %c0_23] : memref<112x512xf32, #tpu.memory_space<vmem>>, vector<4x512xf32>
    tpu.vector_store %arg9[%c60, %c0_23], %42 {strides = array<i32>} : memref<112x512xf32, #tpu.memory_space<vmem>>, vector<4x512xf32>,
    %44 = vector.extract_strided_slice %11 {offsets = [0, 138], sizes = [4, 512], strides = [1, 1]} : vector<4x768xf32> to vector<4x512xf32>
    %c64 = arith.constant 64 : index
    %c0_24 = arith.constant 0 : index
    %45 = vector.load %arg9[%c64, %c0_24] : memref<112x512xf32, #tpu.memory_space<vmem>>, vector<4x512xf32>
    tpu.vector_store %arg9[%c64, %c0_24], %44 {strides = array<i32>} : memref<112x512xf32, #tpu.memory_space<vmem>>, vector<4x512xf32>,
    %46 = vector.extract_strided_slice %11 {offsets = [0, 139], sizes = [4, 512], strides = [1, 1]} : vector<4x768xf32> to vector<4x512xf32>
    %c68 = arith.constant 68 : index
    %c0_25 = arith.constant 0 : index
    %47 = vector.load %arg9[%c68, %c0_25] : memref<112x512xf32, #tpu.memory_space<vmem>>, vector<4x512xf32>
    tpu.vector_store %arg9[%c68, %c0_25], %46 {strides = array<i32>} : memref<112x512xf32, #tpu.memory_space<vmem>>, vector<4x512xf32>,
    %48 = vector.extract_strided_slice %11 {offsets = [0, 217], sizes = [4, 512], strides = [1, 1]} : vector<4x768xf32> to vector<4x512xf32>
    %c72 = arith.constant 72 : index
    %c0_26 = arith.constant 0 : index
    %49 = vector.load %arg9[%c72, %c0_26] : memref<112x512xf32, #tpu.memory_space<vmem>>, vector<4x512xf32>
    tpu.vector_store %arg9[%c72, %c0_26], %48 {strides = array<i32>} : memref<112x512xf32, #tpu.memory_space<vmem>>, vector<4x512xf32>,
    %50 = vector.extract_strided_slice %11 {offsets = [0, 218], sizes = [4, 512], strides = [1, 1]} : vector<4x768xf32> to vector<4x512xf32>
    %c76 = arith.constant 76 : index
    %c0_27 = arith.constant 0 : index
    %51 = vector.load %arg9[%c76, %c0_27] : memref<112x512xf32, #tpu.memory_space<vmem>>, vector<4x512xf32>
    tpu.vector_store %arg9[%c76, %c0_27], %50 {strides = array<i32>} : memref<112x512xf32, #tpu.memory_space<vmem>>, vector<4x512xf32>,
    %52 = vector.extract_strided_slice %11 {offsets = [0, 219], sizes = [4, 512], strides = [1, 1]} : vector<4x768xf32> to vector<4x512xf32>
    %c80 = arith.constant 80 : index
    %c0_28 = arith.constant 0 : index
    %53 = vector.load %arg9[%c80, %c0_28] : memref<112x512xf32, #tpu.memory_space<vmem>>, vector<4x512xf32>
    tpu.vector_store %arg9[%c80, %c0_28], %52 {strides = array<i32>} : memref<112x512xf32, #tpu.memory_space<vmem>>, vector<4x512xf32>,
    %54 = vector.extract_strided_slice %11 {offsets = [0, 227], sizes = [4, 512], strides = [1, 1]} : vector<4x768xf32> to vector<4x512xf32>
    %c84 = arith.constant 84 : index
    %c0_29 = arith.constant 0 : index
    %55 = vector.load %arg9[%c84, %c0_29] : memref<112x512xf32, #tpu.memory_space<vmem>>, vector<4x512xf32>
    tpu.vector_store %arg9[%c84, %c0_29], %54 {strides = array<i32>} : memref<112x512xf32, #tpu.memory_space<vmem>>, vector<4x512xf32>,
    %56 = vector.extract_strided_slice %11 {offsets = [0, 228], sizes = [4, 512], strides = [1, 1]} : vector<4x768xf32> to vector<4x512xf32>
    %c88 = arith.constant 88 : index
    %c0_30 = arith.constant 0 : index
    %57 = vector.load %arg9[%c88, %c0_30] : memref<112x512xf32, #tpu.memory_space<vmem>>, vector<4x512xf32>
    tpu.vector_store %arg9[%c88, %c0_30], %56 {strides = array<i32>} : memref<112x512xf32, #tpu.memory_space<vmem>>, vector<4x512xf32>,
    %58 = vector.extract_strided_slice %11 {offsets = [0, 229], sizes = [4, 512], strides = [1, 1]} : vector<4x768xf32> to vector<4x512xf32>
    %c92 = arith.constant 92 : index
    %c0_31 = arith.constant 0 : index
    %59 = vector.load %arg9[%c92, %c0_31] : memref<112x512xf32, #tpu.memory_space<vmem>>, vector<4x512xf32>
    tpu.vector_store %arg9[%c92, %c0_31], %58 {strides = array<i32>} : memref<112x512xf32, #tpu.memory_space<vmem>>, vector<4x512xf32>,
    %60 = vector.extract_strided_slice %11 {offsets = [0, 237], sizes = [4, 512], strides = [1, 1]} : vector<4x768xf32> to vector<4x512xf32>
    %c96 = arith.constant 96 : index
    %c0_32 = arith.constant 0 : index
    %61 = vector.load %arg9[%c96, %c0_32] : memref<112x512xf32, #tpu.memory_space<vmem>>, vector<4x512xf32>
    tpu.vector_store %arg9[%c96, %c0_32], %60 {strides = array<i32>} : memref<112x512xf32, #tpu.memory_space<vmem>>, vector<4x512xf32>,
    %62 = vector.extract_strided_slice %11 {offsets = [0, 238], sizes = [4, 512], strides = [1, 1]} : vector<4x768xf32> to vector<4x512xf32>
    %c100 = arith.constant 100 : index
    %c0_33 = arith.constant 0 : index
    %63 = vector.load %arg9[%c100, %c0_33] : memref<112x512xf32, #tpu.memory_space<vmem>>, vector<4x512xf32>
    tpu.vector_store %arg9[%c100, %c0_33], %62 {strides = array<i32>} : memref<112x512xf32, #tpu.memory_space<vmem>>, vector<4x512xf32>,
    %64 = vector.extract_strided_slice %11 {offsets = [0, 239], sizes = [4, 512], strides = [1, 1]} : vector<4x768xf32> to vector<4x512xf32>
    %c104 = arith.constant 104 : index
    %c0_34 = arith.constant 0 : index
    %65 = vector.load %arg9[%c104, %c0_34] : memref<112x512xf32, #tpu.memory_space<vmem>>, vector<4x512xf32>
    tpu.vector_store %arg9[%c104, %c0_34], %64 {strides = array<i32>} : memref<112x512xf32, #tpu.memory_space<vmem>>, vector<4x512xf32>,
    %cst_35 = arith.constant 0.000000e+00 : f32
    %66 = vector.broadcast %cst_35 : f32 to vector<4x512xf32>
    %c108 = arith.constant 108 : index
    %c0_36 = arith.constant 0 : index
    %67 = vector.load %arg9[%c108, %c0_36] : memref<112x512xf32, #tpu.memory_space<vmem>>, vector<4x512xf32>
    tpu.vector_store %arg9[%c108, %c0_36], %66 {strides = array<i32>} : memref<112x512xf32, #tpu.memory_space<vmem>>, vector<4x512xf32>,
    %c0_37 = arith.constant 0 : index
    %c0_38 = arith.constant 0 : index
    %68 = vector.load %arg4[%c0_37, %c0_38] : memref<8x112xf32, #tpu.memory_space<vmem>>, vector<8x112xf32>
    %c0_39 = arith.constant 0 : index
    %c0_40 = arith.constant 0 : index
    %69 = vector.load %arg9[%c0_39, %c0_40] : memref<112x512xf32, #tpu.memory_space<vmem>>, vector<112x512xf32>
    %cst_41 = arith.constant dense<0.000000e+00> : vector<8x512xf32>
    %70 = tpu.matmul %68, %69, %cst_41 {dimension_numbers = #tpu.dot_dimension_numbers<[1], [0], [0], [1], [0, 0, 1, 1], [], []>, precision = #tpu.contract_precision<fp32>} : vector<8x112xf32>, vector<112x512xf32>, vector<8x512xf32> -> vector<8x512xf32>
    %c0_42 = arith.constant 0 : index
    %c0_43 = arith.constant 0 : index
    %71 = vector.load %arg5[%c0_42, %c0_43] : memref<8x1xf32, #tpu.memory_space<vmem>>, vector<8x1xf32>
    %72 = vector.broadcast %71 : vector<8x1xf32> to vector<8x512xf32>
    %73 = arith.addf %70, %72 : vector<8x512xf32>
    %cst_44 = arith.constant 0.000000e+00 : f32
    %74 = vector.broadcast %cst_44 : f32 to vector<8x512xf32>
    %75 = arith.cmpf oge, %73, %74 : vector<8x512xf32>
    %cst_45 = arith.constant 2.000000e-01 : f32
    %76 = vector.broadcast %cst_45 : f32 to vector<8x512xf32>
    %77 = arith.mulf %76, %73 : vector<8x512xf32>
    %78 = arith.select %75, %73, %77 : vector<8x512xi1>, vector<8x512xf32>
    %c0_46 = arith.constant 0 : index
    %c0_47 = arith.constant 0 : index
    %79 = vector.load %arg6[%c0_46, %c0_47] : memref<4x8xf32, #tpu.memory_space<vmem>>, vector<4x8xf32>
    %cst_48 = arith.constant dense<0.000000e+00> : vector<4x512xf32>
    %80 = tpu.matmul %79, %78, %cst_48 {dimension_numbers = #tpu.dot_dimension_numbers<[1], [0], [0], [1], [0, 0, 1, 1], [], []>, precision = #tpu.contract_precision<fp32>} : vector<4x8xf32>, vector<8x512xf32>, vector<4x512xf32> -> vector<4x512xf32>
    %c0_49 = arith.constant 0 : index
    %c0_50 = arith.constant 0 : index
    %81 = vector.load %arg7[%c0_49, %c0_50] : memref<4x1xf32, #tpu.memory_space<vmem>>, vector<4x1xf32>
    %82 = vector.broadcast %81 : vector<4x1xf32> to vector<4x512xf32>
    %83 = arith.addf %80, %82 : vector<4x512xf32>
    %84 = arith.addf %83, %0 : vector<4x512xf32>
    %c0_51 = arith.constant 0 : index
    %c0_52 = arith.constant 0 : index
    %85 = vector.load %arg8[%c0_51, %c0_52] : memref<4x512xf32, #tpu.memory_space<vmem>>, vector<4x512xf32>
    tpu.vector_store %arg8[%c0_51, %c0_52], %84 {strides = array<i32>} : memref<4x512xf32, #tpu.memory_space<vmem>>, vector<4x512xf32>,
    return
  }
  func.func @transform_0(%arg0: i32) -> (i32, i32) {
    %c4_i32 = arith.constant 4 : i32
    %0 = arith.muli %arg0, %c4_i32 : i32
    %c1_i32 = arith.constant 1 : i32
    %1 = arith.subi %0, %c1_i32 : i32
    %c0_i32 = arith.constant 0 : i32
    %2 = arith.maxsi %1, %c0_i32 : i32
    %c0_i32_0 = arith.constant 0 : i32
    %c0_i32_1 = arith.constant 0 : i32
    return %c0_i32_0, %2 : i32, i32
  }
  func.func @transform_1(%arg0: i32) -> (i32, i32) {
    %c0_i32 = arith.constant 0 : i32
    %c0_i32_0 = arith.constant 0 : i32
    return %c0_i32, %arg0 : i32, i32
  }
  func.func @transform_2(%arg0: i32) -> (i32, i32) {
    %c1_i32 = arith.constant 1 : i32
    %0 = arith.addi %arg0, %c1_i32 : i32
    %c4_i32 = arith.constant 4 : i32
    %1 = arith.muli %0, %c4_i32 : i32
    %c0_i32 = arith.constant 0 : i32
    %c0_i32_0 = arith.constant 0 : i32
    return %c0_i32, %1 : i32, i32
  }
  func.func @transform_3(%arg0: i32) -> (i32, i32) {
    %c0_i32 = arith.constant 0 : i32
    %c0_i32_0 = arith.constant 0 : i32
    %c0_i32_1 = arith.constant 0 : i32
    return %c0_i32, %c0_i32_0 : i32, i32
  }
  func.func @transform_4(%arg0: i32) -> (i32, i32) {
    %c0_i32 = arith.constant 0 : i32
    %c0_i32_0 = arith.constant 0 : i32
    %c0_i32_1 = arith.constant 0 : i32
    return %c0_i32, %c0_i32_0 : i32, i32
  }
  func.func @transform_5(%arg0: i32) -> (i32, i32) {
    %c0_i32 = arith.constant 0 : i32
    %c0_i32_0 = arith.constant 0 : i32
    %c0_i32_1 = arith.constant 0 : i32
    return %c0_i32, %c0_i32_0 : i32, i32
  }
  func.func @transform_6(%arg0: i32) -> (i32, i32) {
    %c0_i32 = arith.constant 0 : i32
    %c0_i32_0 = arith.constant 0 : i32
    %c0_i32_1 = arith.constant 0 : i32
    return %c0_i32, %c0_i32_0 : i32, i32
  }
  func.func @transform_7(%arg0: i32) -> (i32, i32) {
    %c0_i32 = arith.constant 0 : i32
    %c0_i32_0 = arith.constant 0 : i32
    return %c0_i32, %arg0 : i32, i32
  }
}

</mosaic_0001>

<llo_original>
// kernel: tpu_custom_call.1
$region0: #{tpu_custom_call.1}
  #allocation0 [shape = 'u32[]', space=smem, size = 0x4, offset = 0x4, fixed_abs, tag = 'smem constant byte address 0x4 - core index']
  #allocation1 [shape = 'u32[72,128]{1,0:T(1,128)}', space=vmem, size = 0x9000, scoped, tag = 'internal scratch']
  #allocation2 [shape = 'f32[112,512]{1,0:T(8,128)}', space=vmem, size = 0x38000, scoped, tag = 'scratch operand']
  %s0 = inlined_call_operand.hbm [shape: f32[4,2176], index: 0, kind: input, shape index: {}]
  %s1 = inlined_call_operand.hbm [shape: f32[4,2176], index: 1, kind: input, shape index: {}]
  %s2 = inlined_call_operand.hbm [shape: f32[4,2176], index: 2, kind: input, shape index: {}]
  %s3 = inlined_call_operand.vmem [shape: f32[8,112], index: 3, kind: input, shape index: {}]
  %s4 = inlined_call_operand.vmem [shape: f32[8,1], index: 4, kind: input, shape index: {}]
  %s5 = inlined_call_operand.vmem [shape: f32[4,8], index: 5, kind: input, shape index: {}]
  %s6 = inlined_call_operand.vmem [shape: f32[4,1], index: 6, kind: input, shape index: {}]
  %s7 = inlined_call_operand.hbm [shape: f32[4,2048], index: 7, kind: output, shape index: {}]
  %s8 = sld [smem:[#allocation0]]
  $region73: #{tpu_custom_call.1} parent=0
    _
  %s10 = ssub.s32 1, %s8
  %s11 = scalar_select 0, %s10, %s8
  $region1: #{tpu_custom_call.1} parent=0
    #allocation3 [shape = 'u8[4096]{0}', space=vmem, size = 0x1000, scoped, tag = 'input window, operand 0']
    #allocation4 [shape = 's32[2]{0}', space=sflag, size = 0x8, scoped, tag = 'scoped memory for tpu_custom_call.1']
    #allocation5 [shape = 's32[2]{0}', space=sflag, size = 0x8, scoped, tag = 'scoped memory for tpu_custom_call.1']
    #allocation6 [shape = 'u8[16384]{0}', space=vmem, size = 0x4000, scoped, tag = 'input window, operand 1']
    #allocation7 [shape = 's32[2]{0}', space=sflag, size = 0x8, scoped, tag = 'scoped memory for tpu_custom_call.1']
    #allocation8 [shape = 'u8[4096]{0}', space=vmem, size = 0x1000, scoped, tag = 'input window, operand 2']
    #allocation9 [shape = 'u8[16384]{0}', space=vmem, size = 0x4000, scoped, tag = 'output window, operand 0']
    %12 = vsyncpa [#allocation4], 0
    %s13 = scalar_lea.sflag [#allocation4], 1
    %14 = vsyncpa %s13, 0
    %15 = vsyncpa [#allocation7], 0
    %s16 = scalar_lea.sflag [#allocation7], 1
    %17 = vsyncpa %s16, 0
    %18 = vsyncpa [#allocation5], 0
    %s19 = scalar_lea.sflag [#allocation5], 1
    %20 = vsyncpa %s19, 0
    loop: start=0, step=1, limit=6
    $region2: #{tpu_custom_call.1} parent=1 // loop_pre_header
      _
    $region3: #{tpu_custom_call.1} parent=1 // loop_header
      %s22 = sphi 0, %s26
      %p23 = scmp.ge.s32.totalorder %s22, 6
      %s40 = sphi 0, %s42
      %s43 = sphi 0, %s40
      %s44 = sphi 0, %s43
      %s60 = sphi 0, %s44
      %s66 = sphi 0, %s68
      %s69 = sphi 0, %s66
      %s70 = sphi 0, %s69
      %s86 = sphi 0, %s70
      %s96 = sphi 0, %s98
      %s99 = sphi 0, %s96
      %s100 = sphi 0, %s99
      %s116 = sphi 0, %s100
      %s120 = sphi 0, %s120
      %s122 = sphi 0, %s120
      %s123 = sphi 0, %s122
      %s137 = sphi 0, %s123
      %s141 = sphi 0, %s141
      %s143 = sphi 0, %s141
      %s144 = sphi 0, %s143
      %s158 = sphi 0, %s144
      %s162 = sphi 0, %s162
      %s164 = sphi 0, %s162
      %s165 = sphi 0, %s164
      %s179 = sphi 0, %s165
      %s183 = sphi 0, %s183
      %s185 = sphi 0, %s183
      %s186 = sphi 0, %s185
      %s200 = sphi 0, %s186
      %s206 = sphi 0, %s208
      %s209 = sphi 0, %s206
      %s210 = sphi 0, %s209
      %s226 = sphi 0, %s210
    $region4: #{tpu_custom_call.1} parent=1 // loop_header_branch
      %25 = sbr.rel (%p23) target = $region8
    $region5: #{tpu_custom_call.1} parent=1 // loop_body
      %s27 = ssub.s32 %s22, 1
      %s28 = ssub.s32 %s22, 2
      %s29 = sadd.s32 %s22, 1
      %s30 = smul.u32 %s22, 4
      %s31 = ssub.s32 %s30, 1
      %p32 = scmp.gt.s32.totalorder %s31, 0
      %s33 = scalar_select %p32, %s31, 0
      %s34 = smul.u32 %s29, 4
      %s35 = ssub.s32 %s34, 1
      %p36 = scmp.gt.s32.totalorder %s35, 0
      %s37 = scalar_select %p36, %s35, 0
      %s38 = ssub.s32 %s33, %s37
      %p39 = scmp.eq.s32.totalorder %s38, 0
      %s41 = sadd.s32 %s40, 1
      %s42 = scalar_select %p39, %s40, %s41
      %p45 = pneg %p39
      %p46 = scmp.eq.s32.totalorder %s22, 3
      %p47 = por %p45, %p46
      %p48 = scmp.ne.s32.totalorder %s40, %s43
      %p49 = scmp.eq.s32.totalorder %s22, 0
      %p50 = por %p48, %p49
      %p51 = scmp.ne.s32.totalorder %s40, %s43
      %p52 = scmp.eq.s32.totalorder %s27, 3
      %p53 = por %p51, %p52
      %p54 = scmp.ne.s32.totalorder %s43, %s44
      %p55 = scmp.eq.s32.totalorder %s27, 0
      %p56 = por %p54, %p55
      %p57 = scmp.ne.s32.totalorder %s43, %s44
      %p58 = scmp.eq.s32.totalorder %s28, 3
      %p59 = por %p57, %p58
      %p61 = scmp.ne.s32.totalorder %s44, %s60
      %p62 = scmp.eq.s32.totalorder %s28, 0
      %p63 = por %p61, %p62
      %s64 = ssub.s32 %s22, %s29
      %p65 = scmp.eq.s32.totalorder %s64, 0
      %s67 = sadd.s32 %s66, 1
      %s68 = scalar_select %p65, %s66, %s67
      %p71 = pneg %p65
      %p72 = scmp.eq.s32.totalorder %s22, 3
      %p73 = por %p71, %p72
      %p74 = scmp.ne.s32.totalorder %s66, %s69
      %p75 = scmp.eq.s32.totalorder %s22, 0
      %p76 = por %p74, %p75
      %p77 = scmp.ne.s32.totalorder %s66, %s69
      %p78 = scmp.eq.s32.totalorder %s27, 3
      %p79 = por %p77, %p78
      %p80 = scmp.ne.s32.totalorder %s69, %s70
      %p81 = scmp.eq.s32.totalorder %s27, 0
      %p82 = por %p80, %p81
      %p83 = scmp.ne.s32.totalorder %s69, %s70
      %p84 = scmp.eq.s32.totalorder %s28, 3
      %p85 = por %p83, %p84
      %p87 = scmp.ne.s32.totalorder %s70, %s86
      %p88 = scmp.eq.s32.totalorder %s28, 0
      %p89 = por %p87, %p88
      %s90 = sadd.s32 %s22, 1
      %s91 = smul.u32 %s90, 4
      %s92 = sadd.s32 %s29, 1
      %s93 = smul.u32 %s92, 4
      %s94 = ssub.s32 %s91, %s93
      %p95 = scmp.eq.s32.totalorder %s94, 0
      %s97 = sadd.s32 %s96, 1
      %s98 = scalar_select %p95, %s96, %s97
      %p101 = pneg %p95
      %p102 = scmp.eq.s32.totalorder %s22, 3
      %p103 = por %p101, %p102
      %p104 = scmp.ne.s32.totalorder %s96, %s99
      %p105 = scmp.eq.s32.totalorder %s22, 0
      %p106 = por %p104, %p105
      %p107 = scmp.ne.s32.totalorder %s96, %s99
      %p108 = scmp.eq.s32.totalorder %s27, 3
      %p109 = por %p107, %p108
      %p110 = scmp.ne.s32.totalorder %s99, %s100
      %p111 = scmp.eq.s32.totalorder %s27, 0
      %p112 = por %p110, %p111
      %p113 = scmp.ne.s32.totalorder %s99, %s100
      %p114 = scmp.eq.s32.totalorder %s28, 3
      %p115 = por %p113, %p114
      %p117 = scmp.ne.s32.totalorder %s100, %s116
      %p118 = scmp.eq.s32.totalorder %s28, 0
      %p119 = por %p117, %p118
      %s121 = sadd.s32 %s120, 1
      %p124 = scmp.eq.s32.totalorder %s22, 3
      %p125 = scmp.ne.s32.totalorder %s120, %s122
      %p126 = scmp.eq.s32.totalorder %s22, 0
      %p127 = por %p125, %p126
      %p128 = scmp.ne.s32.totalorder %s120, %s122
      %p129 = scmp.eq.s32.totalorder %s27, 3
      %p130 = por %p128, %p129
      %p131 = scmp.ne.s32.totalorder %s122, %s123
      %p132 = scmp.eq.s32.totalorder %s27, 0
      %p133 = por %p131, %p132
      %p134 = scmp.ne.s32.totalorder %s122, %s123
      %p135 = scmp.eq.s32.totalorder %s28, 3
      %p136 = por %p134, %p135
      %p138 = scmp.ne.s32.totalorder %s123, %s137
      %p139 = scmp.eq.s32.totalorder %s28, 0
      %p140 = por %p138, %p139
      %s142 = sadd.s32 %s141, 1
      %p145 = scmp.eq.s32.totalorder %s22, 3
      %p146 = scmp.ne.s32.totalorder %s141, %s143
      %p147 = scmp.eq.s32.totalorder %s22, 0
      %p148 = por %p146, %p147
      %p149 = scmp.ne.s32.totalorder %s141, %s143
      %p150 = scmp.eq.s32.totalorder %s27, 3
      %p151 = por %p149, %p150
      %p152 = scmp.ne.s32.totalorder %s143, %s144
      %p153 = scmp.eq.s32.totalorder %s27, 0
      %p154 = por %p152, %p153
      %p155 = scmp.ne.s32.totalorder %s143, %s144
      %p156 = scmp.eq.s32.totalorder %s28, 3
      %p157 = por %p155, %p156
      %p159 = scmp.ne.s32.totalorder %s144, %s158
      %p160 = scmp.eq.s32.totalorder %s28, 0
      %p161 = por %p159, %p160
      %s163 = sadd.s32 %s162, 1
      %p166 = scmp.eq.s32.totalorder %s22, 3
      %p167 = scmp.ne.s32.totalorder %s162, %s164
      %p168 = scmp.eq.s32.totalorder %s22, 0
      %p169 = por %p167, %p168
      %p170 = scmp.ne.s32.totalorder %s162, %s164
      %p171 = scmp.eq.s32.totalorder %s27, 3
      %p172 = por %p170, %p171
      %p173 = scmp.ne.s32.totalorder %s164, %s165
      %p174 = scmp.eq.s32.totalorder %s27, 0
      %p175 = por %p173, %p174
      %p176 = scmp.ne.s32.totalorder %s164, %s165
      %p177 = scmp.eq.s32.totalorder %s28, 3
      %p178 = por %p176, %p177
      %p180 = scmp.ne.s32.totalorder %s165, %s179
      %p181 = scmp.eq.s32.totalorder %s28, 0
      %p182 = por %p180, %p181
      %s184 = sadd.s32 %s183, 1
      %p187 = scmp.eq.s32.totalorder %s22, 3
      %p188 = scmp.ne.s32.totalorder %s183, %s185
      %p189 = scmp.eq.s32.totalorder %s22, 0
      %p190 = por %p188, %p189
      %p191 = scmp.ne.s32.totalorder %s183, %s185
      %p192 = scmp.eq.s32.totalorder %s27, 3
      %p193 = por %p191, %p192
      %p194 = scmp.ne.s32.totalorder %s185, %s186
      %p195 = scmp.eq.s32.totalorder %s27, 0
      %p196 = por %p194, %p195
      %p197 = scmp.ne.s32.totalorder %s185, %s186
      %p198 = scmp.eq.s32.totalorder %s28, 3
      %p199 = por %p197, %p198
      %p201 = scmp.ne.s32.totalorder %s186, %s200
      %p202 = scmp.eq.s32.totalorder %s28, 0
      %p203 = por %p201, %p202
      %s204 = ssub.s32 %s22, %s29
      %p205 = scmp.eq.s32.totalorder %s204, 0
      %s207 = sadd.s32 %s206, 1
      %s208 = scalar_select %p205, %s206, %s207
      %p211 = pneg %p205
      %p212 = scmp.eq.s32.totalorder %s22, 3
      %p213 = por %p211, %p212
      %p214 = scmp.ne.s32.totalorder %s206, %s209
      %p215 = scmp.eq.s32.totalorder %s22, 0
      %p216 = por %p214, %p215
      %p217 = scmp.ne.s32.totalorder %s206, %s209
      %p218 = scmp.eq.s32.totalorder %s27, 3
      %p219 = por %p217, %p218
      %p220 = scmp.ne.s32.totalorder %s209, %s210
      %p221 = scmp.eq.s32.totalorder %s27, 0
      %p222 = por %p220, %p221
      %p223 = scmp.ne.s32.totalorder %s209, %s210
      %p224 = scmp.eq.s32.totalorder %s28, 3
      %p225 = por %p223, %p224
      %p227 = scmp.ne.s32.totalorder %s210, %s226
      %p228 = scmp.eq.s32.totalorder %s28, 0
      %p229 = por %p227, %p228
      %p230 = scmp.le.s32.totalorder 1, %s22
      %p231 = scmp.lt.s32.totalorder %s22, 5
      %p232 = pnand %p230, %p231
      %p233 = pneg %p232
      // Predicated region
      $region9: #{tpu_custom_call.1} parent=5 // pred_check
        _
      $region10: #{tpu_custom_call.1} parent=5 // pred_check_branch
        %235 = sbr.rel (%p232) target = $region12
      $region11: #{tpu_custom_call.1} parent=5 // pred_region
        %s236 = ssub.s32 %s22, 1
        // Predicated region
        $region13: #{tpu_custom_call.1} parent=11 // pred_check
          %p237 = pneg %p133
        $region14: #{tpu_custom_call.1} parent=11 // pred_check_branch
          %239 = sbr.rel (%p237) target = $region16
        $region15: #{tpu_custom_call.1} parent=11 // pred_region
          _
        $region16: #{tpu_custom_call.1} parent=11 // pred_fallthru
          _
        // Predicated region
        $region17: #{tpu_custom_call.1} parent=11 // pred_check
          %p240 = pneg %p154
        $region18: #{tpu_custom_call.1} parent=11 // pred_check_branch
          %242 = sbr.rel (%p240) target = $region20
        $region19: #{tpu_custom_call.1} parent=11 // pred_region
          _
        $region20: #{tpu_custom_call.1} parent=11 // pred_fallthru
          _
        // Predicated region
        $region21: #{tpu_custom_call.1} parent=11 // pred_check
          %p243 = pneg %p175
        $region22: #{tpu_custom_call.1} parent=11 // pred_check_branch
          %245 = sbr.rel (%p243) target = $region24
        $region23: #{tpu_custom_call.1} parent=11 // pred_region
          _
        $region24: #{tpu_custom_call.1} parent=11 // pred_fallthru
          _
        // Predicated region
        $region25: #{tpu_custom_call.1} parent=11 // pred_check
          %p246 = pneg %p196
        $region26: #{tpu_custom_call.1} parent=11 // pred_check_branch
          %248 = sbr.rel (%p246) target = $region28
        $region27: #{tpu_custom_call.1} parent=11 // pred_region
          _
        $region28: #{tpu_custom_call.1} parent=11 // pred_fallthru
          _
      $region12: #{tpu_custom_call.1} parent=5 // pred_fallthru
        _
      %p249 = scmp.lt.s32.totalorder %s22, 4
      // Predicated region
      $region29: #{tpu_custom_call.1} parent=5 // pred_check
        %p250 = pneg %p249
      $region30: #{tpu_custom_call.1} parent=5 // pred_check_branch
        %252 = sbr.rel (%p250) target = $region32
      $region31: #{tpu_custom_call.1} parent=5 // pred_region
        // Predicated region
        $region33: #{tpu_custom_call.1} parent=31 // pred_check
          %p253 = pneg %p50
        $region34: #{tpu_custom_call.1} parent=31 // pred_check_branch
          %255 = sbr.rel (%p253) target = $region36
        $region35: #{tpu_custom_call.1} parent=31 // pred_region
          %s256 = sand.u32 %s40, 1
          %s257 = scalar_lea.sflag [#allocation4], %s256
          %s258 = sand.u32 %s40, 1
          %s259 = smul.addr %s258, 4
          %s260 = scalar_lea.vmem [#allocation3], %s259
          %s261 = smul.u32 %s22, 4
          %s262 = ssub.s32 %s261, 1
          %p263 = scmp.gt.s32.totalorder %s262, 0
          %s264 = scalar_select %p263, %s262, 0
          %266 = vsyncadd %s257, 0
          %s267 = smul.addr %s264, 4
          %s268 = scalar_lea.hbm %s0, %s267
          %s270 = sshll.u32 %s268, 4
          %s271 = int_to_ptr.hbm [resolvable:$true] %s270
          %s272 = sshll.u32 %s260, 4
          %s273 = int_to_ptr.vmem [resolvable:$true] %s272
          %275 = dma.hbm_to_vmem [thread:$0]  %s271, 64, %s273, %s257
        $region36: #{tpu_custom_call.1} parent=31 // pred_fallthru
          _
        // Predicated region
        $region37: #{tpu_custom_call.1} parent=31 // pred_check
          %p276 = pneg %p76
        $region38: #{tpu_custom_call.1} parent=31 // pred_check_branch
          %278 = sbr.rel (%p276) target = $region40
        $region39: #{tpu_custom_call.1} parent=31 // pred_region
          %s279 = sand.u32 %s22, 1
          %s280 = scalar_lea.sflag [#allocation7], %s279
          %s281 = sand.u32 %s66, 1
          %s282 = smul.addr %s281, 16
          %s283 = scalar_lea.vmem [#allocation6], %s282
          %s284 = smul.u32 4, %s22
          %s285 = ssub.s32 17, %s284
          %p286 = scmp.lt.s32.totalorder %s285, 4
          %s287 = scalar_select %p286, %s285, 4
          %s288 = smul.u32 4, %s287
          %s289 = ssub.s32 16, %s288
          %s290 = sshll.u32 %s289, 4
          %291 = vsyncadd %s280, %s290
          %p292 = scmp.ne.s32.totalorder 0, %s288
          %s293 = smul.addr %s284, 4
          %s294 = scalar_lea.hbm %s1, %s293
          %s295 = smul.u32 %s287, 4
          %s296 = sshll.u32 %s295, 4
          %s297 = sshll.u32 %s294, 4
          %s298 = int_to_ptr.hbm [resolvable:$true] %s297
          %s299 = sshll.u32 %s283, 4
          %s300 = int_to_ptr.vmem [resolvable:$true] %s299
          %302 = dma.hbm_to_vmem [thread:$0]  (%p292), %s298, %s296, %s300, %s280
        $region40: #{tpu_custom_call.1} parent=31 // pred_fallthru
          _
        // Predicated region
        $region41: #{tpu_custom_call.1} parent=31 // pred_check
          %p303 = pneg %p106
        $region42: #{tpu_custom_call.1} parent=31 // pred_check_branch
          %305 = sbr.rel (%p303) target = $region44
        $region43: #{tpu_custom_call.1} parent=31 // pred_region
          %s306 = sand.u32 %s22, 1
          %s307 = scalar_lea.sflag [#allocation7], %s306
          %s308 = sand.u32 %s96, 1
          %s309 = smul.addr %s308, 4
          %s310 = scalar_lea.vmem [#allocation8], %s309
          %s311 = sadd.s32 %s22, 1
          %s312 = smul.u32 %s311, 4
          %314 = vsyncadd %s307, 0
          %s315 = smul.addr %s312, 4
          %s316 = scalar_lea.hbm %s2, %s315
          %s318 = sshll.u32 %s316, 4
          %s319 = int_to_ptr.hbm [resolvable:$true] %s318
          %s320 = sshll.u32 %s310, 4
          %s321 = int_to_ptr.vmem [resolvable:$true] %s320
          %323 = dma.hbm_to_vmem [thread:$0]  %s319, 64, %s321, %s307
        $region44: #{tpu_custom_call.1} parent=31 // pred_fallthru
          _
      $region32: #{tpu_custom_call.1} parent=5 // pred_fallthru
        _
      %p324 = scmp.le.s32.totalorder 1, %s22
      %p325 = scmp.lt.s32.totalorder %s22, 5
      %p326 = pnand %p324, %p325
      %p327 = pneg %p326
      // Predicated region
      $region45: #{tpu_custom_call.1} parent=5 // pred_check
        _
      $region46: #{tpu_custom_call.1} parent=5 // pred_check_branch
        %329 = sbr.rel (%p326) target = $region48
      $region47: #{tpu_custom_call.1} parent=5 // pred_region
        %s330 = ssub.s32 %s22, 1
        %s331 = sand.u32 %s43, 1
        %s332 = scalar_lea.sflag [#allocation4], %s331
        %s333 = sand.u32 %s43, 1
        %s334 = smul.addr %s333, 4
        %s335 = scalar_lea.vmem [#allocation3], %s334
        // Predicated region
        $region49: #{tpu_custom_call.1} parent=47 // pred_check
          %p336 = pneg %p56
        $region50: #{tpu_custom_call.1} parent=47 // pred_check_branch
          %338 = sbr.rel (%p336) target = $region52
        $region51: #{tpu_custom_call.1} parent=47 // pred_region
          %340 = dma.done %s332, 64
        $region52: #{tpu_custom_call.1} parent=47 // pred_fallthru
          _
        %s341 = sand.u32 %s27, 1
        %s342 = scalar_lea.sflag [#allocation7], %s341
        %s343 = sand.u32 %s69, 1
        %s344 = smul.addr %s343, 16
        %s345 = scalar_lea.vmem [#allocation6], %s344
        // Predicated region
        $region53: #{tpu_custom_call.1} parent=47 // pred_check
          %p346 = pneg %p82
        $region54: #{tpu_custom_call.1} parent=47 // pred_check_branch
          %348 = sbr.rel (%p346) target = $region56
        $region55: #{tpu_custom_call.1} parent=47 // pred_region
          %350 = dma.done %s342, 256
        $region56: #{tpu_custom_call.1} parent=47 // pred_fallthru
          _
        %s351 = sand.u32 %s27, 1
        %s352 = scalar_lea.sflag [#allocation7], %s351
        %s353 = sand.u32 %s99, 1
        %s354 = smul.addr %s353, 4
        %s355 = scalar_lea.vmem [#allocation8], %s354
        // Predicated region
        $region57: #{tpu_custom_call.1} parent=47 // pred_check
          %p356 = pneg %p112
        $region58: #{tpu_custom_call.1} parent=47 // pred_check_branch
          %358 = sbr.rel (%p356) target = $region60
        $region59: #{tpu_custom_call.1} parent=47 // pred_region
          %360 = dma.done %s352, 64
        $region60: #{tpu_custom_call.1} parent=47 // pred_fallthru
          _
        %s361 = sand.u32 %s43, 1
        %s362 = scalar_lea.sflag [#allocation4], %s361
        %s363 = sand.u32 %s43, 1
        %s364 = smul.addr %s363, 4
        %s365 = scalar_lea.vmem [#allocation3], %s364
        %p366 = pneg %p56
        %p367 = pneg %p53
        %s368 = sand.u32 %s27, 1
        %s369 = scalar_lea.sflag [#allocation7], %s368
        %s370 = sand.u32 %s69, 1
        %s371 = smul.addr %s370, 16
        %s372 = scalar_lea.vmem [#allocation6], %s371
        %p373 = pneg %p82
        %p374 = pneg %p79
        %s375 = sand.u32 %s27, 1
        %s376 = scalar_lea.sflag [#allocation7], %s375
        %s377 = sand.u32 %s99, 1
        %s378 = smul.addr %s377, 4
        %s379 = scalar_lea.vmem [#allocation8], %s378
        %p380 = pneg %p112
        %p381 = pneg %p109
        %p382 = pneg %p133
        %p383 = pneg %p130
        %p384 = pneg %p154
        %p385 = pneg %p151
        %p386 = pneg %p175
        %p387 = pneg %p172
        %p388 = pneg %p196
        %p389 = pneg %p193
        %p390 = pneg %p222
        %p391 = pneg %p219
        %s392 = sand.u32 %s209, 1
        %s393 = scalar_lea.sflag [#allocation5], %s392
        %s394 = sand.u32 %s209, 1
        %s395 = smul.addr %s394, 16
        %s396 = scalar_lea.vmem [#allocation9], %s395
        %s397 = smul.u32 %s27, 4
        %s398 = ssub.s32 %s397, 1
        %p399 = scmp.gt.s32.totalorder %s398, 0
        %s400 = scalar_select %p399, %s398, 0
        %s401 = smul.u32 4, %s27
        %s402 = ssub.s32 17, %s401
        %p403 = scmp.lt.s32.totalorder %s402, 4
        %s404 = scalar_select %p403, %s402, 4
        %s405 = smul.u32 4, %s404
        %s406 = sadd.s32 %s27, 1
        %s407 = smul.u32 %s406, 4
        %s408 = smul.u32 4, %s27
        %v409 = vld [vmem:[%s345] sm:$0xff]
        %v410 = vld [vmem:[%s345 + $0x8] sm:$0xff]
        %v411 = vld [vmem:[%s335] sm:$0xf]
        %p412 = scmp.eq.s32.totalorder %s27, 0
        %s413 = scalar_select %p412, 1, 0
        %v414 = vstv %s413
        %vm415 = vcmp.eq.s32.totalorder %v414, 1
        %v416 = vsel %vm415, 0.0, %v411
        %v417 = vld [vmem:[%s355] sm:$0xf]
        %420 = vst [vmem:[#allocation1] ss:$2 sm:$0xff] %v409
        %s421 = scalar_lea.vmem [#allocation1], 16
        %422 = vst [vmem:[%s421] ss:$2 sm:$0xff] %v410
        %v423 = vld.sshfl [vmem:[#allocation1] sm:$0xff pattern:$0x75316420]
        %v424 = vld.sshfl [vmem:[#allocation1 + $0x8] sm:$0xff pattern:$0x75316420]
        %v425 = vld.sshfl [vmem:[#allocation1 + $0x10] sm:$0xff pattern:$0x75316420]
        %v426 = vld.sshfl [vmem:[#allocation1 + $0x18] sm:$0xff pattern:$0x75316420]
        %vm431 = vcmp.ge.f32.partialorder %v416, 0.0
        %vm432 = vcmp.ge.f32.partialorder %v423, 0.0
        %vm433 = vcmp.ge.f32.partialorder %v424, 0.0
        %vm434 = vcmp.ge.f32.partialorder %v425, 0.0
        %vm435 = vcmp.ge.f32.partialorder %v426, 0.0
        %vm436 = vcmp.ge.f32.partialorder %v417, 0.0
        %v437 = vmul.f32 %v416, 0.2
        %v438 = vmul.f32 %v423, 0.2
        %v439 = vmul.f32 %v424, 0.2
        %v440 = vmul.f32 %v425, 0.2
        %v441 = vmul.f32 %v426, 0.2
        %v442 = vmul.f32 %v417, 0.2
        %v443 = vsel %vm431, %v416, %v437
        %v444 = vsel %vm432, %v423, %v438
        %v445 = vsel %vm433, %v424, %v439
        %v446 = vsel %vm434, %v425, %v440
        %v447 = vsel %vm435, %v426, %v441
        %v448 = vsel %vm436, %v417, %v442
        %454 = vrot.lane.b32.xlu0 %v443, 111
        %v455 = vpop.permute.xlu0 %454
        %456 = vrot.lane.b32.xlu0 %v444, 111
        %v457 = vpop.permute.xlu0 %456
        %458 = vrot.lane.b32.xlu0 %v445, 111
        %v459 = vpop.permute.xlu0 %458
        %460 = vrot.lane.b32.xlu0 %v446, 111
        %v461 = vpop.permute.xlu0 %460
        %462 = vrot.lane.b32.xlu0 %v447, 111
        %v463 = vpop.permute.xlu0 %462
        %vm464 = vcmask 908288
        %v465 = vsel %vm464, %v455, %v457
        %v466 = vsel %vm464, %v457, %v459
        %v467 = vsel %vm464, %v459, %v461
        %v468 = vsel %vm464, %v461, %v463
        %473 = vst [vmem:[#allocation2] sm:$0xf] %v465
        %474 = vst [vmem:[#allocation2 + $0x8] sm:$0xf] %v466
        %475 = vst [vmem:[#allocation2 + $0x10] sm:$0xf] %v467
        %476 = vst [vmem:[#allocation2 + $0x18] sm:$0xf] %v468
        %v477 = vrot.slane %v443, 4
        %v478 = vrot.slane %v444, 4
        %v479 = vrot.slane %v445, 4
        %v480 = vrot.slane %v446, 4
        %v481 = vrot.slane %v447, 4
        %482 = vrot.lane.b32.xlu0 %v477, 110
        %v483 = vpop.permute.xlu0 %482
        %484 = vrot.lane.b32.xlu0 %v478, 110
        %v485 = vpop.permute.xlu0 %484
        %486 = vrot.lane.b32.xlu0 %v479, 110
        %v487 = vpop.permute.xlu0 %486
        %488 = vrot.lane.b32.xlu0 %v480, 110
        %v489 = vpop.permute.xlu0 %488
        %490 = vrot.lane.b32.xlu0 %v481, 110
        %v491 = vpop.permute.xlu0 %490
        %vm492 = vcmask 900096
        %v493 = vsel %vm492, %v483, %v485
        %v494 = vsel %vm492, %v485, %v487
        %v495 = vsel %vm492, %v487, %v489
        %v496 = vsel %vm492, %v489, %v491
        %501 = vst [vmem:[#allocation2] sm:$0xf0] %v493
        %502 = vst [vmem:[#allocation2 + $0x8] sm:$0xf0] %v494
        %503 = vst [vmem:[#allocation2 + $0x10] sm:$0xf0] %v495
        %504 = vst [vmem:[#allocation2 + $0x18] sm:$0xf0] %v496
        %505 = vrot.lane.b32.xlu0 %v443, 109
        %v506 = vpop.permute.xlu0 %505
        %507 = vrot.lane.b32.xlu0 %v444, 109
        %v508 = vpop.permute.xlu0 %507
        %509 = vrot.lane.b32.xlu0 %v445, 109
        %v510 = vpop.permute.xlu0 %509
        %511 = vrot.lane.b32.xlu0 %v446, 109
        %v512 = vpop.permute.xlu0 %511
        %513 = vrot.lane.b32.xlu0 %v447, 109
        %v514 = vpop.permute.xlu0 %513
        %vm515 = vcmask 891904
        %v516 = vsel %vm515, %v506, %v508
        %v517 = vsel %vm515, %v508, %v510
        %v518 = vsel %vm515, %v510, %v512
        %v519 = vsel %vm515, %v512, %v514
        %524 = vst [vmem:[#allocation2 + $0x20] sm:$0xf] %v516
        %525 = vst [vmem:[#allocation2 + $0x28] sm:$0xf] %v517
        %526 = vst [vmem:[#allocation2 + $0x30] sm:$0xf] %v518
        %527 = vst [vmem:[#allocation2 + $0x38] sm:$0xf] %v519
        %528 = vrot.lane.b32.xlu0 %v477, 101
        %v529 = vpop.permute.xlu0 %528
        %530 = vrot.lane.b32.xlu0 %v478, 101
        %v531 = vpop.permute.xlu0 %530
        %532 = vrot.lane.b32.xlu0 %v479, 101
        %v533 = vpop.permute.xlu0 %532
        %534 = vrot.lane.b32.xlu0 %v480, 101
        %v535 = vpop.permute.xlu0 %534
        %536 = vrot.lane.b32.xlu0 %v481, 101
        %v537 = vpop.permute.xlu0 %536
        %vm538 = vcmask 826368
        %v539 = vsel %vm538, %v529, %v531
        %v540 = vsel %vm538, %v531, %v533
        %v541 = vsel %vm538, %v533, %v535
        %v542 = vsel %vm538, %v535, %v537
        %547 = vst [vmem:[#allocation2 + $0x20] sm:$0xf0] %v539
        %548 = vst [vmem:[#allocation2 + $0x28] sm:$0xf0] %v540
        %549 = vst [vmem:[#allocation2 + $0x30] sm:$0xf0] %v541
        %550 = vst [vmem:[#allocation2 + $0x38] sm:$0xf0] %v542
        %551 = vrot.lane.b32.xlu0 %v443, 100
        %v552 = vpop.permute.xlu0 %551
        %553 = vrot.lane.b32.xlu0 %v444, 100
        %v554 = vpop.permute.xlu0 %553
        %555 = vrot.lane.b32.xlu0 %v445, 100
        %v556 = vpop.permute.xlu0 %555
        %557 = vrot.lane.b32.xlu0 %v446, 100
        %v558 = vpop.permute.xlu0 %557
        %559 = vrot.lane.b32.xlu0 %v447, 100
        %v560 = vpop.permute.xlu0 %559
        %vm561 = vcmask 818176
        %v562 = vsel %vm561, %v552, %v554
        %v563 = vsel %vm561, %v554, %v556
        %v564 = vsel %vm561, %v556, %v558
        %v565 = vsel %vm561, %v558, %v560
        %570 = vst [vmem:[#allocation2 + $0x40] sm:$0xf] %v562
        %571 = vst [vmem:[#allocation2 + $0x48] sm:$0xf] %v563
        %572 = vst [vmem:[#allocation2 + $0x50] sm:$0xf] %v564
        %573 = vst [vmem:[#allocation2 + $0x58] sm:$0xf] %v565
        %574 = vrot.lane.b32.xlu0 %v477, 99
        %v575 = vpop.permute.xlu0 %574
        %576 = vrot.lane.b32.xlu0 %v478, 99
        %v577 = vpop.permute.xlu0 %576
        %578 = vrot.lane.b32.xlu0 %v479, 99
        %v579 = vpop.permute.xlu0 %578
        %580 = vrot.lane.b32.xlu0 %v480, 99
        %v581 = vpop.permute.xlu0 %580
        %582 = vrot.lane.b32.xlu0 %v481, 99
        %v583 = vpop.permute.xlu0 %582
        %vm584 = vcmask 809984
        %v585 = vsel %vm584, %v575, %v577
        %v586 = vsel %vm584, %v577, %v579
        %v587 = vsel %vm584, %v579, %v581
        %v588 = vsel %vm584, %v581, %v583
        %593 = vst [vmem:[#allocation2 + $0x40] sm:$0xf0] %v585
        %594 = vst [vmem:[#allocation2 + $0x48] sm:$0xf0] %v586
        %595 = vst [vmem:[#allocation2 + $0x50] sm:$0xf0] %v587
        %596 = vst [vmem:[#allocation2 + $0x58] sm:$0xf0] %v588
        %597 = vrot.lane.b32.xlu0 %v443, 91
        %v598 = vpop.permute.xlu0 %597
        %599 = vrot.lane.b32.xlu0 %v444, 91
        %v600 = vpop.permute.xlu0 %599
        %601 = vrot.lane.b32.xlu0 %v445, 91
        %v602 = vpop.permute.xlu0 %601
        %603 = vrot.lane.b32.xlu0 %v446, 91
        %v604 = vpop.permute.xlu0 %603
        %605 = vrot.lane.b32.xlu0 %v447, 91
        %v606 = vpop.permute.xlu0 %605
        %vm607 = vcmask 744448
        %v608 = vsel %vm607, %v598, %v600
        %v609 = vsel %vm607, %v600, %v602
        %v610 = vsel %vm607, %v602, %v604
        %v611 = vsel %vm607, %v604, %v606
        %616 = vst [vmem:[#allocation2 + $0x60] sm:$0xf] %v608
        %617 = vst [vmem:[#allocation2 + $0x68] sm:$0xf] %v609
        %618 = vst [vmem:[#allocation2 + $0x70] sm:$0xf] %v610
        %619 = vst [vmem:[#allocation2 + $0x78] sm:$0xf] %v611
        %620 = vrot.lane.b32.xlu0 %v477, 90
        %v621 = vpop.permute.xlu0 %620
        %622 = vrot.lane.b32.xlu0 %v478, 90
        %v623 = vpop.permute.xlu0 %622
        %624 = vrot.lane.b32.xlu0 %v479, 90
        %v625 = vpop.permute.xlu0 %624
        %626 = vrot.lane.b32.xlu0 %v480, 90
        %v627 = vpop.permute.xlu0 %626
        %628 = vrot.lane.b32.xlu0 %v481, 90
        %v629 = vpop.permute.xlu0 %628
        %vm630 = vcmask 736256
        %v631 = vsel %vm630, %v621, %v623
        %v632 = vsel %vm630, %v623, %v625
        %v633 = vsel %vm630, %v625, %v627
        %v634 = vsel %vm630, %v627, %v629
        %639 = vst [vmem:[#allocation2 + $0x60] sm:$0xf0] %v631
        %640 = vst [vmem:[#allocation2 + $0x68] sm:$0xf0] %v632
        %641 = vst [vmem:[#allocation2 + $0x70] sm:$0xf0] %v633
        %642 = vst [vmem:[#allocation2 + $0x78] sm:$0xf0] %v634
        %643 = vrot.lane.b32.xlu0 %v443, 89
        %v644 = vpop.permute.xlu0 %643
        %645 = vrot.lane.b32.xlu0 %v444, 89
        %v646 = vpop.permute.xlu0 %645
        %647 = vrot.lane.b32.xlu0 %v445, 89
        %v648 = vpop.permute.xlu0 %647
        %649 = vrot.lane.b32.xlu0 %v446, 89
        %v650 = vpop.permute.xlu0 %649
        %651 = vrot.lane.b32.xlu0 %v447, 89
        %v652 = vpop.permute.xlu0 %651
        %vm653 = vcmask 728064
        %v654 = vsel %vm653, %v644, %v646
        %v655 = vsel %vm653, %v646, %v648
        %v656 = vsel %vm653, %v648, %v650
        %v657 = vsel %vm653, %v650, %v652
        %662 = vst [vmem:[#allocation2 + $0x80] sm:$0xf] %v654
        %663 = vst [vmem:[#allocation2 + $0x88] sm:$0xf] %v655
        %664 = vst [vmem:[#allocation2 + $0x90] sm:$0xf] %v656
        %665 = vst [vmem:[#allocation2 + $0x98] sm:$0xf] %v657
        %666 = vrot.lane.b32.xlu0 %v477, 11
        %v667 = vpop.permute.xlu0 %666
        %668 = vrot.lane.b32.xlu0 %v478, 11
        %v669 = vpop.permute.xlu0 %668
        %670 = vrot.lane.b32.xlu0 %v479, 11
        %v671 = vpop.permute.xlu0 %670
        %672 = vrot.lane.b32.xlu0 %v480, 11
        %v673 = vpop.permute.xlu0 %672
        %674 = vrot.lane.b32.xlu0 %v481, 11
        %v675 = vpop.permute.xlu0 %674
        %vm676 = vcmask 89088
        %v677 = vsel %vm676, %v667, %v669
        %v678 = vsel %vm676, %v669, %v671
        %v679 = vsel %vm676, %v671, %v673
        %v680 = vsel %vm676, %v673, %v675
        %685 = vst [vmem:[#allocation2 + $0x80] sm:$0xf0] %v677
        %686 = vst [vmem:[#allocation2 + $0x88] sm:$0xf0] %v678
        %687 = vst [vmem:[#allocation2 + $0x90] sm:$0xf0] %v679
        %688 = vst [vmem:[#allocation2 + $0x98] sm:$0xf0] %v680
        %689 = vrot.lane.b32.xlu0 %v443, 10
        %v690 = vpop.permute.xlu0 %689
        %691 = vrot.lane.b32.xlu0 %v444, 10
        %v692 = vpop.permute.xlu0 %691
        %693 = vrot.lane.b32.xlu0 %v445, 10
        %v694 = vpop.permute.xlu0 %693
        %695 = vrot.lane.b32.xlu0 %v446, 10
        %v696 = vpop.permute.xlu0 %695
        %697 = vrot.lane.b32.xlu0 %v447, 10
        %v698 = vpop.permute.xlu0 %697
        %vm699 = vcmask 80896
        %v700 = vsel %vm699, %v690, %v692
        %v701 = vsel %vm699, %v692, %v694
        %v702 = vsel %vm699, %v694, %v696
        %v703 = vsel %vm699, %v696, %v698
        %708 = vst [vmem:[#allocation2 + $0xa0] sm:$0xf] %v700
        %709 = vst [vmem:[#allocation2 + $0xa8] sm:$0xf] %v701
        %710 = vst [vmem:[#allocation2 + $0xb0] sm:$0xf] %v702
        %711 = vst [vmem:[#allocation2 + $0xb8] sm:$0xf] %v703
        %712 = vrot.lane.b32.xlu0 %v477, 9
        %v713 = vpop.permute.xlu0 %712
        %714 = vrot.lane.b32.xlu0 %v478, 9
        %v715 = vpop.permute.xlu0 %714
        %716 = vrot.lane.b32.xlu0 %v479, 9
        %v717 = vpop.permute.xlu0 %716
        %718 = vrot.lane.b32.xlu0 %v480, 9
        %v719 = vpop.permute.xlu0 %718
        %720 = vrot.lane.b32.xlu0 %v481, 9
        %v721 = vpop.permute.xlu0 %720
        %vm722 = vcmask 72704
        %v723 = vsel %vm722, %v713, %v715
        %v724 = vsel %vm722, %v715, %v717
        %v725 = vsel %vm722, %v717, %v719
        %v726 = vsel %vm722, %v719, %v721
        %731 = vst [vmem:[#allocation2 + $0xa0] sm:$0xf0] %v723
        %732 = vst [vmem:[#allocation2 + $0xa8] sm:$0xf0] %v724
        %733 = vst [vmem:[#allocation2 + $0xb0] sm:$0xf0] %v725
        %734 = vst [vmem:[#allocation2 + $0xb8] sm:$0xf0] %v726
        %735 = vrot.lane.b32.xlu0 %v443, 1
        %v736 = vpop.permute.xlu0 %735
        %737 = vrot.lane.b32.xlu0 %v444, 1
        %v738 = vpop.permute.xlu0 %737
        %739 = vrot.lane.b32.xlu0 %v445, 1
        %v740 = vpop.permute.xlu0 %739
        %741 = vrot.lane.b32.xlu0 %v446, 1
        %v742 = vpop.permute.xlu0 %741
        %743 = vrot.lane.b32.xlu0 %v447, 1
        %v744 = vpop.permute.xlu0 %743
        %vm745 = vcmask 7168
        %v746 = vsel %vm745, %v736, %v738
        %v747 = vsel %vm745, %v738, %v740
        %v748 = vsel %vm745, %v740, %v742
        %v749 = vsel %vm745, %v742, %v744
        %754 = vst [vmem:[#allocation2 + $0xc0] sm:$0xf] %v746
        %755 = vst [vmem:[#allocation2 + $0xc8] sm:$0xf] %v747
        %756 = vst [vmem:[#allocation2 + $0xd0] sm:$0xf] %v748
        %757 = vst [vmem:[#allocation2 + $0xd8] sm:$0xf] %v749
        %762 = vst [vmem:[#allocation2 + $0xc0] sm:$0xf0] %v478
        %763 = vst [vmem:[#allocation2 + $0xc8] sm:$0xf0] %v479
        %764 = vst [vmem:[#allocation2 + $0xd0] sm:$0xf0] %v480
        %765 = vst [vmem:[#allocation2 + $0xd8] sm:$0xf0] %v481
        %767 = vrot.lane.b32.xlu0 %v444, 127
        %v768 = vpop.permute.xlu0 %767
        %769 = vrot.lane.b32.xlu0 %v445, 127
        %v770 = vpop.permute.xlu0 %769
        %771 = vrot.lane.b32.xlu0 %v446, 127
        %v772 = vpop.permute.xlu0 %771
        %773 = vrot.lane.b32.xlu0 %v447, 127
        %v774 = vpop.permute.xlu0 %773
        %775 = vrot.lane.b32.xlu0 %v448, 127
        %v776 = vpop.permute.xlu0 %775
        %vm777 = vcmask 1039360
        %v778 = vsel %vm777, %v768, %v770
        %v779 = vsel %vm777, %v770, %v772
        %v780 = vsel %vm777, %v772, %v774
        %v781 = vsel %vm777, %v774, %v776
        %786 = vst [vmem:[#allocation2 + $0xe0] sm:$0xf] %v778
        %787 = vst [vmem:[#allocation2 + $0xe8] sm:$0xf] %v779
        %788 = vst [vmem:[#allocation2 + $0xf0] sm:$0xf] %v780
        %789 = vst [vmem:[#allocation2 + $0xf8] sm:$0xf] %v781
        %v790 = vrot.slane %v448, 4
        %791 = vrot.lane.b32.xlu0 %v478, 119
        %v792 = vpop.permute.xlu0 %791
        %793 = vrot.lane.b32.xlu0 %v479, 119
        %v794 = vpop.permute.xlu0 %793
        %795 = vrot.lane.b32.xlu0 %v480, 119
        %v796 = vpop.permute.xlu0 %795
        %797 = vrot.lane.b32.xlu0 %v481, 119
        %v798 = vpop.permute.xlu0 %797
        %799 = vrot.lane.b32.xlu0 %v790, 119
        %v800 = vpop.permute.xlu0 %799
        %vm801 = vcmask 973824
        %v802 = vsel %vm801, %v792, %v794
        %v803 = vsel %vm801, %v794, %v796
        %v804 = vsel %vm801, %v796, %v798
        %v805 = vsel %vm801, %v798, %v800
        %810 = vst [vmem:[#allocation2 + $0xe0] sm:$0xf0] %v802
        %811 = vst [vmem:[#allocation2 + $0xe8] sm:$0xf0] %v803
        %812 = vst [vmem:[#allocation2 + $0xf0] sm:$0xf0] %v804
        %813 = vst [vmem:[#allocation2 + $0xf8] sm:$0xf0] %v805
        %814 = vrot.lane.b32.xlu0 %v444, 118
        %v815 = vpop.permute.xlu0 %814
        %816 = vrot.lane.b32.xlu0 %v445, 118
        %v817 = vpop.permute.xlu0 %816
        %818 = vrot.lane.b32.xlu0 %v446, 118
        %v819 = vpop.permute.xlu0 %818
        %820 = vrot.lane.b32.xlu0 %v447, 118
        %v821 = vpop.permute.xlu0 %820
        %822 = vrot.lane.b32.xlu0 %v448, 118
        %v823 = vpop.permute.xlu0 %822
        %vm824 = vcmask 965632
        %v825 = vsel %vm824, %v815, %v817
        %v826 = vsel %vm824, %v817, %v819
        %v827 = vsel %vm824, %v819, %v821
        %v828 = vsel %vm824, %v821, %v823
        %833 = vst [vmem:[#allocation2 + $0x100] sm:$0xf] %v825
        %834 = vst [vmem:[#allocation2 + $0x108] sm:$0xf] %v826
        %835 = vst [vmem:[#allocation2 + $0x110] sm:$0xf] %v827
        %836 = vst [vmem:[#allocation2 + $0x118] sm:$0xf] %v828
        %837 = vrot.lane.b32.xlu0 %v478, 117
        %v838 = vpop.permute.xlu0 %837
        %839 = vrot.lane.b32.xlu0 %v479, 117
        %v840 = vpop.permute.xlu0 %839
        %841 = vrot.lane.b32.xlu0 %v480, 117
        %v842 = vpop.permute.xlu0 %841
        %843 = vrot.lane.b32.xlu0 %v481, 117
        %v844 = vpop.permute.xlu0 %843
        %845 = vrot.lane.b32.xlu0 %v790, 117
        %v846 = vpop.permute.xlu0 %845
        %vm847 = vcmask 957440
        %v848 = vsel %vm847, %v838, %v840
        %v849 = vsel %vm847, %v840, %v842
        %v850 = vsel %vm847, %v842, %v844
        %v851 = vsel %vm847, %v844, %v846
        %856 = vst [vmem:[#allocation2 + $0x100] sm:$0xf0] %v848
        %857 = vst [vmem:[#allocation2 + $0x108] sm:$0xf0] %v849
        %858 = vst [vmem:[#allocation2 + $0x110] sm:$0xf0] %v850
        %859 = vst [vmem:[#allocation2 + $0x118] sm:$0xf0] %v851
        %860 = vrot.lane.b32.xlu0 %v444, 39
        %v861 = vpop.permute.xlu0 %860
        %862 = vrot.lane.b32.xlu0 %v445, 39
        %v863 = vpop.permute.xlu0 %862
        %864 = vrot.lane.b32.xlu0 %v446, 39
        %v865 = vpop.permute.xlu0 %864
        %866 = vrot.lane.b32.xlu0 %v447, 39
        %v867 = vpop.permute.xlu0 %866
        %868 = vrot.lane.b32.xlu0 %v448, 39
        %v869 = vpop.permute.xlu0 %868
        %vm870 = vcmask 318464
        %v871 = vsel %vm870, %v861, %v863
        %v872 = vsel %vm870, %v863, %v865
        %v873 = vsel %vm870, %v865, %v867
        %v874 = vsel %vm870, %v867, %v869
        %879 = vst [vmem:[#allocation2 + $0x120] sm:$0xf] %v871
        %880 = vst [vmem:[#allocation2 + $0x128] sm:$0xf] %v872
        %881 = vst [vmem:[#allocation2 + $0x130] sm:$0xf] %v873
        %882 = vst [vmem:[#allocation2 + $0x138] sm:$0xf] %v874
        %883 = vrot.lane.b32.xlu0 %v478, 38
        %v884 = vpop.permute.xlu0 %883
        %885 = vrot.lane.b32.xlu0 %v479, 38
        %v886 = vpop.permute.xlu0 %885
        %887 = vrot.lane.b32.xlu0 %v480, 38
        %v888 = vpop.permute.xlu0 %887
        %889 = vrot.lane.b32.xlu0 %v481, 38
        %v890 = vpop.permute.xlu0 %889
        %891 = vrot.lane.b32.xlu0 %v790, 38
        %v892 = vpop.permute.xlu0 %891
        %vm893 = vcmask 310272
        %v894 = vsel %vm893, %v884, %v886
        %v895 = vsel %vm893, %v886, %v888
        %v896 = vsel %vm893, %v888, %v890
        %v897 = vsel %vm893, %v890, %v892
        %902 = vst [vmem:[#allocation2 + $0x120] sm:$0xf0] %v894
        %903 = vst [vmem:[#allocation2 + $0x128] sm:$0xf0] %v895
        %904 = vst [vmem:[#allocation2 + $0x130] sm:$0xf0] %v896
        %905 = vst [vmem:[#allocation2 + $0x138] sm:$0xf0] %v897
        %906 = vrot.lane.b32.xlu0 %v444, 37
        %v907 = vpop.permute.xlu0 %906
        %908 = vrot.lane.b32.xlu0 %v445, 37
        %v909 = vpop.permute.xlu0 %908
        %910 = vrot.lane.b32.xlu0 %v446, 37
        %v911 = vpop.permute.xlu0 %910
        %912 = vrot.lane.b32.xlu0 %v447, 37
        %v913 = vpop.permute.xlu0 %912
        %914 = vrot.lane.b32.xlu0 %v448, 37
        %v915 = vpop.permute.xlu0 %914
        %vm916 = vcmask 302080
        %v917 = vsel %vm916, %v907, %v909
        %v918 = vsel %vm916, %v909, %v911
        %v919 = vsel %vm916, %v911, %v913
        %v920 = vsel %vm916, %v913, %v915
        %925 = vst [vmem:[#allocation2 + $0x140] sm:$0xf] %v917
        %926 = vst [vmem:[#allocation2 + $0x148] sm:$0xf] %v918
        %927 = vst [vmem:[#allocation2 + $0x150] sm:$0xf] %v919
        %928 = vst [vmem:[#allocation2 + $0x158] sm:$0xf] %v920
        %929 = vrot.lane.b32.xlu0 %v478, 29
        %v930 = vpop.permute.xlu0 %929
        %931 = vrot.lane.b32.xlu0 %v479, 29
        %v932 = vpop.permute.xlu0 %931
        %933 = vrot.lane.b32.xlu0 %v480, 29
        %v934 = vpop.permute.xlu0 %933
        %935 = vrot.lane.b32.xlu0 %v481, 29
        %v936 = vpop.permute.xlu0 %935
        %937 = vrot.lane.b32.xlu0 %v790, 29
        %v938 = vpop.permute.xlu0 %937
        %vm939 = vcmask 236544
        %v940 = vsel %vm939, %v930, %v932
        %v941 = vsel %vm939, %v932, %v934
        %v942 = vsel %vm939, %v934, %v936
        %v943 = vsel %vm939, %v936, %v938
        %948 = vst [vmem:[#allocation2 + $0x140] sm:$0xf0] %v940
        %949 = vst [vmem:[#allocation2 + $0x148] sm:$0xf0] %v941
        %950 = vst [vmem:[#allocation2 + $0x150] sm:$0xf0] %v942
        %951 = vst [vmem:[#allocation2 + $0x158] sm:$0xf0] %v943
        %952 = vrot.lane.b32.xlu0 %v444, 28
        %v953 = vpop.permute.xlu0 %952
        %954 = vrot.lane.b32.xlu0 %v445, 28
        %v955 = vpop.permute.xlu0 %954
        %956 = vrot.lane.b32.xlu0 %v446, 28
        %v957 = vpop.permute.xlu0 %956
        %958 = vrot.lane.b32.xlu0 %v447, 28
        %v959 = vpop.permute.xlu0 %958
        %960 = vrot.lane.b32.xlu0 %v448, 28
        %v961 = vpop.permute.xlu0 %960
        %vm962 = vcmask 228352
        %v963 = vsel %vm962, %v953, %v955
        %v964 = vsel %vm962, %v955, %v957
        %v965 = vsel %vm962, %v957, %v959
        %v966 = vsel %vm962, %v959, %v961
        %971 = vst [vmem:[#allocation2 + $0x160] sm:$0xf] %v963
        %972 = vst [vmem:[#allocation2 + $0x168] sm:$0xf] %v964
        %973 = vst [vmem:[#allocation2 + $0x170] sm:$0xf] %v965
        %974 = vst [vmem:[#allocation2 + $0x178] sm:$0xf] %v966
        %975 = vrot.lane.b32.xlu0 %v478, 27
        %v976 = vpop.permute.xlu0 %975
        %977 = vrot.lane.b32.xlu0 %v479, 27
        %v978 = vpop.permute.xlu0 %977
        %979 = vrot.lane.b32.xlu0 %v480, 27
        %v980 = vpop.permute.xlu0 %979
        %981 = vrot.lane.b32.xlu0 %v481, 27
        %v982 = vpop.permute.xlu0 %981
        %983 = vrot.lane.b32.xlu0 %v790, 27
        %v984 = vpop.permute.xlu0 %983
        %vm985 = vcmask 220160
        %v986 = vsel %vm985, %v976, %v978
        %v987 = vsel %vm985, %v978, %v980
        %v988 = vsel %vm985, %v980, %v982
        %v989 = vsel %vm985, %v982, %v984
        %994 = vst [vmem:[#allocation2 + $0x160] sm:$0xf0] %v986
        %995 = vst [vmem:[#allocation2 + $0x168] sm:$0xf0] %v987
        %996 = vst [vmem:[#allocation2 + $0x170] sm:$0xf0] %v988
        %997 = vst [vmem:[#allocation2 + $0x178] sm:$0xf0] %v989
        %998 = vrot.lane.b32.xlu0 %v444, 19
        %v999 = vpop.permute.xlu0 %998
        %1000 = vrot.lane.b32.xlu0 %v445, 19
        %v1001 = vpop.permute.xlu0 %1000
        %1002 = vrot.lane.b32.xlu0 %v446, 19
        %v1003 = vpop.permute.xlu0 %1002
        %1004 = vrot.lane.b32.xlu0 %v447, 19
        %v1005 = vpop.permute.xlu0 %1004
        %1006 = vrot.lane.b32.xlu0 %v448, 19
        %v1007 = vpop.permute.xlu0 %1006
        %vm1008 = vcmask 154624
        %v1009 = vsel %vm1008, %v999, %v1001
        %v1010 = vsel %vm1008, %v1001, %v1003
        %v1011 = vsel %vm1008, %v1003, %v1005
        %v1012 = vsel %vm1008, %v1005, %v1007
        %1017 = vst [vmem:[#allocation2 + $0x180] sm:$0xf] %v1009
        %1018 = vst [vmem:[#allocation2 + $0x188] sm:$0xf] %v1010
        %1019 = vst [vmem:[#allocation2 + $0x190] sm:$0xf] %v1011
        %1020 = vst [vmem:[#allocation2 + $0x198] sm:$0xf] %v1012
        %1021 = vrot.lane.b32.xlu0 %v478, 18
        %v1022 = vpop.permute.xlu0 %1021
        %1023 = vrot.lane.b32.xlu0 %v479, 18
        %v1024 = vpop.permute.xlu0 %1023
        %1025 = vrot.lane.b32.xlu0 %v480, 18
        %v1026 = vpop.permute.xlu0 %1025
        %1027 = vrot.lane.b32.xlu0 %v481, 18
        %v1028 = vpop.permute.xlu0 %1027
        %1029 = vrot.lane.b32.xlu0 %v790, 18
        %v1030 = vpop.permute.xlu0 %1029
        %vm1031 = vcmask 146432
        %v1032 = vsel %vm1031, %v1022, %v1024
        %v1033 = vsel %vm1031, %v1024, %v1026
        %v1034 = vsel %vm1031, %v1026, %v1028
        %v1035 = vsel %vm1031, %v1028, %v1030
        %1040 = vst [vmem:[#allocation2 + $0x180] sm:$0xf0] %v1032
        %1041 = vst [vmem:[#allocation2 + $0x188] sm:$0xf0] %v1033
        %1042 = vst [vmem:[#allocation2 + $0x190] sm:$0xf0] %v1034
        %1043 = vst [vmem:[#allocation2 + $0x198] sm:$0xf0] %v1035
        %1044 = vrot.lane.b32.xlu0 %v444, 17
        %v1045 = vpop.permute.xlu0 %1044
        %1046 = vrot.lane.b32.xlu0 %v445, 17
        %v1047 = vpop.permute.xlu0 %1046
        %1048 = vrot.lane.b32.xlu0 %v446, 17
        %v1049 = vpop.permute.xlu0 %1048
        %1050 = vrot.lane.b32.xlu0 %v447, 17
        %v1051 = vpop.permute.xlu0 %1050
        %1052 = vrot.lane.b32.xlu0 %v448, 17
        %v1053 = vpop.permute.xlu0 %1052
        %vm1054 = vcmask 138240
        %v1055 = vsel %vm1054, %v1045, %v1047
        %v1056 = vsel %vm1054, %v1047, %v1049
        %v1057 = vsel %vm1054, %v1049, %v1051
        %v1058 = vsel %vm1054, %v1051, %v1053
        %1063 = vst [vmem:[#allocation2 + $0x1a0] sm:$0xf] %v1055
        %1064 = vst [vmem:[#allocation2 + $0x1a8] sm:$0xf] %v1056
        %1065 = vst [vmem:[#allocation2 + $0x1b0] sm:$0xf] %v1057
        %1066 = vst [vmem:[#allocation2 + $0x1b8] sm:$0xf] %v1058
        %1067 = vst [vmem:[#allocation2 + $0x1a0] sm:$0xf0] 0.0
        %1068 = vst [vmem:[#allocation2 + $0x1a8] sm:$0xf0] 0.0
        %1069 = vst [vmem:[#allocation2 + $0x1b0] sm:$0xf0] 0.0
        %1070 = vst [vmem:[#allocation2 + $0x1b8] sm:$0xf0] 0.0
        %v1071 = vld [vmem:[%s3] sm:$0xff]
        %v1072 = vld [vmem:[#allocation2] sm:$0xff]
        %v1073 = vld [vmem:[#allocation2 + $0x8] sm:$0xff]
        %v1074 = vld [vmem:[#allocation2 + $0x10] sm:$0xff]
        %v1075 = vld [vmem:[#allocation2 + $0x18] sm:$0xff]
        %v1076 = vld [vmem:[#allocation2 + $0x20] sm:$0xff]
        %v1077 = vld [vmem:[#allocation2 + $0x28] sm:$0xff]
        %v1078 = vld [vmem:[#allocation2 + $0x30] sm:$0xff]
        %v1079 = vld [vmem:[#allocation2 + $0x38] sm:$0xff]
        %v1080 = vld [vmem:[#allocation2 + $0x40] sm:$0xff]
        %v1081 = vld [vmem:[#allocation2 + $0x48] sm:$0xff]
        %v1082 = vld [vmem:[#allocation2 + $0x50] sm:$0xff]
        %v1083 = vld [vmem:[#allocation2 + $0x58] sm:$0xff]
        %v1084 = vld [vmem:[#allocation2 + $0x60] sm:$0xff]
        %v1085 = vld [vmem:[#allocation2 + $0x68] sm:$0xff]
        %v1086 = vld [vmem:[#allocation2 + $0x70] sm:$0xff]
        %v1087 = vld [vmem:[#allocation2 + $0x78] sm:$0xff]
        %v1088 = vld [vmem:[#allocation2 + $0x80] sm:$0xff]
        %v1089 = vld [vmem:[#allocation2 + $0x88] sm:$0xff]
        %v1090 = vld [vmem:[#allocation2 + $0x90] sm:$0xff]
        %v1091 = vld [vmem:[#allocation2 + $0x98] sm:$0xff]
        %v1092 = vld [vmem:[#allocation2 + $0xa0] sm:$0xff]
        %v1093 = vld [vmem:[#allocation2 + $0xa8] sm:$0xff]
        %v1094 = vld [vmem:[#allocation2 + $0xb0] sm:$0xff]
        %v1095 = vld [vmem:[#allocation2 + $0xb8] sm:$0xff]
        %v1096 = vld [vmem:[#allocation2 + $0xc0] sm:$0xff]
        %v1097 = vld [vmem:[#allocation2 + $0xc8] sm:$0xff]
        %v1098 = vld [vmem:[#allocation2 + $0xd0] sm:$0xff]
        %v1099 = vld [vmem:[#allocation2 + $0xd8] sm:$0xff]
        %v1100 = vld [vmem:[#allocation2 + $0xe0] sm:$0xff]
        %v1101 = vld [vmem:[#allocation2 + $0xe8] sm:$0xff]
        %v1102 = vld [vmem:[#allocation2 + $0xf0] sm:$0xff]
        %v1103 = vld [vmem:[#allocation2 + $0xf8] sm:$0xff]
        %v1104 = vld [vmem:[#allocation2 + $0x100] sm:$0xff]
        %v1105 = vld [vmem:[#allocation2 + $0x108] sm:$0xff]
        %v1106 = vld [vmem:[#allocation2 + $0x110] sm:$0xff]
        %v1107 = vld [vmem:[#allocation2 + $0x118] sm:$0xff]
        %v1108 = vld [vmem:[#allocation2 + $0x120] sm:$0xff]
        %v1109 = vld [vmem:[#allocation2 + $0x128] sm:$0xff]
        %v1110 = vld [vmem:[#allocation2 + $0x130] sm:$0xff]
        %v1111 = vld [vmem:[#allocation2 + $0x138] sm:$0xff]
        %v1112 = vld [vmem:[#allocation2 + $0x140] sm:$0xff]
        %v1113 = vld [vmem:[#allocation2 + $0x148] sm:$0xff]
        %v1114 = vld [vmem:[#allocation2 + $0x150] sm:$0xff]
        %v1115 = vld [vmem:[#allocation2 + $0x158] sm:$0xff]
        %v1116 = vld [vmem:[#allocation2 + $0x160] sm:$0xff]
        %v1117 = vld [vmem:[#allocation2 + $0x168] sm:$0xff]
        %v1118 = vld [vmem:[#allocation2 + $0x170] sm:$0xff]
        %v1119 = vld [vmem:[#allocation2 + $0x178] sm:$0xff]
        %v1120 = vld [vmem:[#allocation2 + $0x180] sm:$0xff]
        %v1121 = vld [vmem:[#allocation2 + $0x188] sm:$0xff]
        %v1122 = vld [vmem:[#allocation2 + $0x190] sm:$0xff]
        %v1123 = vld [vmem:[#allocation2 + $0x198] sm:$0xff]
        %v1124 = vld [vmem:[#allocation2 + $0x1a0] sm:$0xff]
        %v1125 = vld [vmem:[#allocation2 + $0x1a8] sm:$0xff]
        %v1126 = vld [vmem:[#allocation2 + $0x1b0] sm:$0xff]
        %v1127 = vld [vmem:[#allocation2 + $0x1b8] sm:$0xff]
        %v1128 = vld [vmem:[%s4] sm:$0xff]
        %1130 = vset.pattern.permute.xlu0 0
        %1131 = vperm.xlu0 %1130, %v1128
        %v1132 = vpop.permute.xlu0 %1131
        %vm1134 = vcmask 916480
        %v1136 = vsel %vm1134, %v1071, 0
        %1138 = vmatpush.msra.mxu0 0.0
        %1139 = vmatpush.msra.mxu0 0.0
        %v1140 = vand.u32 %v1124, 4294901760
        %1141 = vmatpush.msra.mxu0 %v1140
        %v1142 = vand.u32 %v1120, 4294901760
        %1143 = vmatpush.msra.mxu0 %v1142
        %v1144 = vand.u32 %v1116, 4294901760
        %1145 = vmatpush.msra.mxu0 %v1144
        %v1146 = vand.u32 %v1112, 4294901760
        %1147 = vmatpush.msra.mxu0 %v1146
        %v1148 = vand.u32 %v1108, 4294901760
        %1149 = vmatpush.msra.mxu0 %v1148
        %v1150 = vand.u32 %v1104, 4294901760
        %1151 = vmatpush.msra.mxu0 %v1150
        %v1152 = vand.u32 %v1100, 4294901760
        %1153 = vmatpush.msra.mxu0 %v1152
        %v1154 = vand.u32 %v1096, 4294901760
        %1155 = vmatpush.msra.mxu0 %v1154
        %v1156 = vand.u32 %v1092, 4294901760
        %1157 = vmatpush.msra.mxu0 %v1156
        %v1158 = vand.u32 %v1088, 4294901760
        %1159 = vmatpush.msra.mxu0 %v1158
        %v1160 = vand.u32 %v1084, 4294901760
        %1161 = vmatpush.msra.mxu0 %v1160
        %v1162 = vand.u32 %v1080, 4294901760
        %1163 = vmatpush.msra.mxu0 %v1162
        %v1164 = vand.u32 %v1076, 4294901760
        %1165 = vmatpush.msra.mxu0 %v1164
        %v1166 = vand.u32 %v1072, 4294901760
        %1167 = vmatpush.msra.mxu0 %v1166
        %v1168 = vand.u32 %v1136, 4294901760
        %v1169 = vsub.f32 %v1136, %v1168
        %v1170 = vand.u32 %v1169, 4294901760
        %v1171 = vsub.f32 %v1169, %v1170
        %v1172 = vand.u32 %v1171, 4294901760
        %1173 = vmatmul.f32.gmra.mxu0 %v1172
        %v1174 = vpop.f32.mrf.mxu0
        %v1175 = vadd.f32 %v1132, %v1174
        %1176 = vdwg.mxu0
        %1177 = vmatpush.msra.mxu0 0.0
        %1178 = vmatpush.msra.mxu0 0.0
        %v1179 = vand.u32 %v1124, 4294901760
        %v1180 = vsub.f32 %v1124, %v1179
        %v1181 = vand.u32 %v1180, 4294901760
        %v1182 = vsub.f32 %v1180, %v1181
        %v1183 = vand.u32 %v1182, 4294901760
        %1184 = vmatpush.msra.mxu0 %v1183
        %v1185 = vand.u32 %v1120, 4294901760
        %v1186 = vsub.f32 %v1120, %v1185
        %v1187 = vand.u32 %v1186, 4294901760
        %v1188 = vsub.f32 %v1186, %v1187
        %v1189 = vand.u32 %v1188, 4294901760
        %1190 = vmatpush.msra.mxu0 %v1189
        %v1191 = vand.u32 %v1116, 4294901760
        %v1192 = vsub.f32 %v1116, %v1191
        %v1193 = vand.u32 %v1192, 4294901760
        %v1194 = vsub.f32 %v1192, %v1193
        %v1195 = vand.u32 %v1194, 4294901760
        %1196 = vmatpush.msra.mxu0 %v1195
        %v1197 = vand.u32 %v1112, 4294901760
        %v1198 = vsub.f32 %v1112, %v1197
        %v1199 = vand.u32 %v1198, 4294901760
        %v1200 = vsub.f32 %v1198, %v1199
        %v1201 = vand.u32 %v1200, 4294901760
        %1202 = vmatpush.msra.mxu0 %v1201
        %v1203 = vand.u32 %v1108, 4294901760
        %v1204 = vsub.f32 %v1108, %v1203
        %v1205 = vand.u32 %v1204, 4294901760
        %v1206 = vsub.f32 %v1204, %v1205
        %v1207 = vand.u32 %v1206, 4294901760
        %1208 = vmatpush.msra.mxu0 %v1207
        %v1209 = vand.u32 %v1104, 4294901760
        %v1210 = vsub.f32 %v1104, %v1209
        %v1211 = vand.u32 %v1210, 4294901760
        %v1212 = vsub.f32 %v1210, %v1211
        %v1213 = vand.u32 %v1212, 4294901760
        %1214 = vmatpush.msra.mxu0 %v1213
        %v1215 = vand.u32 %v1100, 4294901760
        %v1216 = vsub.f32 %v1100, %v1215
        %v1217 = vand.u32 %v1216, 4294901760
        %v1218 = vsub.f32 %v1216, %v1217
        %v1219 = vand.u32 %v1218, 4294901760
        %1220 = vmatpush.msra.mxu0 %v1219
        %v1221 = vand.u32 %v1096, 4294901760
        %v1222 = vsub.f32 %v1096, %v1221
        %v1223 = vand.u32 %v1222, 4294901760
        %v1224 = vsub.f32 %v1222, %v1223
        %v1225 = vand.u32 %v1224, 4294901760
        %1226 = vmatpush.msra.mxu0 %v1225
        %v1227 = vand.u32 %v1092, 4294901760
        %v1228 = vsub.f32 %v1092, %v1227
        %v1229 = vand.u32 %v1228, 4294901760
        %v1230 = vsub.f32 %v1228, %v1229
        %v1231 = vand.u32 %v1230, 4294901760
        %1232 = vmatpush.msra.mxu0 %v1231
        %v1233 = vand.u32 %v1088, 4294901760
        %v1234 = vsub.f32 %v1088, %v1233
        %v1235 = vand.u32 %v1234, 4294901760
        %v1236 = vsub.f32 %v1234, %v1235
        %v1237 = vand.u32 %v1236, 4294901760
        %1238 = vmatpush.msra.mxu0 %v1237
        %v1239 = vand.u32 %v1084, 4294901760
        %v1240 = vsub.f32 %v1084, %v1239
        %v1241 = vand.u32 %v1240, 4294901760
        %v1242 = vsub.f32 %v1240, %v1241
        %v1243 = vand.u32 %v1242, 4294901760
        %1244 = vmatpush.msra.mxu0 %v1243
        %v1245 = vand.u32 %v1080, 4294901760
        %v1246 = vsub.f32 %v1080, %v1245
        %v1247 = vand.u32 %v1246, 4294901760
        %v1248 = vsub.f32 %v1246, %v1247
        %v1249 = vand.u32 %v1248, 4294901760
        %1250 = vmatpush.msra.mxu0 %v1249
        %v1251 = vand.u32 %v1076, 4294901760
        %v1252 = vsub.f32 %v1076, %v1251
        %v1253 = vand.u32 %v1252, 4294901760
        %v1254 = vsub.f32 %v1252, %v1253
        %v1255 = vand.u32 %v1254, 4294901760
        %1256 = vmatpush.msra.mxu0 %v1255
        %v1257 = vand.u32 %v1072, 4294901760
        %v1258 = vsub.f32 %v1072, %v1257
        %v1259 = vand.u32 %v1258, 4294901760
        %v1260 = vsub.f32 %v1258, %v1259
        %v1261 = vand.u32 %v1260, 4294901760
        %1262 = vmatpush.msra.mxu0 %v1261
        %v1263 = vand.u32 %v1136, 4294901760
        %1264 = vmatmul.f32.gmra.mxu0 %v1263
        %v1265 = vpop.f32.mrf.mxu0
        %v1266 = vadd.f32 %v1175, %v1265
        %1267 = vdwg.mxu0
        %1268 = vmatpush.msra.mxu0 0.0
        %1269 = vmatpush.msra.mxu0 0.0
        %v1270 = vand.u32 %v1124, 4294901760
        %v1271 = vsub.f32 %v1124, %v1270
        %1272 = vmatpush.msra.mxu0 %v1271
        %v1273 = vand.u32 %v1120, 4294901760
        %v1274 = vsub.f32 %v1120, %v1273
        %1275 = vmatpush.msra.mxu0 %v1274
        %v1276 = vand.u32 %v1116, 4294901760
        %v1277 = vsub.f32 %v1116, %v1276
        %1278 = vmatpush.msra.mxu0 %v1277
        %v1279 = vand.u32 %v1112, 4294901760
        %v1280 = vsub.f32 %v1112, %v1279
        %1281 = vmatpush.msra.mxu0 %v1280
        %v1282 = vand.u32 %v1108, 4294901760
        %v1283 = vsub.f32 %v1108, %v1282
        %1284 = vmatpush.msra.mxu0 %v1283
        %v1285 = vand.u32 %v1104, 4294901760
        %v1286 = vsub.f32 %v1104, %v1285
        %1287 = vmatpush.msra.mxu0 %v1286
        %v1288 = vand.u32 %v1100, 4294901760
        %v1289 = vsub.f32 %v1100, %v1288
        %1290 = vmatpush.msra.mxu0 %v1289
        %v1291 = vand.u32 %v1096, 4294901760
        %v1292 = vsub.f32 %v1096, %v1291
        %1293 = vmatpush.msra.mxu0 %v1292
        %v1294 = vand.u32 %v1092, 4294901760
        %v1295 = vsub.f32 %v1092, %v1294
        %1296 = vmatpush.msra.mxu0 %v1295
        %v1297 = vand.u32 %v1088, 4294901760
        %v1298 = vsub.f32 %v1088, %v1297
        %1299 = vmatpush.msra.mxu0 %v1298
        %v1300 = vand.u32 %v1084, 4294901760
        %v1301 = vsub.f32 %v1084, %v1300
        %1302 = vmatpush.msra.mxu0 %v1301
        %v1303 = vand.u32 %v1080, 4294901760
        %v1304 = vsub.f32 %v1080, %v1303
        %1305 = vmatpush.msra.mxu0 %v1304
        %v1306 = vand.u32 %v1076, 4294901760
        %v1307 = vsub.f32 %v1076, %v1306
        %1308 = vmatpush.msra.mxu0 %v1307
        %v1309 = vand.u32 %v1072, 4294901760
        %v1310 = vsub.f32 %v1072, %v1309
        %1311 = vmatpush.msra.mxu0 %v1310
        %v1312 = vand.u32 %v1136, 4294901760
        %v1313 = vsub.f32 %v1136, %v1312
        %1314 = vmatmul.f32.gmra.mxu0 %v1313
        %v1315 = vpop.f32.mrf.mxu0
        %v1316 = vadd.f32 %v1266, %v1315
        %1317 = vdwg.mxu0
        %1318 = vmatpush.msra.mxu0 0.0
        %1319 = vmatpush.msra.mxu0 0.0
        %v1320 = vand.u32 %v1124, 4294901760
        %1321 = vmatpush.msra.mxu0 %v1320
        %v1322 = vand.u32 %v1120, 4294901760
        %1323 = vmatpush.msra.mxu0 %v1322
        %v1324 = vand.u32 %v1116, 4294901760
        %1325 = vmatpush.msra.mxu0 %v1324
        %v1326 = vand.u32 %v1112, 4294901760
        %1327 = vmatpush.msra.mxu0 %v1326
        %v1328 = vand.u32 %v1108, 4294901760
        %1329 = vmatpush.msra.mxu0 %v1328
        %v1330 = vand.u32 %v1104, 4294901760
        %1331 = vmatpush.msra.mxu0 %v1330
        %v1332 = vand.u32 %v1100, 4294901760
        %1333 = vmatpush.msra.mxu0 %v1332
        %v1334 = vand.u32 %v1096, 4294901760
        %1335 = vmatpush.msra.mxu0 %v1334
        %v1336 = vand.u32 %v1092, 4294901760
        %1337 = vmatpush.msra.mxu0 %v1336
        %v1338 = vand.u32 %v1088, 4294901760
        %1339 = vmatpush.msra.mxu0 %v1338
        %v1340 = vand.u32 %v1084, 4294901760
        %1341 = vmatpush.msra.mxu0 %v1340
        %v1342 = vand.u32 %v1080, 4294901760
        %1343 = vmatpush.msra.mxu0 %v1342
        %v1344 = vand.u32 %v1076, 4294901760
        %1345 = vmatpush.msra.mxu0 %v1344
        %v1346 = vand.u32 %v1072, 4294901760
        %1347 = vmatpush.msra.mxu0 %v1346
        %v1348 = vand.u32 %v1136, 4294901760
        %v1349 = vsub.f32 %v1136, %v1348
        %v1350 = vand.u32 %v1349, 4294901760
        %1351 = vmatmul.f32.gmra.mxu0 %v1350
        %v1352 = vpop.f32.mrf.mxu0
        %v1353 = vadd.f32 %v1316, %v1352
        %1354 = vdwg.mxu0
        %1355 = vmatpush.msra.mxu0 0.0
        %1356 = vmatpush.msra.mxu0 0.0
        %v1357 = vand.u32 %v1124, 4294901760
        %v1358 = vsub.f32 %v1124, %v1357
        %v1359 = vand.u32 %v1358, 4294901760
        %1360 = vmatpush.msra.mxu0 %v1359
        %v1361 = vand.u32 %v1120, 4294901760
        %v1362 = vsub.f32 %v1120, %v1361
        %v1363 = vand.u32 %v1362, 4294901760
        %1364 = vmatpush.msra.mxu0 %v1363
        %v1365 = vand.u32 %v1116, 4294901760
        %v1366 = vsub.f32 %v1116, %v1365
        %v1367 = vand.u32 %v1366, 4294901760
        %1368 = vmatpush.msra.mxu0 %v1367
        %v1369 = vand.u32 %v1112, 4294901760
        %v1370 = vsub.f32 %v1112, %v1369
        %v1371 = vand.u32 %v1370, 4294901760
        %1372 = vmatpush.msra.mxu0 %v1371
        %v1373 = vand.u32 %v1108, 4294901760
        %v1374 = vsub.f32 %v1108, %v1373
        %v1375 = vand.u32 %v1374, 4294901760
        %1376 = vmatpush.msra.mxu0 %v1375
        %v1377 = vand.u32 %v1104, 4294901760
        %v1378 = vsub.f32 %v1104, %v1377
        %v1379 = vand.u32 %v1378, 4294901760
        %1380 = vmatpush.msra.mxu0 %v1379
        %v1381 = vand.u32 %v1100, 4294901760
        %v1382 = vsub.f32 %v1100, %v1381
        %v1383 = vand.u32 %v1382, 4294901760
        %1384 = vmatpush.msra.mxu0 %v1383
        %v1385 = vand.u32 %v1096, 4294901760
        %v1386 = vsub.f32 %v1096, %v1385
        %v1387 = vand.u32 %v1386, 4294901760
        %1388 = vmatpush.msra.mxu0 %v1387
        %v1389 = vand.u32 %v1092, 4294901760
        %v1390 = vsub.f32 %v1092, %v1389
        %v1391 = vand.u32 %v1390, 4294901760
        %1392 = vmatpush.msra.mxu0 %v1391
        %v1393 = vand.u32 %v1088, 4294901760
        %v1394 = vsub.f32 %v1088, %v1393
        %v1395 = vand.u32 %v1394, 4294901760
        %1396 = vmatpush.msra.mxu0 %v1395
        %v1397 = vand.u32 %v1084, 4294901760
        %v1398 = vsub.f32 %v1084, %v1397
        %v1399 = vand.u32 %v1398, 4294901760
        %1400 = vmatpush.msra.mxu0 %v1399
        %v1401 = vand.u32 %v1080, 4294901760
        %v1402 = vsub.f32 %v1080, %v1401
        %v1403 = vand.u32 %v1402, 4294901760
        %1404 = vmatpush.msra.mxu0 %v1403
        %v1405 = vand.u32 %v1076, 4294901760
        %v1406 = vsub.f32 %v1076, %v1405
        %v1407 = vand.u32 %v1406, 4294901760
        %1408 = vmatpush.msra.mxu0 %v1407
        %v1409 = vand.u32 %v1072, 4294901760
        %v1410 = vsub.f32 %v1072, %v1409
        %v1411 = vand.u32 %v1410, 4294901760
        %1412 = vmatpush.msra.mxu0 %v1411
        %v1413 = vand.u32 %v1136, 4294901760
        %1414 = vmatmul.f32.gmra.mxu0 %v1413
        %v1415 = vpop.f32.mrf.mxu0
        %v1416 = vadd.f32 %v1353, %v1415
        %1417 = vdwg.mxu0
        %1418 = vmatpush.msra.mxu0 0.0
        %1419 = vmatpush.msra.mxu0 0.0
        %v1420 = vand.u32 %v1124, 4294901760
        %1421 = vmatpush.msra.mxu0 %v1420
        %v1422 = vand.u32 %v1120, 4294901760
        %1423 = vmatpush.msra.mxu0 %v1422
        %v1424 = vand.u32 %v1116, 4294901760
        %1425 = vmatpush.msra.mxu0 %v1424
        %v1426 = vand.u32 %v1112, 4294901760
        %1427 = vmatpush.msra.mxu0 %v1426
        %v1428 = vand.u32 %v1108, 4294901760
        %1429 = vmatpush.msra.mxu0 %v1428
        %v1430 = vand.u32 %v1104, 4294901760
        %1431 = vmatpush.msra.mxu0 %v1430
        %v1432 = vand.u32 %v1100, 4294901760
        %1433 = vmatpush.msra.mxu0 %v1432
        %v1434 = vand.u32 %v1096, 4294901760
        %1435 = vmatpush.msra.mxu0 %v1434
        %v1436 = vand.u32 %v1092, 4294901760
        %1437 = vmatpush.msra.mxu0 %v1436
        %v1438 = vand.u32 %v1088, 4294901760
        %1439 = vmatpush.msra.mxu0 %v1438
        %v1440 = vand.u32 %v1084, 4294901760
        %1441 = vmatpush.msra.mxu0 %v1440
        %v1442 = vand.u32 %v1080, 4294901760
        %1443 = vmatpush.msra.mxu0 %v1442
        %v1444 = vand.u32 %v1076, 4294901760
        %1445 = vmatpush.msra.mxu0 %v1444
        %v1446 = vand.u32 %v1072, 4294901760
        %1447 = vmatpush.msra.mxu0 %v1446
        %v1448 = vand.u32 %v1136, 4294901760
        %1449 = vmatmul.f32.gmra.mxu0 %v1448
        %v1450 = vpop.f32.mrf.mxu0
        %v1451 = vadd.f32 %v1416, %v1450
        %1452 = vdwg.mxu0
        %1453 = vmatpush.msra.mxu0 0.0
        %1454 = vmatpush.msra.mxu0 0.0
        %v1455 = vand.u32 %v1125, 4294901760
        %1456 = vmatpush.msra.mxu0 %v1455
        %v1457 = vand.u32 %v1121, 4294901760
        %1458 = vmatpush.msra.mxu0 %v1457
        %v1459 = vand.u32 %v1117, 4294901760
        %1460 = vmatpush.msra.mxu0 %v1459
        %v1461 = vand.u32 %v1113, 4294901760
        %1462 = vmatpush.msra.mxu0 %v1461
        %v1463 = vand.u32 %v1109, 4294901760
        %1464 = vmatpush.msra.mxu0 %v1463
        %v1465 = vand.u32 %v1105, 4294901760
        %1466 = vmatpush.msra.mxu0 %v1465
        %v1467 = vand.u32 %v1101, 4294901760
        %1468 = vmatpush.msra.mxu0 %v1467
        %v1469 = vand.u32 %v1097, 4294901760
        %1470 = vmatpush.msra.mxu0 %v1469
        %v1471 = vand.u32 %v1093, 4294901760
        %1472 = vmatpush.msra.mxu0 %v1471
        %v1473 = vand.u32 %v1089, 4294901760
        %1474 = vmatpush.msra.mxu0 %v1473
        %v1475 = vand.u32 %v1085, 4294901760
        %1476 = vmatpush.msra.mxu0 %v1475
        %v1477 = vand.u32 %v1081, 4294901760
        %1478 = vmatpush.msra.mxu0 %v1477
        %v1479 = vand.u32 %v1077, 4294901760
        %1480 = vmatpush.msra.mxu0 %v1479
        %v1481 = vand.u32 %v1073, 4294901760
        %1482 = vmatpush.msra.mxu0 %v1481
        %v1483 = vand.u32 %v1136, 4294901760
        %v1484 = vsub.f32 %v1136, %v1483
        %v1485 = vand.u32 %v1484, 4294901760
        %v1486 = vsub.f32 %v1484, %v1485
        %v1487 = vand.u32 %v1486, 4294901760
        %1488 = vmatmul.f32.gmra.mxu0 %v1487
        %v1489 = vpop.f32.mrf.mxu0
        %v1490 = vadd.f32 %v1132, %v1489
        %1491 = vdwg.mxu0
        %1492 = vmatpush.msra.mxu0 0.0
        %1493 = vmatpush.msra.mxu0 0.0
        %v1494 = vand.u32 %v1125, 4294901760
        %v1495 = vsub.f32 %v1125, %v1494
        %v1496 = vand.u32 %v1495, 4294901760
        %v1497 = vsub.f32 %v1495, %v1496
        %v1498 = vand.u32 %v1497, 4294901760
        %1499 = vmatpush.msra.mxu0 %v1498
        %v1500 = vand.u32 %v1121, 4294901760
        %v1501 = vsub.f32 %v1121, %v1500
        %v1502 = vand.u32 %v1501, 4294901760
        %v1503 = vsub.f32 %v1501, %v1502
        %v1504 = vand.u32 %v1503, 4294901760
        %1505 = vmatpush.msra.mxu0 %v1504
        %v1506 = vand.u32 %v1117, 4294901760
        %v1507 = vsub.f32 %v1117, %v1506
        %v1508 = vand.u32 %v1507, 4294901760
        %v1509 = vsub.f32 %v1507, %v1508
        %v1510 = vand.u32 %v1509, 4294901760
        %1511 = vmatpush.msra.mxu0 %v1510
        %v1512 = vand.u32 %v1113, 4294901760
        %v1513 = vsub.f32 %v1113, %v1512
        %v1514 = vand.u32 %v1513, 4294901760
        %v1515 = vsub.f32 %v1513, %v1514
        %v1516 = vand.u32 %v1515, 4294901760
        %1517 = vmatpush.msra.mxu0 %v1516
        %v1518 = vand.u32 %v1109, 4294901760
        %v1519 = vsub.f32 %v1109, %v1518
        %v1520 = vand.u32 %v1519, 4294901760
        %v1521 = vsub.f32 %v1519, %v1520
        %v1522 = vand.u32 %v1521, 4294901760
        %1523 = vmatpush.msra.mxu0 %v1522
        %v1524 = vand.u32 %v1105, 4294901760
        %v1525 = vsub.f32 %v1105, %v1524
        %v1526 = vand.u32 %v1525, 4294901760
        %v1527 = vsub.f32 %v1525, %v1526
        %v1528 = vand.u32 %v1527, 4294901760
        %1529 = vmatpush.msra.mxu0 %v1528
        %v1530 = vand.u32 %v1101, 4294901760
        %v1531 = vsub.f32 %v1101, %v1530
        %v1532 = vand.u32 %v1531, 4294901760
        %v1533 = vsub.f32 %v1531, %v1532
        %v1534 = vand.u32 %v1533, 4294901760
        %1535 = vmatpush.msra.mxu0 %v1534
        %v1536 = vand.u32 %v1097, 4294901760
        %v1537 = vsub.f32 %v1097, %v1536
        %v1538 = vand.u32 %v1537, 4294901760
        %v1539 = vsub.f32 %v1537, %v1538
        %v1540 = vand.u32 %v1539, 4294901760
        %1541 = vmatpush.msra.mxu0 %v1540
        %v1542 = vand.u32 %v1093, 4294901760
        %v1543 = vsub.f32 %v1093, %v1542
        %v1544 = vand.u32 %v1543, 4294901760
        %v1545 = vsub.f32 %v1543, %v1544
        %v1546 = vand.u32 %v1545, 4294901760
        %1547 = vmatpush.msra.mxu0 %v1546
        %v1548 = vand.u32 %v1089, 4294901760
        %v1549 = vsub.f32 %v1089, %v1548
        %v1550 = vand.u32 %v1549, 4294901760
        %v1551 = vsub.f32 %v1549, %v1550
        %v1552 = vand.u32 %v1551, 4294901760
        %1553 = vmatpush.msra.mxu0 %v1552
        %v1554 = vand.u32 %v1085, 4294901760
        %v1555 = vsub.f32 %v1085, %v1554
        %v1556 = vand.u32 %v1555, 4294901760
        %v1557 = vsub.f32 %v1555, %v1556
        %v1558 = vand.u32 %v1557, 4294901760
        %1559 = vmatpush.msra.mxu0 %v1558
        %v1560 = vand.u32 %v1081, 4294901760
        %v1561 = vsub.f32 %v1081, %v1560
        %v1562 = vand.u32 %v1561, 4294901760
        %v1563 = vsub.f32 %v1561, %v1562
        %v1564 = vand.u32 %v1563, 4294901760
        %1565 = vmatpush.msra.mxu0 %v1564
        %v1566 = vand.u32 %v1077, 4294901760
        %v1567 = vsub.f32 %v1077, %v1566
        %v1568 = vand.u32 %v1567, 4294901760
        %v1569 = vsub.f32 %v1567, %v1568
        %v1570 = vand.u32 %v1569, 4294901760
        %1571 = vmatpush.msra.mxu0 %v1570
        %v1572 = vand.u32 %v1073, 4294901760
        %v1573 = vsub.f32 %v1073, %v1572
        %v1574 = vand.u32 %v1573, 4294901760
        %v1575 = vsub.f32 %v1573, %v1574
        %v1576 = vand.u32 %v1575, 4294901760
        %1577 = vmatpush.msra.mxu0 %v1576
        %v1578 = vand.u32 %v1136, 4294901760
        %1579 = vmatmul.f32.gmra.mxu0 %v1578
        %v1580 = vpop.f32.mrf.mxu0
        %v1581 = vadd.f32 %v1490, %v1580
        %1582 = vdwg.mxu0
        %1583 = vmatpush.msra.mxu0 0.0
        %1584 = vmatpush.msra.mxu0 0.0
        %v1585 = vand.u32 %v1125, 4294901760
        %v1586 = vsub.f32 %v1125, %v1585
        %1587 = vmatpush.msra.mxu0 %v1586
        %v1588 = vand.u32 %v1121, 4294901760
        %v1589 = vsub.f32 %v1121, %v1588
        %1590 = vmatpush.msra.mxu0 %v1589
        %v1591 = vand.u32 %v1117, 4294901760
        %v1592 = vsub.f32 %v1117, %v1591
        %1593 = vmatpush.msra.mxu0 %v1592
        %v1594 = vand.u32 %v1113, 4294901760
        %v1595 = vsub.f32 %v1113, %v1594
        %1596 = vmatpush.msra.mxu0 %v1595
        %v1597 = vand.u32 %v1109, 4294901760
        %v1598 = vsub.f32 %v1109, %v1597
        %1599 = vmatpush.msra.mxu0 %v1598
        %v1600 = vand.u32 %v1105, 4294901760
        %v1601 = vsub.f32 %v1105, %v1600
        %1602 = vmatpush.msra.mxu0 %v1601
        %v1603 = vand.u32 %v1101, 4294901760
        %v1604 = vsub.f32 %v1101, %v1603
        %1605 = vmatpush.msra.mxu0 %v1604
        %v1606 = vand.u32 %v1097, 4294901760
        %v1607 = vsub.f32 %v1097, %v1606
        %1608 = vmatpush.msra.mxu0 %v1607
        %v1609 = vand.u32 %v1093, 4294901760
        %v1610 = vsub.f32 %v1093, %v1609
        %1611 = vmatpush.msra.mxu0 %v1610
        %v1612 = vand.u32 %v1089, 4294901760
        %v1613 = vsub.f32 %v1089, %v1612
        %1614 = vmatpush.msra.mxu0 %v1613
        %v1615 = vand.u32 %v1085, 4294901760
        %v1616 = vsub.f32 %v1085, %v1615
        %1617 = vmatpush.msra.mxu0 %v1616
        %v1618 = vand.u32 %v1081, 4294901760
        %v1619 = vsub.f32 %v1081, %v1618
        %1620 = vmatpush.msra.mxu0 %v1619
        %v1621 = vand.u32 %v1077, 4294901760
        %v1622 = vsub.f32 %v1077, %v1621
        %1623 = vmatpush.msra.mxu0 %v1622
        %v1624 = vand.u32 %v1073, 4294901760
        %v1625 = vsub.f32 %v1073, %v1624
        %1626 = vmatpush.msra.mxu0 %v1625
        %v1627 = vand.u32 %v1136, 4294901760
        %v1628 = vsub.f32 %v1136, %v1627
        %1629 = vmatmul.f32.gmra.mxu0 %v1628
        %v1630 = vpop.f32.mrf.mxu0
        %v1631 = vadd.f32 %v1581, %v1630
        %1632 = vdwg.mxu0
        %1633 = vmatpush.msra.mxu0 0.0
        %1634 = vmatpush.msra.mxu0 0.0
        %v1635 = vand.u32 %v1125, 4294901760
        %1636 = vmatpush.msra.mxu0 %v1635
        %v1637 = vand.u32 %v1121, 4294901760
        %1638 = vmatpush.msra.mxu0 %v1637
        %v1639 = vand.u32 %v1117, 4294901760
        %1640 = vmatpush.msra.mxu0 %v1639
        %v1641 = vand.u32 %v1113, 4294901760
        %1642 = vmatpush.msra.mxu0 %v1641
        %v1643 = vand.u32 %v1109, 4294901760
        %1644 = vmatpush.msra.mxu0 %v1643
        %v1645 = vand.u32 %v1105, 4294901760
        %1646 = vmatpush.msra.mxu0 %v1645
        %v1647 = vand.u32 %v1101, 4294901760
        %1648 = vmatpush.msra.mxu0 %v1647
        %v1649 = vand.u32 %v1097, 4294901760
        %1650 = vmatpush.msra.mxu0 %v1649
        %v1651 = vand.u32 %v1093, 4294901760
        %1652 = vmatpush.msra.mxu0 %v1651
        %v1653 = vand.u32 %v1089, 4294901760
        %1654 = vmatpush.msra.mxu0 %v1653
        %v1655 = vand.u32 %v1085, 4294901760
        %1656 = vmatpush.msra.mxu0 %v1655
        %v1657 = vand.u32 %v1081, 4294901760
        %1658 = vmatpush.msra.mxu0 %v1657
        %v1659 = vand.u32 %v1077, 4294901760
        %1660 = vmatpush.msra.mxu0 %v1659
        %v1661 = vand.u32 %v1073, 4294901760
        %1662 = vmatpush.msra.mxu0 %v1661
        %v1663 = vand.u32 %v1136, 4294901760
        %v1664 = vsub.f32 %v1136, %v1663
        %v1665 = vand.u32 %v1664, 4294901760
        %1666 = vmatmul.f32.gmra.mxu0 %v1665
        %v1667 = vpop.f32.mrf.mxu0
        %v1668 = vadd.f32 %v1631, %v1667
        %1669 = vdwg.mxu0
        %1670 = vmatpush.msra.mxu0 0.0
        %1671 = vmatpush.msra.mxu0 0.0
        %v1672 = vand.u32 %v1125, 4294901760
        %v1673 = vsub.f32 %v1125, %v1672
        %v1674 = vand.u32 %v1673, 4294901760
        %1675 = vmatpush.msra.mxu0 %v1674
        %v1676 = vand.u32 %v1121, 4294901760
        %v1677 = vsub.f32 %v1121, %v1676
        %v1678 = vand.u32 %v1677, 4294901760
        %1679 = vmatpush.msra.mxu0 %v1678
        %v1680 = vand.u32 %v1117, 4294901760
        %v1681 = vsub.f32 %v1117, %v1680
        %v1682 = vand.u32 %v1681, 4294901760
        %1683 = vmatpush.msra.mxu0 %v1682
        %v1684 = vand.u32 %v1113, 4294901760
        %v1685 = vsub.f32 %v1113, %v1684
        %v1686 = vand.u32 %v1685, 4294901760
        %1687 = vmatpush.msra.mxu0 %v1686
        %v1688 = vand.u32 %v1109, 4294901760
        %v1689 = vsub.f32 %v1109, %v1688
        %v1690 = vand.u32 %v1689, 4294901760
        %1691 = vmatpush.msra.mxu0 %v1690
        %v1692 = vand.u32 %v1105, 4294901760
        %v1693 = vsub.f32 %v1105, %v1692
        %v1694 = vand.u32 %v1693, 4294901760
        %1695 = vmatpush.msra.mxu0 %v1694
        %v1696 = vand.u32 %v1101, 4294901760
        %v1697 = vsub.f32 %v1101, %v1696
        %v1698 = vand.u32 %v1697, 4294901760
        %1699 = vmatpush.msra.mxu0 %v1698
        %v1700 = vand.u32 %v1097, 4294901760
        %v1701 = vsub.f32 %v1097, %v1700
        %v1702 = vand.u32 %v1701, 4294901760
        %1703 = vmatpush.msra.mxu0 %v1702
        %v1704 = vand.u32 %v1093, 4294901760
        %v1705 = vsub.f32 %v1093, %v1704
        %v1706 = vand.u32 %v1705, 4294901760
        %1707 = vmatpush.msra.mxu0 %v1706
        %v1708 = vand.u32 %v1089, 4294901760
        %v1709 = vsub.f32 %v1089, %v1708
        %v1710 = vand.u32 %v1709, 4294901760
        %1711 = vmatpush.msra.mxu0 %v1710
        %v1712 = vand.u32 %v1085, 4294901760
        %v1713 = vsub.f32 %v1085, %v1712
        %v1714 = vand.u32 %v1713, 4294901760
        %1715 = vmatpush.msra.mxu0 %v1714
        %v1716 = vand.u32 %v1081, 4294901760
        %v1717 = vsub.f32 %v1081, %v1716
        %v1718 = vand.u32 %v1717, 4294901760
        %1719 = vmatpush.msra.mxu0 %v1718
        %v1720 = vand.u32 %v1077, 4294901760
        %v1721 = vsub.f32 %v1077, %v1720
        %v1722 = vand.u32 %v1721, 4294901760
        %1723 = vmatpush.msra.mxu0 %v1722
        %v1724 = vand.u32 %v1073, 4294901760
        %v1725 = vsub.f32 %v1073, %v1724
        %v1726 = vand.u32 %v1725, 4294901760
        %1727 = vmatpush.msra.mxu0 %v1726
        %v1728 = vand.u32 %v1136, 4294901760
        %1729 = vmatmul.f32.gmra.mxu0 %v1728
        %v1730 = vpop.f32.mrf.mxu0
        %v1731 = vadd.f32 %v1668, %v1730
        %1732 = vdwg.mxu0
        %1733 = vmatpush.msra.mxu0 0.0
        %1734 = vmatpush.msra.mxu0 0.0
        %v1735 = vand.u32 %v1125, 4294901760
        %1736 = vmatpush.msra.mxu0 %v1735
        %v1737 = vand.u32 %v1121, 4294901760
        %1738 = vmatpush.msra.mxu0 %v1737
        %v1739 = vand.u32 %v1117, 4294901760
        %1740 = vmatpush.msra.mxu0 %v1739
        %v1741 = vand.u32 %v1113, 4294901760
        %1742 = vmatpush.msra.mxu0 %v1741
        %v1743 = vand.u32 %v1109, 4294901760
        %1744 = vmatpush.msra.mxu0 %v1743
        %v1745 = vand.u32 %v1105, 4294901760
        %1746 = vmatpush.msra.mxu0 %v1745
        %v1747 = vand.u32 %v1101, 4294901760
        %1748 = vmatpush.msra.mxu0 %v1747
        %v1749 = vand.u32 %v1097, 4294901760
        %1750 = vmatpush.msra.mxu0 %v1749
        %v1751 = vand.u32 %v1093, 4294901760
        %1752 = vmatpush.msra.mxu0 %v1751
        %v1753 = vand.u32 %v1089, 4294901760
        %1754 = vmatpush.msra.mxu0 %v1753
        %v1755 = vand.u32 %v1085, 4294901760
        %1756 = vmatpush.msra.mxu0 %v1755
        %v1757 = vand.u32 %v1081, 4294901760
        %1758 = vmatpush.msra.mxu0 %v1757
        %v1759 = vand.u32 %v1077, 4294901760
        %1760 = vmatpush.msra.mxu0 %v1759
        %v1761 = vand.u32 %v1073, 4294901760
        %1762 = vmatpush.msra.mxu0 %v1761
        %v1763 = vand.u32 %v1136, 4294901760
        %1764 = vmatmul.f32.gmra.mxu0 %v1763
        %v1765 = vpop.f32.mrf.mxu0
        %v1766 = vadd.f32 %v1731, %v1765
        %1767 = vdwg.mxu0
        %1768 = vmatpush.msra.mxu0 0.0
        %1769 = vmatpush.msra.mxu0 0.0
        %v1770 = vand.u32 %v1126, 4294901760
        %1771 = vmatpush.msra.mxu0 %v1770
        %v1772 = vand.u32 %v1122, 4294901760
        %1773 = vmatpush.msra.mxu0 %v1772
        %v1774 = vand.u32 %v1118, 4294901760
        %1775 = vmatpush.msra.mxu0 %v1774
        %v1776 = vand.u32 %v1114, 4294901760
        %1777 = vmatpush.msra.mxu0 %v1776
        %v1778 = vand.u32 %v1110, 4294901760
        %1779 = vmatpush.msra.mxu0 %v1778
        %v1780 = vand.u32 %v1106, 4294901760
        %1781 = vmatpush.msra.mxu0 %v1780
        %v1782 = vand.u32 %v1102, 4294901760
        %1783 = vmatpush.msra.mxu0 %v1782
        %v1784 = vand.u32 %v1098, 4294901760
        %1785 = vmatpush.msra.mxu0 %v1784
        %v1786 = vand.u32 %v1094, 4294901760
        %1787 = vmatpush.msra.mxu0 %v1786
        %v1788 = vand.u32 %v1090, 4294901760
        %1789 = vmatpush.msra.mxu0 %v1788
        %v1790 = vand.u32 %v1086, 4294901760
        %1791 = vmatpush.msra.mxu0 %v1790
        %v1792 = vand.u32 %v1082, 4294901760
        %1793 = vmatpush.msra.mxu0 %v1792
        %v1794 = vand.u32 %v1078, 4294901760
        %1795 = vmatpush.msra.mxu0 %v1794
        %v1796 = vand.u32 %v1074, 4294901760
        %1797 = vmatpush.msra.mxu0 %v1796
        %v1798 = vand.u32 %v1136, 4294901760
        %v1799 = vsub.f32 %v1136, %v1798
        %v1800 = vand.u32 %v1799, 4294901760
        %v1801 = vsub.f32 %v1799, %v1800
        %v1802 = vand.u32 %v1801, 4294901760
        %1803 = vmatmul.f32.gmra.mxu0 %v1802
        %v1804 = vpop.f32.mrf.mxu0
        %v1805 = vadd.f32 %v1132, %v1804
        %1806 = vdwg.mxu0
        %1807 = vmatpush.msra.mxu0 0.0
        %1808 = vmatpush.msra.mxu0 0.0
        %v1809 = vand.u32 %v1126, 4294901760
        %v1810 = vsub.f32 %v1126, %v1809
        %v1811 = vand.u32 %v1810, 4294901760
        %v1812 = vsub.f32 %v1810, %v1811
        %v1813 = vand.u32 %v1812, 4294901760
        %1814 = vmatpush.msra.mxu0 %v1813
        %v1815 = vand.u32 %v1122, 4294901760
        %v1816 = vsub.f32 %v1122, %v1815
        %v1817 = vand.u32 %v1816, 4294901760
        %v1818 = vsub.f32 %v1816, %v1817
        %v1819 = vand.u32 %v1818, 4294901760
        %1820 = vmatpush.msra.mxu0 %v1819
        %v1821 = vand.u32 %v1118, 4294901760
        %v1822 = vsub.f32 %v1118, %v1821
        %v1823 = vand.u32 %v1822, 4294901760
        %v1824 = vsub.f32 %v1822, %v1823
        %v1825 = vand.u32 %v1824, 4294901760
        %1826 = vmatpush.msra.mxu0 %v1825
        %v1827 = vand.u32 %v1114, 4294901760
        %v1828 = vsub.f32 %v1114, %v1827
        %v1829 = vand.u32 %v1828, 4294901760
        %v1830 = vsub.f32 %v1828, %v1829
        %v1831 = vand.u32 %v1830, 4294901760
        %1832 = vmatpush.msra.mxu0 %v1831
        %v1833 = vand.u32 %v1110, 4294901760
        %v1834 = vsub.f32 %v1110, %v1833
        %v1835 = vand.u32 %v1834, 4294901760
        %v1836 = vsub.f32 %v1834, %v1835
        %v1837 = vand.u32 %v1836, 4294901760
        %1838 = vmatpush.msra.mxu0 %v1837
        %v1839 = vand.u32 %v1106, 4294901760
        %v1840 = vsub.f32 %v1106, %v1839
        %v1841 = vand.u32 %v1840, 4294901760
        %v1842 = vsub.f32 %v1840, %v1841
        %v1843 = vand.u32 %v1842, 4294901760
        %1844 = vmatpush.msra.mxu0 %v1843
        %v1845 = vand.u32 %v1102, 4294901760
        %v1846 = vsub.f32 %v1102, %v1845
        %v1847 = vand.u32 %v1846, 4294901760
        %v1848 = vsub.f32 %v1846, %v1847
        %v1849 = vand.u32 %v1848, 4294901760
        %1850 = vmatpush.msra.mxu0 %v1849
        %v1851 = vand.u32 %v1098, 4294901760
        %v1852 = vsub.f32 %v1098, %v1851
        %v1853 = vand.u32 %v1852, 4294901760
        %v1854 = vsub.f32 %v1852, %v1853
        %v1855 = vand.u32 %v1854, 4294901760
        %1856 = vmatpush.msra.mxu0 %v1855
        %v1857 = vand.u32 %v1094, 4294901760
        %v1858 = vsub.f32 %v1094, %v1857
        %v1859 = vand.u32 %v1858, 4294901760
        %v1860 = vsub.f32 %v1858, %v1859
        %v1861 = vand.u32 %v1860, 4294901760
        %1862 = vmatpush.msra.mxu0 %v1861
        %v1863 = vand.u32 %v1090, 4294901760
        %v1864 = vsub.f32 %v1090, %v1863
        %v1865 = vand.u32 %v1864, 4294901760
        %v1866 = vsub.f32 %v1864, %v1865
        %v1867 = vand.u32 %v1866, 4294901760
        %1868 = vmatpush.msra.mxu0 %v1867
        %v1869 = vand.u32 %v1086, 4294901760
        %v1870 = vsub.f32 %v1086, %v1869
        %v1871 = vand.u32 %v1870, 4294901760
        %v1872 = vsub.f32 %v1870, %v1871
        %v1873 = vand.u32 %v1872, 4294901760
        %1874 = vmatpush.msra.mxu0 %v1873
        %v1875 = vand.u32 %v1082, 4294901760
        %v1876 = vsub.f32 %v1082, %v1875
        %v1877 = vand.u32 %v1876, 4294901760
        %v1878 = vsub.f32 %v1876, %v1877
        %v1879 = vand.u32 %v1878, 4294901760
        %1880 = vmatpush.msra.mxu0 %v1879
        %v1881 = vand.u32 %v1078, 4294901760
        %v1882 = vsub.f32 %v1078, %v1881
        %v1883 = vand.u32 %v1882, 4294901760
        %v1884 = vsub.f32 %v1882, %v1883
        %v1885 = vand.u32 %v1884, 4294901760
        %1886 = vmatpush.msra.mxu0 %v1885
        %v1887 = vand.u32 %v1074, 4294901760
        %v1888 = vsub.f32 %v1074, %v1887
        %v1889 = vand.u32 %v1888, 4294901760
        %v1890 = vsub.f32 %v1888, %v1889
        %v1891 = vand.u32 %v1890, 4294901760
        %1892 = vmatpush.msra.mxu0 %v1891
        %v1893 = vand.u32 %v1136, 4294901760
        %1894 = vmatmul.f32.gmra.mxu0 %v1893
        %v1895 = vpop.f32.mrf.mxu0
        %v1896 = vadd.f32 %v1805, %v1895
        %1897 = vdwg.mxu0
        %1898 = vmatpush.msra.mxu0 0.0
        %1899 = vmatpush.msra.mxu0 0.0
        %v1900 = vand.u32 %v1126, 4294901760
        %v1901 = vsub.f32 %v1126, %v1900
        %1902 = vmatpush.msra.mxu0 %v1901
        %v1903 = vand.u32 %v1122, 4294901760
        %v1904 = vsub.f32 %v1122, %v1903
        %1905 = vmatpush.msra.mxu0 %v1904
        %v1906 = vand.u32 %v1118, 4294901760
        %v1907 = vsub.f32 %v1118, %v1906
        %1908 = vmatpush.msra.mxu0 %v1907
        %v1909 = vand.u32 %v1114, 4294901760
        %v1910 = vsub.f32 %v1114, %v1909
        %1911 = vmatpush.msra.mxu0 %v1910
        %v1912 = vand.u32 %v1110, 4294901760
        %v1913 = vsub.f32 %v1110, %v1912
        %1914 = vmatpush.msra.mxu0 %v1913
        %v1915 = vand.u32 %v1106, 4294901760
        %v1916 = vsub.f32 %v1106, %v1915
        %1917 = vmatpush.msra.mxu0 %v1916
        %v1918 = vand.u32 %v1102, 4294901760
        %v1919 = vsub.f32 %v1102, %v1918
        %1920 = vmatpush.msra.mxu0 %v1919
        %v1921 = vand.u32 %v1098, 4294901760
        %v1922 = vsub.f32 %v1098, %v1921
        %1923 = vmatpush.msra.mxu0 %v1922
        %v1924 = vand.u32 %v1094, 4294901760
        %v1925 = vsub.f32 %v1094, %v1924
        %1926 = vmatpush.msra.mxu0 %v1925
        %v1927 = vand.u32 %v1090, 4294901760
        %v1928 = vsub.f32 %v1090, %v1927
        %1929 = vmatpush.msra.mxu0 %v1928
        %v1930 = vand.u32 %v1086, 4294901760
        %v1931 = vsub.f32 %v1086, %v1930
        %1932 = vmatpush.msra.mxu0 %v1931
        %v1933 = vand.u32 %v1082, 4294901760
        %v1934 = vsub.f32 %v1082, %v1933
        %1935 = vmatpush.msra.mxu0 %v1934
        %v1936 = vand.u32 %v1078, 4294901760
        %v1937 = vsub.f32 %v1078, %v1936
        %1938 = vmatpush.msra.mxu0 %v1937
        %v1939 = vand.u32 %v1074, 4294901760
        %v1940 = vsub.f32 %v1074, %v1939
        %1941 = vmatpush.msra.mxu0 %v1940
        %v1942 = vand.u32 %v1136, 4294901760
        %v1943 = vsub.f32 %v1136, %v1942
        %1944 = vmatmul.f32.gmra.mxu0 %v1943
        %v1945 = vpop.f32.mrf.mxu0
        %v1946 = vadd.f32 %v1896, %v1945
        %1947 = vdwg.mxu0
        %1948 = vmatpush.msra.mxu0 0.0
        %1949 = vmatpush.msra.mxu0 0.0
        %v1950 = vand.u32 %v1126, 4294901760
        %1951 = vmatpush.msra.mxu0 %v1950
        %v1952 = vand.u32 %v1122, 4294901760
        %1953 = vmatpush.msra.mxu0 %v1952
        %v1954 = vand.u32 %v1118, 4294901760
        %1955 = vmatpush.msra.mxu0 %v1954
        %v1956 = vand.u32 %v1114, 4294901760
        %1957 = vmatpush.msra.mxu0 %v1956
        %v1958 = vand.u32 %v1110, 4294901760
        %1959 = vmatpush.msra.mxu0 %v1958
        %v1960 = vand.u32 %v1106, 4294901760
        %1961 = vmatpush.msra.mxu0 %v1960
        %v1962 = vand.u32 %v1102, 4294901760
        %1963 = vmatpush.msra.mxu0 %v1962
        %v1964 = vand.u32 %v1098, 4294901760
        %1965 = vmatpush.msra.mxu0 %v1964
        %v1966 = vand.u32 %v1094, 4294901760
        %1967 = vmatpush.msra.mxu0 %v1966
        %v1968 = vand.u32 %v1090, 4294901760
        %1969 = vmatpush.msra.mxu0 %v1968
        %v1970 = vand.u32 %v1086, 4294901760
        %1971 = vmatpush.msra.mxu0 %v1970
        %v1972 = vand.u32 %v1082, 4294901760
        %1973 = vmatpush.msra.mxu0 %v1972
        %v1974 = vand.u32 %v1078, 4294901760
        %1975 = vmatpush.msra.mxu0 %v1974
        %v1976 = vand.u32 %v1074, 4294901760
        %1977 = vmatpush.msra.mxu0 %v1976
        %v1978 = vand.u32 %v1136, 4294901760
        %v1979 = vsub.f32 %v1136, %v1978
        %v1980 = vand.u32 %v1979, 4294901760
        %1981 = vmatmul.f32.gmra.mxu0 %v1980
        %v1982 = vpop.f32.mrf.mxu0
        %v1983 = vadd.f32 %v1946, %v1982
        %1984 = vdwg.mxu0
        %1985 = vmatpush.msra.mxu0 0.0
        %1986 = vmatpush.msra.mxu0 0.0
        %v1987 = vand.u32 %v1126, 4294901760
        %v1988 = vsub.f32 %v1126, %v1987
        %v1989 = vand.u32 %v1988, 4294901760
        %1990 = vmatpush.msra.mxu0 %v1989
        %v1991 = vand.u32 %v1122, 4294901760
        %v1992 = vsub.f32 %v1122, %v1991
        %v1993 = vand.u32 %v1992, 4294901760
        %1994 = vmatpush.msra.mxu0 %v1993
        %v1995 = vand.u32 %v1118, 4294901760
        %v1996 = vsub.f32 %v1118, %v1995
        %v1997 = vand.u32 %v1996, 4294901760
        %1998 = vmatpush.msra.mxu0 %v1997
        %v1999 = vand.u32 %v1114, 4294901760
        %v2000 = vsub.f32 %v1114, %v1999
        %v2001 = vand.u32 %v2000, 4294901760
        %2002 = vmatpush.msra.mxu0 %v2001
        %v2003 = vand.u32 %v1110, 4294901760
        %v2004 = vsub.f32 %v1110, %v2003
        %v2005 = vand.u32 %v2004, 4294901760
        %2006 = vmatpush.msra.mxu0 %v2005
        %v2007 = vand.u32 %v1106, 4294901760
        %v2008 = vsub.f32 %v1106, %v2007
        %v2009 = vand.u32 %v2008, 4294901760
        %2010 = vmatpush.msra.mxu0 %v2009
        %v2011 = vand.u32 %v1102, 4294901760
        %v2012 = vsub.f32 %v1102, %v2011
        %v2013 = vand.u32 %v2012, 4294901760
        %2014 = vmatpush.msra.mxu0 %v2013
        %v2015 = vand.u32 %v1098, 4294901760
        %v2016 = vsub.f32 %v1098, %v2015
        %v2017 = vand.u32 %v2016, 4294901760
        %2018 = vmatpush.msra.mxu0 %v2017
        %v2019 = vand.u32 %v1094, 4294901760
        %v2020 = vsub.f32 %v1094, %v2019
        %v2021 = vand.u32 %v2020, 4294901760
        %2022 = vmatpush.msra.mxu0 %v2021
        %v2023 = vand.u32 %v1090, 4294901760
        %v2024 = vsub.f32 %v1090, %v2023
        %v2025 = vand.u32 %v2024, 4294901760
        %2026 = vmatpush.msra.mxu0 %v2025
        %v2027 = vand.u32 %v1086, 4294901760
        %v2028 = vsub.f32 %v1086, %v2027
        %v2029 = vand.u32 %v2028, 4294901760
        %2030 = vmatpush.msra.mxu0 %v2029
        %v2031 = vand.u32 %v1082, 4294901760
        %v2032 = vsub.f32 %v1082, %v2031
        %v2033 = vand.u32 %v2032, 4294901760
        %2034 = vmatpush.msra.mxu0 %v2033
        %v2035 = vand.u32 %v1078, 4294901760
        %v2036 = vsub.f32 %v1078, %v2035
        %v2037 = vand.u32 %v2036, 4294901760
        %2038 = vmatpush.msra.mxu0 %v2037
        %v2039 = vand.u32 %v1074, 4294901760
        %v2040 = vsub.f32 %v1074, %v2039
        %v2041 = vand.u32 %v2040, 4294901760
        %2042 = vmatpush.msra.mxu0 %v2041
        %v2043 = vand.u32 %v1136, 4294901760
        %2044 = vmatmul.f32.gmra.mxu0 %v2043
        %v2045 = vpop.f32.mrf.mxu0
        %v2046 = vadd.f32 %v1983, %v2045
        %2047 = vdwg.mxu0
        %2048 = vmatpush.msra.mxu0 0.0
        %2049 = vmatpush.msra.mxu0 0.0
        %v2050 = vand.u32 %v1126, 4294901760
        %2051 = vmatpush.msra.mxu0 %v2050
        %v2052 = vand.u32 %v1122, 4294901760
        %2053 = vmatpush.msra.mxu0 %v2052
        %v2054 = vand.u32 %v1118, 4294901760
        %2055 = vmatpush.msra.mxu0 %v2054
        %v2056 = vand.u32 %v1114, 4294901760
        %2057 = vmatpush.msra.mxu0 %v2056
        %v2058 = vand.u32 %v1110, 4294901760
        %2059 = vmatpush.msra.mxu0 %v2058
        %v2060 = vand.u32 %v1106, 4294901760
        %2061 = vmatpush.msra.mxu0 %v2060
        %v2062 = vand.u32 %v1102, 4294901760
        %2063 = vmatpush.msra.mxu0 %v2062
        %v2064 = vand.u32 %v1098, 4294901760
        %2065 = vmatpush.msra.mxu0 %v2064
        %v2066 = vand.u32 %v1094, 4294901760
        %2067 = vmatpush.msra.mxu0 %v2066
        %v2068 = vand.u32 %v1090, 4294901760
        %2069 = vmatpush.msra.mxu0 %v2068
        %v2070 = vand.u32 %v1086, 4294901760
        %2071 = vmatpush.msra.mxu0 %v2070
        %v2072 = vand.u32 %v1082, 4294901760
        %2073 = vmatpush.msra.mxu0 %v2072
        %v2074 = vand.u32 %v1078, 4294901760
        %2075 = vmatpush.msra.mxu0 %v2074
        %v2076 = vand.u32 %v1074, 4294901760
        %2077 = vmatpush.msra.mxu0 %v2076
        %v2078 = vand.u32 %v1136, 4294901760
        %2079 = vmatmul.f32.gmra.mxu0 %v2078
        %v2080 = vpop.f32.mrf.mxu0
        %v2081 = vadd.f32 %v2046, %v2080
        %2082 = vdwg.mxu0
        %2083 = vmatpush.msra.mxu0 0.0
        %2084 = vmatpush.msra.mxu0 0.0
        %v2085 = vand.u32 %v1127, 4294901760
        %2086 = vmatpush.msra.mxu0 %v2085
        %v2087 = vand.u32 %v1123, 4294901760
        %2088 = vmatpush.msra.mxu0 %v2087
        %v2089 = vand.u32 %v1119, 4294901760
        %2090 = vmatpush.msra.mxu0 %v2089
        %v2091 = vand.u32 %v1115, 4294901760
        %2092 = vmatpush.msra.mxu0 %v2091
        %v2093 = vand.u32 %v1111, 4294901760
        %2094 = vmatpush.msra.mxu0 %v2093
        %v2095 = vand.u32 %v1107, 4294901760
        %2096 = vmatpush.msra.mxu0 %v2095
        %v2097 = vand.u32 %v1103, 4294901760
        %2098 = vmatpush.msra.mxu0 %v2097
        %v2099 = vand.u32 %v1099, 4294901760
        %2100 = vmatpush.msra.mxu0 %v2099
        %v2101 = vand.u32 %v1095, 4294901760
        %2102 = vmatpush.msra.mxu0 %v2101
        %v2103 = vand.u32 %v1091, 4294901760
        %2104 = vmatpush.msra.mxu0 %v2103
        %v2105 = vand.u32 %v1087, 4294901760
        %2106 = vmatpush.msra.mxu0 %v2105
        %v2107 = vand.u32 %v1083, 4294901760
        %2108 = vmatpush.msra.mxu0 %v2107
        %v2109 = vand.u32 %v1079, 4294901760
        %2110 = vmatpush.msra.mxu0 %v2109
        %v2111 = vand.u32 %v1075, 4294901760
        %2112 = vmatpush.msra.mxu0 %v2111
        %v2113 = vand.u32 %v1136, 4294901760
        %v2114 = vsub.f32 %v1136, %v2113
        %v2115 = vand.u32 %v2114, 4294901760
        %v2116 = vsub.f32 %v2114, %v2115
        %v2117 = vand.u32 %v2116, 4294901760
        %2118 = vmatmul.f32.gmra.mxu0 %v2117
        %v2119 = vpop.f32.mrf.mxu0
        %v2120 = vadd.f32 %v1132, %v2119
        %2121 = vdwg.mxu0
        %2122 = vmatpush.msra.mxu0 0.0
        %2123 = vmatpush.msra.mxu0 0.0
        %v2124 = vand.u32 %v1127, 4294901760
        %v2125 = vsub.f32 %v1127, %v2124
        %v2126 = vand.u32 %v2125, 4294901760
        %v2127 = vsub.f32 %v2125, %v2126
        %v2128 = vand.u32 %v2127, 4294901760
        %2129 = vmatpush.msra.mxu0 %v2128
        %v2130 = vand.u32 %v1123, 4294901760
        %v2131 = vsub.f32 %v1123, %v2130
        %v2132 = vand.u32 %v2131, 4294901760
        %v2133 = vsub.f32 %v2131, %v2132
        %v2134 = vand.u32 %v2133, 4294901760
        %2135 = vmatpush.msra.mxu0 %v2134
        %v2136 = vand.u32 %v1119, 4294901760
        %v2137 = vsub.f32 %v1119, %v2136
        %v2138 = vand.u32 %v2137, 4294901760
        %v2139 = vsub.f32 %v2137, %v2138
        %v2140 = vand.u32 %v2139, 4294901760
        %2141 = vmatpush.msra.mxu0 %v2140
        %v2142 = vand.u32 %v1115, 4294901760
        %v2143 = vsub.f32 %v1115, %v2142
        %v2144 = vand.u32 %v2143, 4294901760
        %v2145 = vsub.f32 %v2143, %v2144
        %v2146 = vand.u32 %v2145, 4294901760
        %2147 = vmatpush.msra.mxu0 %v2146
        %v2148 = vand.u32 %v1111, 4294901760
        %v2149 = vsub.f32 %v1111, %v2148
        %v2150 = vand.u32 %v2149, 4294901760
        %v2151 = vsub.f32 %v2149, %v2150
        %v2152 = vand.u32 %v2151, 4294901760
        %2153 = vmatpush.msra.mxu0 %v2152
        %v2154 = vand.u32 %v1107, 4294901760
        %v2155 = vsub.f32 %v1107, %v2154
        %v2156 = vand.u32 %v2155, 4294901760
        %v2157 = vsub.f32 %v2155, %v2156
        %v2158 = vand.u32 %v2157, 4294901760
        %2159 = vmatpush.msra.mxu0 %v2158
        %v2160 = vand.u32 %v1103, 4294901760
        %v2161 = vsub.f32 %v1103, %v2160
        %v2162 = vand.u32 %v2161, 4294901760
        %v2163 = vsub.f32 %v2161, %v2162
        %v2164 = vand.u32 %v2163, 4294901760
        %2165 = vmatpush.msra.mxu0 %v2164
        %v2166 = vand.u32 %v1099, 4294901760
        %v2167 = vsub.f32 %v1099, %v2166
        %v2168 = vand.u32 %v2167, 4294901760
        %v2169 = vsub.f32 %v2167, %v2168
        %v2170 = vand.u32 %v2169, 4294901760
        %2171 = vmatpush.msra.mxu0 %v2170
        %v2172 = vand.u32 %v1095, 4294901760
        %v2173 = vsub.f32 %v1095, %v2172
        %v2174 = vand.u32 %v2173, 4294901760
        %v2175 = vsub.f32 %v2173, %v2174
        %v2176 = vand.u32 %v2175, 4294901760
        %2177 = vmatpush.msra.mxu0 %v2176
        %v2178 = vand.u32 %v1091, 4294901760
        %v2179 = vsub.f32 %v1091, %v2178
        %v2180 = vand.u32 %v2179, 4294901760
        %v2181 = vsub.f32 %v2179, %v2180
        %v2182 = vand.u32 %v2181, 4294901760
        %2183 = vmatpush.msra.mxu0 %v2182
        %v2184 = vand.u32 %v1087, 4294901760
        %v2185 = vsub.f32 %v1087, %v2184
        %v2186 = vand.u32 %v2185, 4294901760
        %v2187 = vsub.f32 %v2185, %v2186
        %v2188 = vand.u32 %v2187, 4294901760
        %2189 = vmatpush.msra.mxu0 %v2188
        %v2190 = vand.u32 %v1083, 4294901760
        %v2191 = vsub.f32 %v1083, %v2190
        %v2192 = vand.u32 %v2191, 4294901760
        %v2193 = vsub.f32 %v2191, %v2192
        %v2194 = vand.u32 %v2193, 4294901760
        %2195 = vmatpush.msra.mxu0 %v2194
        %v2196 = vand.u32 %v1079, 4294901760
        %v2197 = vsub.f32 %v1079, %v2196
        %v2198 = vand.u32 %v2197, 4294901760
        %v2199 = vsub.f32 %v2197, %v2198
        %v2200 = vand.u32 %v2199, 4294901760
        %2201 = vmatpush.msra.mxu0 %v2200
        %v2202 = vand.u32 %v1075, 4294901760
        %v2203 = vsub.f32 %v1075, %v2202
        %v2204 = vand.u32 %v2203, 4294901760
        %v2205 = vsub.f32 %v2203, %v2204
        %v2206 = vand.u32 %v2205, 4294901760
        %2207 = vmatpush.msra.mxu0 %v2206
        %v2208 = vand.u32 %v1136, 4294901760
        %2209 = vmatmul.f32.gmra.mxu0 %v2208
        %v2210 = vpop.f32.mrf.mxu0
        %v2211 = vadd.f32 %v2120, %v2210
        %2212 = vdwg.mxu0
        %2213 = vmatpush.msra.mxu0 0.0
        %2214 = vmatpush.msra.mxu0 0.0
        %v2215 = vand.u32 %v1127, 4294901760
        %v2216 = vsub.f32 %v1127, %v2215
        %2217 = vmatpush.msra.mxu0 %v2216
        %v2218 = vand.u32 %v1123, 4294901760
        %v2219 = vsub.f32 %v1123, %v2218
        %2220 = vmatpush.msra.mxu0 %v2219
        %v2221 = vand.u32 %v1119, 4294901760
        %v2222 = vsub.f32 %v1119, %v2221
        %2223 = vmatpush.msra.mxu0 %v2222
        %v2224 = vand.u32 %v1115, 4294901760
        %v2225 = vsub.f32 %v1115, %v2224
        %2226 = vmatpush.msra.mxu0 %v2225
        %v2227 = vand.u32 %v1111, 4294901760
        %v2228 = vsub.f32 %v1111, %v2227
        %2229 = vmatpush.msra.mxu0 %v2228
        %v2230 = vand.u32 %v1107, 4294901760
        %v2231 = vsub.f32 %v1107, %v2230
        %2232 = vmatpush.msra.mxu0 %v2231
        %v2233 = vand.u32 %v1103, 4294901760
        %v2234 = vsub.f32 %v1103, %v2233
        %2235 = vmatpush.msra.mxu0 %v2234
        %v2236 = vand.u32 %v1099, 4294901760
        %v2237 = vsub.f32 %v1099, %v2236
        %2238 = vmatpush.msra.mxu0 %v2237
        %v2239 = vand.u32 %v1095, 4294901760
        %v2240 = vsub.f32 %v1095, %v2239
        %2241 = vmatpush.msra.mxu0 %v2240
        %v2242 = vand.u32 %v1091, 4294901760
        %v2243 = vsub.f32 %v1091, %v2242
        %2244 = vmatpush.msra.mxu0 %v2243
        %v2245 = vand.u32 %v1087, 4294901760
        %v2246 = vsub.f32 %v1087, %v2245
        %2247 = vmatpush.msra.mxu0 %v2246
        %v2248 = vand.u32 %v1083, 4294901760
        %v2249 = vsub.f32 %v1083, %v2248
        %2250 = vmatpush.msra.mxu0 %v2249
        %v2251 = vand.u32 %v1079, 4294901760
        %v2252 = vsub.f32 %v1079, %v2251
        %2253 = vmatpush.msra.mxu0 %v2252
        %v2254 = vand.u32 %v1075, 4294901760
        %v2255 = vsub.f32 %v1075, %v2254
        %2256 = vmatpush.msra.mxu0 %v2255
        %v2257 = vand.u32 %v1136, 4294901760
        %v2258 = vsub.f32 %v1136, %v2257
        %2259 = vmatmul.f32.gmra.mxu0 %v2258
        %v2260 = vpop.f32.mrf.mxu0
        %v2261 = vadd.f32 %v2211, %v2260
        %2262 = vdwg.mxu0
        %2263 = vmatpush.msra.mxu0 0.0
        %2264 = vmatpush.msra.mxu0 0.0
        %v2265 = vand.u32 %v1127, 4294901760
        %2266 = vmatpush.msra.mxu0 %v2265
        %v2267 = vand.u32 %v1123, 4294901760
        %2268 = vmatpush.msra.mxu0 %v2267
        %v2269 = vand.u32 %v1119, 4294901760
        %2270 = vmatpush.msra.mxu0 %v2269
        %v2271 = vand.u32 %v1115, 4294901760
        %2272 = vmatpush.msra.mxu0 %v2271
        %v2273 = vand.u32 %v1111, 4294901760
        %2274 = vmatpush.msra.mxu0 %v2273
        %v2275 = vand.u32 %v1107, 4294901760
        %2276 = vmatpush.msra.mxu0 %v2275
        %v2277 = vand.u32 %v1103, 4294901760
        %2278 = vmatpush.msra.mxu0 %v2277
        %v2279 = vand.u32 %v1099, 4294901760
        %2280 = vmatpush.msra.mxu0 %v2279
        %v2281 = vand.u32 %v1095, 4294901760
        %2282 = vmatpush.msra.mxu0 %v2281
        %v2283 = vand.u32 %v1091, 4294901760
        %2284 = vmatpush.msra.mxu0 %v2283
        %v2285 = vand.u32 %v1087, 4294901760
        %2286 = vmatpush.msra.mxu0 %v2285
        %v2287 = vand.u32 %v1083, 4294901760
        %2288 = vmatpush.msra.mxu0 %v2287
        %v2289 = vand.u32 %v1079, 4294901760
        %2290 = vmatpush.msra.mxu0 %v2289
        %v2291 = vand.u32 %v1075, 4294901760
        %2292 = vmatpush.msra.mxu0 %v2291
        %v2293 = vand.u32 %v1136, 4294901760
        %v2294 = vsub.f32 %v1136, %v2293
        %v2295 = vand.u32 %v2294, 4294901760
        %2296 = vmatmul.f32.gmra.mxu0 %v2295
        %v2297 = vpop.f32.mrf.mxu0
        %v2298 = vadd.f32 %v2261, %v2297
        %2299 = vdwg.mxu0
        %2300 = vmatpush.msra.mxu0 0.0
        %2301 = vmatpush.msra.mxu0 0.0
        %v2302 = vand.u32 %v1127, 4294901760
        %v2303 = vsub.f32 %v1127, %v2302
        %v2304 = vand.u32 %v2303, 4294901760
        %2305 = vmatpush.msra.mxu0 %v2304
        %v2306 = vand.u32 %v1123, 4294901760
        %v2307 = vsub.f32 %v1123, %v2306
        %v2308 = vand.u32 %v2307, 4294901760
        %2309 = vmatpush.msra.mxu0 %v2308
        %v2310 = vand.u32 %v1119, 4294901760
        %v2311 = vsub.f32 %v1119, %v2310
        %v2312 = vand.u32 %v2311, 4294901760
        %2313 = vmatpush.msra.mxu0 %v2312
        %v2314 = vand.u32 %v1115, 4294901760
        %v2315 = vsub.f32 %v1115, %v2314
        %v2316 = vand.u32 %v2315, 4294901760
        %2317 = vmatpush.msra.mxu0 %v2316
        %v2318 = vand.u32 %v1111, 4294901760
        %v2319 = vsub.f32 %v1111, %v2318
        %v2320 = vand.u32 %v2319, 4294901760
        %2321 = vmatpush.msra.mxu0 %v2320
        %v2322 = vand.u32 %v1107, 4294901760
        %v2323 = vsub.f32 %v1107, %v2322
        %v2324 = vand.u32 %v2323, 4294901760
        %2325 = vmatpush.msra.mxu0 %v2324
        %v2326 = vand.u32 %v1103, 4294901760
        %v2327 = vsub.f32 %v1103, %v2326
        %v2328 = vand.u32 %v2327, 4294901760
        %2329 = vmatpush.msra.mxu0 %v2328
        %v2330 = vand.u32 %v1099, 4294901760
        %v2331 = vsub.f32 %v1099, %v2330
        %v2332 = vand.u32 %v2331, 4294901760
        %2333 = vmatpush.msra.mxu0 %v2332
        %v2334 = vand.u32 %v1095, 4294901760
        %v2335 = vsub.f32 %v1095, %v2334
        %v2336 = vand.u32 %v2335, 4294901760
        %2337 = vmatpush.msra.mxu0 %v2336
        %v2338 = vand.u32 %v1091, 4294901760
        %v2339 = vsub.f32 %v1091, %v2338
        %v2340 = vand.u32 %v2339, 4294901760
        %2341 = vmatpush.msra.mxu0 %v2340
        %v2342 = vand.u32 %v1087, 4294901760
        %v2343 = vsub.f32 %v1087, %v2342
        %v2344 = vand.u32 %v2343, 4294901760
        %2345 = vmatpush.msra.mxu0 %v2344
        %v2346 = vand.u32 %v1083, 4294901760
        %v2347 = vsub.f32 %v1083, %v2346
        %v2348 = vand.u32 %v2347, 4294901760
        %2349 = vmatpush.msra.mxu0 %v2348
        %v2350 = vand.u32 %v1079, 4294901760
        %v2351 = vsub.f32 %v1079, %v2350
        %v2352 = vand.u32 %v2351, 4294901760
        %2353 = vmatpush.msra.mxu0 %v2352
        %v2354 = vand.u32 %v1075, 4294901760
        %v2355 = vsub.f32 %v1075, %v2354
        %v2356 = vand.u32 %v2355, 4294901760
        %2357 = vmatpush.msra.mxu0 %v2356
        %v2358 = vand.u32 %v1136, 4294901760
        %2359 = vmatmul.f32.gmra.mxu0 %v2358
        %v2360 = vpop.f32.mrf.mxu0
        %v2361 = vadd.f32 %v2298, %v2360
        %2362 = vdwg.mxu0
        %2363 = vmatpush.msra.mxu0 0.0
        %2364 = vmatpush.msra.mxu0 0.0
        %v2365 = vand.u32 %v1127, 4294901760
        %2366 = vmatpush.msra.mxu0 %v2365
        %v2367 = vand.u32 %v1123, 4294901760
        %2368 = vmatpush.msra.mxu0 %v2367
        %v2369 = vand.u32 %v1119, 4294901760
        %2370 = vmatpush.msra.mxu0 %v2369
        %v2371 = vand.u32 %v1115, 4294901760
        %2372 = vmatpush.msra.mxu0 %v2371
        %v2373 = vand.u32 %v1111, 4294901760
        %2374 = vmatpush.msra.mxu0 %v2373
        %v2375 = vand.u32 %v1107, 4294901760
        %2376 = vmatpush.msra.mxu0 %v2375
        %v2377 = vand.u32 %v1103, 4294901760
        %2378 = vmatpush.msra.mxu0 %v2377
        %v2379 = vand.u32 %v1099, 4294901760
        %2380 = vmatpush.msra.mxu0 %v2379
        %v2381 = vand.u32 %v1095, 4294901760
        %2382 = vmatpush.msra.mxu0 %v2381
        %v2383 = vand.u32 %v1091, 4294901760
        %2384 = vmatpush.msra.mxu0 %v2383
        %v2385 = vand.u32 %v1087, 4294901760
        %2386 = vmatpush.msra.mxu0 %v2385
        %v2387 = vand.u32 %v1083, 4294901760
        %2388 = vmatpush.msra.mxu0 %v2387
        %v2389 = vand.u32 %v1079, 4294901760
        %2390 = vmatpush.msra.mxu0 %v2389
        %v2391 = vand.u32 %v1075, 4294901760
        %2392 = vmatpush.msra.mxu0 %v2391
        %v2393 = vand.u32 %v1136, 4294901760
        %2394 = vmatmul.f32.gmra.mxu0 %v2393
        %v2395 = vpop.f32.mrf.mxu0
        %v2396 = vadd.f32 %v2361, %v2395
        %2397 = vdwg.mxu0
        %vm2398 = vcmp.ge.f32.partialorder %v1451, 0.0
        %vm2399 = vcmp.ge.f32.partialorder %v1766, 0.0
        %vm2400 = vcmp.ge.f32.partialorder %v2081, 0.0
        %vm2401 = vcmp.ge.f32.partialorder %v2396, 0.0
        %v2402 = vmul.f32 %v1451, 0.2
        %v2403 = vmul.f32 %v1766, 0.2
        %v2404 = vmul.f32 %v2081, 0.2
        %v2405 = vmul.f32 %v2396, 0.2
        %v2406 = vsel %vm2398, %v1451, %v2402
        %v2407 = vsel %vm2399, %v1766, %v2403
        %v2408 = vsel %vm2400, %v2081, %v2404
        %v2409 = vsel %vm2401, %v2396, %v2405
        %v2410 = vld [vmem:[%s5] sm:$0xf]
        %v2411 = vld [vmem:[%s6] sm:$0xf]
        %2413 = vset.pattern.permute.xlu0 0
        %2414 = vperm.xlu0 %2413, %v2411
        %v2415 = vpop.permute.xlu0 %2414
        %vm2417 = vcmask 64512
        %v2419 = vsel %vm2417, %v2410, 0
        %2421 = vmatpush.msra.mxu0 0.0
        %2422 = vmatpush.msra.mxu0 0.0
        %2423 = vmatpush.msra.mxu0 0.0
        %2424 = vmatpush.msra.mxu0 0.0
        %2425 = vmatpush.msra.mxu0 0.0
        %2426 = vmatpush.msra.mxu0 0.0
        %2427 = vmatpush.msra.mxu0 0.0
        %2428 = vmatpush.msra.mxu0 0.0
        %2429 = vmatpush.msra.mxu0 0.0
        %2430 = vmatpush.msra.mxu0 0.0
        %2431 = vmatpush.msra.mxu0 0.0
        %2432 = vmatpush.msra.mxu0 0.0
        %2433 = vmatpush.msra.mxu0 0.0
        %2434 = vmatpush.msra.mxu0 0.0
        %2435 = vmatpush.msra.mxu0 0.0
        %v2436 = vand.u32 %v2406, 4294901760
        %2437 = vmatpush.msra.mxu0 %v2436
        %v2438 = vand.u32 %v2419, 4294901760
        %v2439 = vsub.f32 %v2419, %v2438
        %v2440 = vand.u32 %v2439, 4294901760
        %v2441 = vsub.f32 %v2439, %v2440
        %v2442 = vand.u32 %v2441, 4294901760
        %2443 = vmatmul.f32.gmra.mxu0 %v2442
        %v2444 = vpop.f32.mrf.mxu0
        %v2445 = vadd.f32 %v2415, %v2444
        %2446 = vdwg.mxu0
        %2447 = vmatpush.msra.mxu0 0.0
        %2448 = vmatpush.msra.mxu0 0.0
        %2449 = vmatpush.msra.mxu0 0.0
        %2450 = vmatpush.msra.mxu0 0.0
        %2451 = vmatpush.msra.mxu0 0.0
        %2452 = vmatpush.msra.mxu0 0.0
        %2453 = vmatpush.msra.mxu0 0.0
        %2454 = vmatpush.msra.mxu0 0.0
        %2455 = vmatpush.msra.mxu0 0.0
        %2456 = vmatpush.msra.mxu0 0.0
        %2457 = vmatpush.msra.mxu0 0.0
        %2458 = vmatpush.msra.mxu0 0.0
        %2459 = vmatpush.msra.mxu0 0.0
        %2460 = vmatpush.msra.mxu0 0.0
        %2461 = vmatpush.msra.mxu0 0.0
        %v2462 = vand.u32 %v2406, 4294901760
        %v2463 = vsub.f32 %v2406, %v2462
        %v2464 = vand.u32 %v2463, 4294901760
        %v2465 = vsub.f32 %v2463, %v2464
        %v2466 = vand.u32 %v2465, 4294901760
        %2467 = vmatpush.msra.mxu0 %v2466
        %v2468 = vand.u32 %v2419, 4294901760
        %2469 = vmatmul.f32.gmra.mxu0 %v2468
        %v2470 = vpop.f32.mrf.mxu0
        %v2471 = vadd.f32 %v2445, %v2470
        %2472 = vdwg.mxu0
        %2473 = vmatpush.msra.mxu0 0.0
        %2474 = vmatpush.msra.mxu0 0.0
        %2475 = vmatpush.msra.mxu0 0.0
        %2476 = vmatpush.msra.mxu0 0.0
        %2477 = vmatpush.msra.mxu0 0.0
        %2478 = vmatpush.msra.mxu0 0.0
        %2479 = vmatpush.msra.mxu0 0.0
        %2480 = vmatpush.msra.mxu0 0.0
        %2481 = vmatpush.msra.mxu0 0.0
        %2482 = vmatpush.msra.mxu0 0.0
        %2483 = vmatpush.msra.mxu0 0.0
        %2484 = vmatpush.msra.mxu0 0.0
        %2485 = vmatpush.msra.mxu0 0.0
        %2486 = vmatpush.msra.mxu0 0.0
        %2487 = vmatpush.msra.mxu0 0.0
        %v2488 = vand.u32 %v2406, 4294901760
        %v2489 = vsub.f32 %v2406, %v2488
        %2490 = vmatpush.msra.mxu0 %v2489
        %v2491 = vand.u32 %v2419, 4294901760
        %v2492 = vsub.f32 %v2419, %v2491
        %2493 = vmatmul.f32.gmra.mxu0 %v2492
        %v2494 = vpop.f32.mrf.mxu0
        %v2495 = vadd.f32 %v2471, %v2494
        %2496 = vdwg.mxu0
        %2497 = vmatpush.msra.mxu0 0.0
        %2498 = vmatpush.msra.mxu0 0.0
        %2499 = vmatpush.msra.mxu0 0.0
        %2500 = vmatpush.msra.mxu0 0.0
        %2501 = vmatpush.msra.mxu0 0.0
        %2502 = vmatpush.msra.mxu0 0.0
        %2503 = vmatpush.msra.mxu0 0.0
        %2504 = vmatpush.msra.mxu0 0.0
        %2505 = vmatpush.msra.mxu0 0.0
        %2506 = vmatpush.msra.mxu0 0.0
        %2507 = vmatpush.msra.mxu0 0.0
        %2508 = vmatpush.msra.mxu0 0.0
        %2509 = vmatpush.msra.mxu0 0.0
        %2510 = vmatpush.msra.mxu0 0.0
        %2511 = vmatpush.msra.mxu0 0.0
        %v2512 = vand.u32 %v2406, 4294901760
        %2513 = vmatpush.msra.mxu0 %v2512
        %v2514 = vand.u32 %v2419, 4294901760
        %v2515 = vsub.f32 %v2419, %v2514
        %v2516 = vand.u32 %v2515, 4294901760
        %2517 = vmatmul.f32.gmra.mxu0 %v2516
        %v2518 = vpop.f32.mrf.mxu0
        %v2519 = vadd.f32 %v2495, %v2518
        %2520 = vdwg.mxu0
        %2521 = vmatpush.msra.mxu0 0.0
        %2522 = vmatpush.msra.mxu0 0.0
        %2523 = vmatpush.msra.mxu0 0.0
        %2524 = vmatpush.msra.mxu0 0.0
        %2525 = vmatpush.msra.mxu0 0.0
        %2526 = vmatpush.msra.mxu0 0.0
        %2527 = vmatpush.msra.mxu0 0.0
        %2528 = vmatpush.msra.mxu0 0.0
        %2529 = vmatpush.msra.mxu0 0.0
        %2530 = vmatpush.msra.mxu0 0.0
        %2531 = vmatpush.msra.mxu0 0.0
        %2532 = vmatpush.msra.mxu0 0.0
        %2533 = vmatpush.msra.mxu0 0.0
        %2534 = vmatpush.msra.mxu0 0.0
        %2535 = vmatpush.msra.mxu0 0.0
        %v2536 = vand.u32 %v2406, 4294901760
        %v2537 = vsub.f32 %v2406, %v2536
        %v2538 = vand.u32 %v2537, 4294901760
        %2539 = vmatpush.msra.mxu0 %v2538
        %v2540 = vand.u32 %v2419, 4294901760
        %2541 = vmatmul.f32.gmra.mxu0 %v2540
        %v2542 = vpop.f32.mrf.mxu0
        %v2543 = vadd.f32 %v2519, %v2542
        %2544 = vdwg.mxu0
        %2545 = vmatpush.msra.mxu0 0.0
        %2546 = vmatpush.msra.mxu0 0.0
        %2547 = vmatpush.msra.mxu0 0.0
        %2548 = vmatpush.msra.mxu0 0.0
        %2549 = vmatpush.msra.mxu0 0.0
        %2550 = vmatpush.msra.mxu0 0.0
        %2551 = vmatpush.msra.mxu0 0.0
        %2552 = vmatpush.msra.mxu0 0.0
        %2553 = vmatpush.msra.mxu0 0.0
        %2554 = vmatpush.msra.mxu0 0.0
        %2555 = vmatpush.msra.mxu0 0.0
        %2556 = vmatpush.msra.mxu0 0.0
        %2557 = vmatpush.msra.mxu0 0.0
        %2558 = vmatpush.msra.mxu0 0.0
        %2559 = vmatpush.msra.mxu0 0.0
        %v2560 = vand.u32 %v2406, 4294901760
        %2561 = vmatpush.msra.mxu0 %v2560
        %v2562 = vand.u32 %v2419, 4294901760
        %2563 = vmatmul.f32.gmra.mxu0 %v2562
        %v2564 = vpop.f32.mrf.mxu0
        %v2565 = vadd.f32 %v2543, %v2564
        %2566 = vdwg.mxu0
        %2567 = vmatpush.msra.mxu0 0.0
        %2568 = vmatpush.msra.mxu0 0.0
        %2569 = vmatpush.msra.mxu0 0.0
        %2570 = vmatpush.msra.mxu0 0.0
        %2571 = vmatpush.msra.mxu0 0.0
        %2572 = vmatpush.msra.mxu0 0.0
        %2573 = vmatpush.msra.mxu0 0.0
        %2574 = vmatpush.msra.mxu0 0.0
        %2575 = vmatpush.msra.mxu0 0.0
        %2576 = vmatpush.msra.mxu0 0.0
        %2577 = vmatpush.msra.mxu0 0.0
        %2578 = vmatpush.msra.mxu0 0.0
        %2579 = vmatpush.msra.mxu0 0.0
        %2580 = vmatpush.msra.mxu0 0.0
        %2581 = vmatpush.msra.mxu0 0.0
        %v2582 = vand.u32 %v2407, 4294901760
        %2583 = vmatpush.msra.mxu0 %v2582
        %v2584 = vand.u32 %v2419, 4294901760
        %v2585 = vsub.f32 %v2419, %v2584
        %v2586 = vand.u32 %v2585, 4294901760
        %v2587 = vsub.f32 %v2585, %v2586
        %v2588 = vand.u32 %v2587, 4294901760
        %2589 = vmatmul.f32.gmra.mxu0 %v2588
        %v2590 = vpop.f32.mrf.mxu0
        %v2591 = vadd.f32 %v2415, %v2590
        %2592 = vdwg.mxu0
        %2593 = vmatpush.msra.mxu0 0.0
        %2594 = vmatpush.msra.mxu0 0.0
        %2595 = vmatpush.msra.mxu0 0.0
        %2596 = vmatpush.msra.mxu0 0.0
        %2597 = vmatpush.msra.mxu0 0.0
        %2598 = vmatpush.msra.mxu0 0.0
        %2599 = vmatpush.msra.mxu0 0.0
        %2600 = vmatpush.msra.mxu0 0.0
        %2601 = vmatpush.msra.mxu0 0.0
        %2602 = vmatpush.msra.mxu0 0.0
        %2603 = vmatpush.msra.mxu0 0.0
        %2604 = vmatpush.msra.mxu0 0.0
        %2605 = vmatpush.msra.mxu0 0.0
        %2606 = vmatpush.msra.mxu0 0.0
        %2607 = vmatpush.msra.mxu0 0.0
        %v2608 = vand.u32 %v2407, 4294901760
        %v2609 = vsub.f32 %v2407, %v2608
        %v2610 = vand.u32 %v2609, 4294901760
        %v2611 = vsub.f32 %v2609, %v2610
        %v2612 = vand.u32 %v2611, 4294901760
        %2613 = vmatpush.msra.mxu0 %v2612
        %v2614 = vand.u32 %v2419, 4294901760
        %2615 = vmatmul.f32.gmra.mxu0 %v2614
        %v2616 = vpop.f32.mrf.mxu0
        %v2617 = vadd.f32 %v2591, %v2616
        %2618 = vdwg.mxu0
        %2619 = vmatpush.msra.mxu0 0.0
        %2620 = vmatpush.msra.mxu0 0.0
        %2621 = vmatpush.msra.mxu0 0.0
        %2622 = vmatpush.msra.mxu0 0.0
        %2623 = vmatpush.msra.mxu0 0.0
        %2624 = vmatpush.msra.mxu0 0.0
        %2625 = vmatpush.msra.mxu0 0.0
        %2626 = vmatpush.msra.mxu0 0.0
        %2627 = vmatpush.msra.mxu0 0.0
        %2628 = vmatpush.msra.mxu0 0.0
        %2629 = vmatpush.msra.mxu0 0.0
        %2630 = vmatpush.msra.mxu0 0.0
        %2631 = vmatpush.msra.mxu0 0.0
        %2632 = vmatpush.msra.mxu0 0.0
        %2633 = vmatpush.msra.mxu0 0.0
        %v2634 = vand.u32 %v2407, 4294901760
        %v2635 = vsub.f32 %v2407, %v2634
        %2636 = vmatpush.msra.mxu0 %v2635
        %v2637 = vand.u32 %v2419, 4294901760
        %v2638 = vsub.f32 %v2419, %v2637
        %2639 = vmatmul.f32.gmra.mxu0 %v2638
        %v2640 = vpop.f32.mrf.mxu0
        %v2641 = vadd.f32 %v2617, %v2640
        %2642 = vdwg.mxu0
        %2643 = vmatpush.msra.mxu0 0.0
        %2644 = vmatpush.msra.mxu0 0.0
        %2645 = vmatpush.msra.mxu0 0.0
        %2646 = vmatpush.msra.mxu0 0.0
        %2647 = vmatpush.msra.mxu0 0.0
        %2648 = vmatpush.msra.mxu0 0.0
        %2649 = vmatpush.msra.mxu0 0.0
        %2650 = vmatpush.msra.mxu0 0.0
        %2651 = vmatpush.msra.mxu0 0.0
        %2652 = vmatpush.msra.mxu0 0.0
        %2653 = vmatpush.msra.mxu0 0.0
        %2654 = vmatpush.msra.mxu0 0.0
        %2655 = vmatpush.msra.mxu0 0.0
        %2656 = vmatpush.msra.mxu0 0.0
        %2657 = vmatpush.msra.mxu0 0.0
        %v2658 = vand.u32 %v2407, 4294901760
        %2659 = vmatpush.msra.mxu0 %v2658
        %v2660 = vand.u32 %v2419, 4294901760
        %v2661 = vsub.f32 %v2419, %v2660
        %v2662 = vand.u32 %v2661, 4294901760
        %2663 = vmatmul.f32.gmra.mxu0 %v2662
        %v2664 = vpop.f32.mrf.mxu0
        %v2665 = vadd.f32 %v2641, %v2664
        %2666 = vdwg.mxu0
        %2667 = vmatpush.msra.mxu0 0.0
        %2668 = vmatpush.msra.mxu0 0.0
        %2669 = vmatpush.msra.mxu0 0.0
        %2670 = vmatpush.msra.mxu0 0.0
        %2671 = vmatpush.msra.mxu0 0.0
        %2672 = vmatpush.msra.mxu0 0.0
        %2673 = vmatpush.msra.mxu0 0.0
        %2674 = vmatpush.msra.mxu0 0.0
        %2675 = vmatpush.msra.mxu0 0.0
        %2676 = vmatpush.msra.mxu0 0.0
        %2677 = vmatpush.msra.mxu0 0.0
        %2678 = vmatpush.msra.mxu0 0.0
        %2679 = vmatpush.msra.mxu0 0.0
        %2680 = vmatpush.msra.mxu0 0.0
        %2681 = vmatpush.msra.mxu0 0.0
        %v2682 = vand.u32 %v2407, 4294901760
        %v2683 = vsub.f32 %v2407, %v2682
        %v2684 = vand.u32 %v2683, 4294901760
        %2685 = vmatpush.msra.mxu0 %v2684
        %v2686 = vand.u32 %v2419, 4294901760
        %2687 = vmatmul.f32.gmra.mxu0 %v2686
        %v2688 = vpop.f32.mrf.mxu0
        %v2689 = vadd.f32 %v2665, %v2688
        %2690 = vdwg.mxu0
        %2691 = vmatpush.msra.mxu0 0.0
        %2692 = vmatpush.msra.mxu0 0.0
        %2693 = vmatpush.msra.mxu0 0.0
        %2694 = vmatpush.msra.mxu0 0.0
        %2695 = vmatpush.msra.mxu0 0.0
        %2696 = vmatpush.msra.mxu0 0.0
        %2697 = vmatpush.msra.mxu0 0.0
        %2698 = vmatpush.msra.mxu0 0.0
        %2699 = vmatpush.msra.mxu0 0.0
        %2700 = vmatpush.msra.mxu0 0.0
        %2701 = vmatpush.msra.mxu0 0.0
        %2702 = vmatpush.msra.mxu0 0.0
        %2703 = vmatpush.msra.mxu0 0.0
        %2704 = vmatpush.msra.mxu0 0.0
        %2705 = vmatpush.msra.mxu0 0.0
        %v2706 = vand.u32 %v2407, 4294901760
        %2707 = vmatpush.msra.mxu0 %v2706
        %v2708 = vand.u32 %v2419, 4294901760
        %2709 = vmatmul.f32.gmra.mxu0 %v2708
        %v2710 = vpop.f32.mrf.mxu0
        %v2711 = vadd.f32 %v2689, %v2710
        %2712 = vdwg.mxu0
        %2713 = vmatpush.msra.mxu0 0.0
        %2714 = vmatpush.msra.mxu0 0.0
        %2715 = vmatpush.msra.mxu0 0.0
        %2716 = vmatpush.msra.mxu0 0.0
        %2717 = vmatpush.msra.mxu0 0.0
        %2718 = vmatpush.msra.mxu0 0.0
        %2719 = vmatpush.msra.mxu0 0.0
        %2720 = vmatpush.msra.mxu0 0.0
        %2721 = vmatpush.msra.mxu0 0.0
        %2722 = vmatpush.msra.mxu0 0.0
        %2723 = vmatpush.msra.mxu0 0.0
        %2724 = vmatpush.msra.mxu0 0.0
        %2725 = vmatpush.msra.mxu0 0.0
        %2726 = vmatpush.msra.mxu0 0.0
        %2727 = vmatpush.msra.mxu0 0.0
        %v2728 = vand.u32 %v2408, 4294901760
        %2729 = vmatpush.msra.mxu0 %v2728
        %v2730 = vand.u32 %v2419, 4294901760
        %v2731 = vsub.f32 %v2419, %v2730
        %v2732 = vand.u32 %v2731, 4294901760
        %v2733 = vsub.f32 %v2731, %v2732
        %v2734 = vand.u32 %v2733, 4294901760
        %2735 = vmatmul.f32.gmra.mxu0 %v2734
        %v2736 = vpop.f32.mrf.mxu0
        %v2737 = vadd.f32 %v2415, %v2736
        %2738 = vdwg.mxu0
        %2739 = vmatpush.msra.mxu0 0.0
        %2740 = vmatpush.msra.mxu0 0.0
        %2741 = vmatpush.msra.mxu0 0.0
        %2742 = vmatpush.msra.mxu0 0.0
        %2743 = vmatpush.msra.mxu0 0.0
        %2744 = vmatpush.msra.mxu0 0.0
        %2745 = vmatpush.msra.mxu0 0.0
        %2746 = vmatpush.msra.mxu0 0.0
        %2747 = vmatpush.msra.mxu0 0.0
        %2748 = vmatpush.msra.mxu0 0.0
        %2749 = vmatpush.msra.mxu0 0.0
        %2750 = vmatpush.msra.mxu0 0.0
        %2751 = vmatpush.msra.mxu0 0.0
        %2752 = vmatpush.msra.mxu0 0.0
        %2753 = vmatpush.msra.mxu0 0.0
        %v2754 = vand.u32 %v2408, 4294901760
        %v2755 = vsub.f32 %v2408, %v2754
        %v2756 = vand.u32 %v2755, 4294901760
        %v2757 = vsub.f32 %v2755, %v2756
        %v2758 = vand.u32 %v2757, 4294901760
        %2759 = vmatpush.msra.mxu0 %v2758
        %v2760 = vand.u32 %v2419, 4294901760
        %2761 = vmatmul.f32.gmra.mxu0 %v2760
        %v2762 = vpop.f32.mrf.mxu0
        %v2763 = vadd.f32 %v2737, %v2762
        %2764 = vdwg.mxu0
        %2765 = vmatpush.msra.mxu0 0.0
        %2766 = vmatpush.msra.mxu0 0.0
        %2767 = vmatpush.msra.mxu0 0.0
        %2768 = vmatpush.msra.mxu0 0.0
        %2769 = vmatpush.msra.mxu0 0.0
        %2770 = vmatpush.msra.mxu0 0.0
        %2771 = vmatpush.msra.mxu0 0.0
        %2772 = vmatpush.msra.mxu0 0.0
        %2773 = vmatpush.msra.mxu0 0.0
        %2774 = vmatpush.msra.mxu0 0.0
        %2775 = vmatpush.msra.mxu0 0.0
        %2776 = vmatpush.msra.mxu0 0.0
        %2777 = vmatpush.msra.mxu0 0.0
        %2778 = vmatpush.msra.mxu0 0.0
        %2779 = vmatpush.msra.mxu0 0.0
        %v2780 = vand.u32 %v2408, 4294901760
        %v2781 = vsub.f32 %v2408, %v2780
        %2782 = vmatpush.msra.mxu0 %v2781
        %v2783 = vand.u32 %v2419, 4294901760
        %v2784 = vsub.f32 %v2419, %v2783
        %2785 = vmatmul.f32.gmra.mxu0 %v2784
        %v2786 = vpop.f32.mrf.mxu0
        %v2787 = vadd.f32 %v2763, %v2786
        %2788 = vdwg.mxu0
        %2789 = vmatpush.msra.mxu0 0.0
        %2790 = vmatpush.msra.mxu0 0.0
        %2791 = vmatpush.msra.mxu0 0.0
        %2792 = vmatpush.msra.mxu0 0.0
        %2793 = vmatpush.msra.mxu0 0.0
        %2794 = vmatpush.msra.mxu0 0.0
        %2795 = vmatpush.msra.mxu0 0.0
        %2796 = vmatpush.msra.mxu0 0.0
        %2797 = vmatpush.msra.mxu0 0.0
        %2798 = vmatpush.msra.mxu0 0.0
        %2799 = vmatpush.msra.mxu0 0.0
        %2800 = vmatpush.msra.mxu0 0.0
        %2801 = vmatpush.msra.mxu0 0.0
        %2802 = vmatpush.msra.mxu0 0.0
        %2803 = vmatpush.msra.mxu0 0.0
        %v2804 = vand.u32 %v2408, 4294901760
        %2805 = vmatpush.msra.mxu0 %v2804
        %v2806 = vand.u32 %v2419, 4294901760
        %v2807 = vsub.f32 %v2419, %v2806
        %v2808 = vand.u32 %v2807, 4294901760
        %2809 = vmatmul.f32.gmra.mxu0 %v2808
        %v2810 = vpop.f32.mrf.mxu0
        %v2811 = vadd.f32 %v2787, %v2810
        %2812 = vdwg.mxu0
        %2813 = vmatpush.msra.mxu0 0.0
        %2814 = vmatpush.msra.mxu0 0.0
        %2815 = vmatpush.msra.mxu0 0.0
        %2816 = vmatpush.msra.mxu0 0.0
        %2817 = vmatpush.msra.mxu0 0.0
        %2818 = vmatpush.msra.mxu0 0.0
        %2819 = vmatpush.msra.mxu0 0.0
        %2820 = vmatpush.msra.mxu0 0.0
        %2821 = vmatpush.msra.mxu0 0.0
        %2822 = vmatpush.msra.mxu0 0.0
        %2823 = vmatpush.msra.mxu0 0.0
        %2824 = vmatpush.msra.mxu0 0.0
        %2825 = vmatpush.msra.mxu0 0.0
        %2826 = vmatpush.msra.mxu0 0.0
        %2827 = vmatpush.msra.mxu0 0.0
        %v2828 = vand.u32 %v2408, 4294901760
        %v2829 = vsub.f32 %v2408, %v2828
        %v2830 = vand.u32 %v2829, 4294901760
        %2831 = vmatpush.msra.mxu0 %v2830
        %v2832 = vand.u32 %v2419, 4294901760
        %2833 = vmatmul.f32.gmra.mxu0 %v2832
        %v2834 = vpop.f32.mrf.mxu0
        %v2835 = vadd.f32 %v2811, %v2834
        %2836 = vdwg.mxu0
        %2837 = vmatpush.msra.mxu0 0.0
        %2838 = vmatpush.msra.mxu0 0.0
        %2839 = vmatpush.msra.mxu0 0.0
        %2840 = vmatpush.msra.mxu0 0.0
        %2841 = vmatpush.msra.mxu0 0.0
        %2842 = vmatpush.msra.mxu0 0.0
        %2843 = vmatpush.msra.mxu0 0.0
        %2844 = vmatpush.msra.mxu0 0.0
        %2845 = vmatpush.msra.mxu0 0.0
        %2846 = vmatpush.msra.mxu0 0.0
        %2847 = vmatpush.msra.mxu0 0.0
        %2848 = vmatpush.msra.mxu0 0.0
        %2849 = vmatpush.msra.mxu0 0.0
        %2850 = vmatpush.msra.mxu0 0.0
        %2851 = vmatpush.msra.mxu0 0.0
        %v2852 = vand.u32 %v2408, 4294901760
        %2853 = vmatpush.msra.mxu0 %v2852
        %v2854 = vand.u32 %v2419, 4294901760
        %2855 = vmatmul.f32.gmra.mxu0 %v2854
        %v2856 = vpop.f32.mrf.mxu0
        %v2857 = vadd.f32 %v2835, %v2856
        %2858 = vdwg.mxu0
        %2859 = vmatpush.msra.mxu0 0.0
        %2860 = vmatpush.msra.mxu0 0.0
        %2861 = vmatpush.msra.mxu0 0.0
        %2862 = vmatpush.msra.mxu0 0.0
        %2863 = vmatpush.msra.mxu0 0.0
        %2864 = vmatpush.msra.mxu0 0.0
        %2865 = vmatpush.msra.mxu0 0.0
        %2866 = vmatpush.msra.mxu0 0.0
        %2867 = vmatpush.msra.mxu0 0.0
        %2868 = vmatpush.msra.mxu0 0.0
        %2869 = vmatpush.msra.mxu0 0.0
        %2870 = vmatpush.msra.mxu0 0.0
        %2871 = vmatpush.msra.mxu0 0.0
        %2872 = vmatpush.msra.mxu0 0.0
        %2873 = vmatpush.msra.mxu0 0.0
        %v2874 = vand.u32 %v2409, 4294901760
        %2875 = vmatpush.msra.mxu0 %v2874
        %v2876 = vand.u32 %v2419, 4294901760
        %v2877 = vsub.f32 %v2419, %v2876
        %v2878 = vand.u32 %v2877, 4294901760
        %v2879 = vsub.f32 %v2877, %v2878
        %v2880 = vand.u32 %v2879, 4294901760
        %2881 = vmatmul.f32.gmra.mxu0 %v2880
        %v2882 = vpop.f32.mrf.mxu0
        %v2883 = vadd.f32 %v2415, %v2882
        %2884 = vdwg.mxu0
        %2885 = vmatpush.msra.mxu0 0.0
        %2886 = vmatpush.msra.mxu0 0.0
        %2887 = vmatpush.msra.mxu0 0.0
        %2888 = vmatpush.msra.mxu0 0.0
        %2889 = vmatpush.msra.mxu0 0.0
        %2890 = vmatpush.msra.mxu0 0.0
        %2891 = vmatpush.msra.mxu0 0.0
        %2892 = vmatpush.msra.mxu0 0.0
        %2893 = vmatpush.msra.mxu0 0.0
        %2894 = vmatpush.msra.mxu0 0.0
        %2895 = vmatpush.msra.mxu0 0.0
        %2896 = vmatpush.msra.mxu0 0.0
        %2897 = vmatpush.msra.mxu0 0.0
        %2898 = vmatpush.msra.mxu0 0.0
        %2899 = vmatpush.msra.mxu0 0.0
        %v2900 = vand.u32 %v2409, 4294901760
        %v2901 = vsub.f32 %v2409, %v2900
        %v2902 = vand.u32 %v2901, 4294901760
        %v2903 = vsub.f32 %v2901, %v2902
        %v2904 = vand.u32 %v2903, 4294901760
        %2905 = vmatpush.msra.mxu0 %v2904
        %v2906 = vand.u32 %v2419, 4294901760
        %2907 = vmatmul.f32.gmra.mxu0 %v2906
        %v2908 = vpop.f32.mrf.mxu0
        %v2909 = vadd.f32 %v2883, %v2908
        %2910 = vdwg.mxu0
        %2911 = vmatpush.msra.mxu0 0.0
        %2912 = vmatpush.msra.mxu0 0.0
        %2913 = vmatpush.msra.mxu0 0.0
        %2914 = vmatpush.msra.mxu0 0.0
        %2915 = vmatpush.msra.mxu0 0.0
        %2916 = vmatpush.msra.mxu0 0.0
        %2917 = vmatpush.msra.mxu0 0.0
        %2918 = vmatpush.msra.mxu0 0.0
        %2919 = vmatpush.msra.mxu0 0.0
        %2920 = vmatpush.msra.mxu0 0.0
        %2921 = vmatpush.msra.mxu0 0.0
        %2922 = vmatpush.msra.mxu0 0.0
        %2923 = vmatpush.msra.mxu0 0.0
        %2924 = vmatpush.msra.mxu0 0.0
        %2925 = vmatpush.msra.mxu0 0.0
        %v2926 = vand.u32 %v2409, 4294901760
        %v2927 = vsub.f32 %v2409, %v2926
        %2928 = vmatpush.msra.mxu0 %v2927
        %v2929 = vand.u32 %v2419, 4294901760
        %v2930 = vsub.f32 %v2419, %v2929
        %2931 = vmatmul.f32.gmra.mxu0 %v2930
        %v2932 = vpop.f32.mrf.mxu0
        %v2933 = vadd.f32 %v2909, %v2932
        %2934 = vdwg.mxu0
        %2935 = vmatpush.msra.mxu0 0.0
        %2936 = vmatpush.msra.mxu0 0.0
        %2937 = vmatpush.msra.mxu0 0.0
        %2938 = vmatpush.msra.mxu0 0.0
        %2939 = vmatpush.msra.mxu0 0.0
        %2940 = vmatpush.msra.mxu0 0.0
        %2941 = vmatpush.msra.mxu0 0.0
        %2942 = vmatpush.msra.mxu0 0.0
        %2943 = vmatpush.msra.mxu0 0.0
        %2944 = vmatpush.msra.mxu0 0.0
        %2945 = vmatpush.msra.mxu0 0.0
        %2946 = vmatpush.msra.mxu0 0.0
        %2947 = vmatpush.msra.mxu0 0.0
        %2948 = vmatpush.msra.mxu0 0.0
        %2949 = vmatpush.msra.mxu0 0.0
        %v2950 = vand.u32 %v2409, 4294901760
        %2951 = vmatpush.msra.mxu0 %v2950
        %v2952 = vand.u32 %v2419, 4294901760
        %v2953 = vsub.f32 %v2419, %v2952
        %v2954 = vand.u32 %v2953, 4294901760
        %2955 = vmatmul.f32.gmra.mxu0 %v2954
        %v2956 = vpop.f32.mrf.mxu0
        %v2957 = vadd.f32 %v2933, %v2956
        %2958 = vdwg.mxu0
        %2959 = vmatpush.msra.mxu0 0.0
        %2960 = vmatpush.msra.mxu0 0.0
        %2961 = vmatpush.msra.mxu0 0.0
        %2962 = vmatpush.msra.mxu0 0.0
        %2963 = vmatpush.msra.mxu0 0.0
        %2964 = vmatpush.msra.mxu0 0.0
        %2965 = vmatpush.msra.mxu0 0.0
        %2966 = vmatpush.msra.mxu0 0.0
        %2967 = vmatpush.msra.mxu0 0.0
        %2968 = vmatpush.msra.mxu0 0.0
        %2969 = vmatpush.msra.mxu0 0.0
        %2970 = vmatpush.msra.mxu0 0.0
        %2971 = vmatpush.msra.mxu0 0.0
        %2972 = vmatpush.msra.mxu0 0.0
        %2973 = vmatpush.msra.mxu0 0.0
        %v2974 = vand.u32 %v2409, 4294901760
        %v2975 = vsub.f32 %v2409, %v2974
        %v2976 = vand.u32 %v2975, 4294901760
        %2977 = vmatpush.msra.mxu0 %v2976
        %v2978 = vand.u32 %v2419, 4294901760
        %2979 = vmatmul.f32.gmra.mxu0 %v2978
        %v2980 = vpop.f32.mrf.mxu0
        %v2981 = vadd.f32 %v2957, %v2980
        %2982 = vdwg.mxu0
        %2983 = vmatpush.msra.mxu0 0.0
        %2984 = vmatpush.msra.mxu0 0.0
        %2985 = vmatpush.msra.mxu0 0.0
        %2986 = vmatpush.msra.mxu0 0.0
        %2987 = vmatpush.msra.mxu0 0.0
        %2988 = vmatpush.msra.mxu0 0.0
        %2989 = vmatpush.msra.mxu0 0.0
        %2990 = vmatpush.msra.mxu0 0.0
        %2991 = vmatpush.msra.mxu0 0.0
        %2992 = vmatpush.msra.mxu0 0.0
        %2993 = vmatpush.msra.mxu0 0.0
        %2994 = vmatpush.msra.mxu0 0.0
        %2995 = vmatpush.msra.mxu0 0.0
        %2996 = vmatpush.msra.mxu0 0.0
        %2997 = vmatpush.msra.mxu0 0.0
        %v2998 = vand.u32 %v2409, 4294901760
        %2999 = vmatpush.msra.mxu0 %v2998
        %v3000 = vand.u32 %v2419, 4294901760
        %3001 = vmatmul.f32.gmra.mxu0 %v3000
        %v3002 = vpop.f32.mrf.mxu0
        %v3003 = vadd.f32 %v2981, %v3002
        %3004 = vdwg.mxu0
        %3005 = vst [vmem:[#allocation1] ss:$2 sm:$0xff] %v409
        %s3006 = scalar_lea.vmem [#allocation1], 16
        %3007 = vst [vmem:[%s3006] ss:$2 sm:$0xff] %v410
        %v3008 = vld.sshfl [vmem:[#allocation1] sm:$0xff pattern:$0x75316420]
        %v3009 = vld.sshfl [vmem:[#allocation1 + $0x8] sm:$0xff pattern:$0x75316420]
        %v3010 = vld.sshfl [vmem:[#allocation1 + $0x10] sm:$0xff pattern:$0x75316420]
        %v3011 = vld.sshfl [vmem:[#allocation1 + $0x18] sm:$0xff pattern:$0x75316420]
        %v3016 = vadd.f32 %v2565, %v3008
        %v3017 = vadd.f32 %v2711, %v3009
        %v3018 = vadd.f32 %v2857, %v3010
        %v3019 = vadd.f32 %v3003, %v3011
        %v3024 = vrot.slane %v3017, 4
        %v3025 = vrot.slane %v3019, 4
        %vm3026 = vcmask 1043456
        %v3027 = vsel %vm3026, %v3016, %v3024
        %v3028 = vsel %vm3026, %v3018, %v3025
        %3031 = vst [vmem:[%s396] sm:$0xff] %v3027
        %3032 = vst [vmem:[%s396 + $0x8] sm:$0xff] %v3028
        %s3033 = sand.u32 %s209, 1
        %s3034 = scalar_lea.sflag [#allocation5], %s3033
        %s3035 = sand.u32 %s209, 1
        %s3036 = smul.addr %s3035, 16
        %s3037 = scalar_lea.vmem [#allocation9], %s3036
        // Predicated region
        $region61: #{tpu_custom_call.1} parent=47 // pred_check
          %p3038 = pneg %p219
        $region62: #{tpu_custom_call.1} parent=47 // pred_check_branch
          %3040 = sbr.rel (%p3038) target = $region64
        $region63: #{tpu_custom_call.1} parent=47 // pred_region
          %s3041 = smul.u32 4, %s27
          %3043 = vsyncadd %s3034, 0
          %s3044 = smul.addr %s3041, 4
          %s3045 = scalar_lea.hbm %s7, %s3044
          %s3047 = sshll.u32 %s3037, 4
          %s3048 = int_to_ptr.vmem [resolvable:$true] %s3047
          %s3049 = sshll.u32 %s3045, 4
          %s3050 = int_to_ptr.hbm [resolvable:$true] %s3049
          %3052 = dma.vmem_to_hbm [thread:$0]  %s3048, 256, %s3050, %s3034
        $region64: #{tpu_custom_call.1} parent=47 // pred_fallthru
          _
      $region48: #{tpu_custom_call.1} parent=5 // pred_fallthru
        _
      %p3053 = scmp.le.s32.totalorder 2, %s22
      // Predicated region
      $region65: #{tpu_custom_call.1} parent=5 // pred_check
        %p3054 = pneg %p3053
      $region66: #{tpu_custom_call.1} parent=5 // pred_check_branch
        %3056 = sbr.rel (%p3054) target = $region68
      $region67: #{tpu_custom_call.1} parent=5 // pred_region
        %s3057 = ssub.s32 %s22, 2
        // Predicated region
        $region69: #{tpu_custom_call.1} parent=67 // pred_check
          %p3058 = pneg %p225
        $region70: #{tpu_custom_call.1} parent=67 // pred_check_branch
          %3060 = sbr.rel (%p3058) target = $region72
        $region71: #{tpu_custom_call.1} parent=67 // pred_region
          %s3061 = sand.u32 %s210, 1
          %s3062 = scalar_lea.sflag [#allocation5], %s3061
          %s3063 = sand.u32 %s210, 1
          %s3064 = smul.addr %s3063, 16
          %s3065 = scalar_lea.vmem [#allocation9], %s3064
          %3067 = dma.done %s3062, 256
        $region72: #{tpu_custom_call.1} parent=67 // pred_fallthru
          _
      $region68: #{tpu_custom_call.1} parent=5 // pred_fallthru
        _
    $region6: #{tpu_custom_call.1} parent=1 // loop_footer
      %s26 = sadd.s32 1, %s22
    $region7: #{tpu_custom_call.1} parent=1 // loop_footer_branch
      %21 = sbr.rel target = $region3
    $region8: #{tpu_custom_call.1} parent=1 // loop_exit
      _
    %3068 = vsyncpa [#allocation4], 1
    %s3069 = scalar_lea.sflag [#allocation4], 1
    %3070 = vsyncpa %s3069, 1
    %3071 = vsyncpa [#allocation7], 1
    %s3072 = scalar_lea.sflag [#allocation7], 1
    %3073 = vsyncpa %s3072, 1
    %3074 = vsyncpa [#allocation5], 1
    %s3075 = scalar_lea.sflag [#allocation5], 1
    %3076 = vsyncpa %s3075, 1

</llo_original>
